<compile_context>
chip_gen: v6e
topology: v6e:2x2x1
jax: 0.10.0
libtpu: 0.0.40
codegen_flags: <defaults>
</compile_context>

<pallas_src>
import functools
import math

import jax
import jax.numpy as jnp
from jax.experimental import pallas as pl
from jax.experimental.pallas import tpu as pltpu


# ----------------------------------------------------------------------------
# Fused forward kernel (one grid step == one batch element / sequence)
# ----------------------------------------------------------------------------
def _fused_attention_kernel(
        xs_ref, w_in_ref, b_in_ref,
        wqkv_ref, bqkv_ref, wo_ref, bo_ref,
        g1_ref, be1_ref, wf1_ref, bf1_ref, wf2_ref, bf2_ref,
        g2_ref, be2_ref, w_out_ref, b_out_ref,
        o_ref,
        *, n_layers, n_heads, head_dim):
    f32 = jnp.float32
    bf16 = jnp.bfloat16
    D = n_heads * head_dim

    def mm(a, w_bf16):
        # bf16 operands, f32 accumulation on the MXU.
        return jnp.dot(a.astype(bf16), w_bf16, preferred_element_type=f32)

    def layernorm(z, gamma, beta):
        mu = jnp.mean(z, axis=-1, keepdims=True)
        c = z - mu
        var = jnp.mean(c * c, axis=-1, keepdims=True)
        return c * jax.lax.rsqrt(var + 1e-5) * gamma + beta

    # in_mlp + ReLU on this sequence's N rows.
    x = jnp.maximum(mm(xs_ref[...], w_in_ref[...]) + b_in_ref[...], 0.0)   # (N, D) f32

    for l in range(n_layers):                      # static unroll over layers
        # --- fused QKV projection: one wide matmul (scale folded into Q cols).
        qkv = mm(x, wqkv_ref[l]) + bqkv_ref[l]     # (N, 3D) f32
        qkv_bf = qkv.astype(bf16)                  # single cast, reused by all heads

        # --- per-head attention (4 independent chains -> ILP for the scheduler)
        heads = []
        for h in range(n_heads):
            q_h = qkv_bf[:, h * head_dim:(h + 1) * head_dim]               # (N, hd)
            k_h = qkv_bf[:, D + h * head_dim:D + (h + 1) * head_dim]
            v_h = qkv_bf[:, 2 * D + h * head_dim:2 * D + (h + 1) * head_dim]
            # scores = q @ k^T expressed without an explicit transpose.
            s = jax.lax.dot_general(q_h, k_h, (((1,), (1,)), ((), ())),
                                    preferred_element_type=f32)            # (N, N)
            s = s - jnp.max(s, axis=-1, keepdims=True)
            p = jnp.exp(s)
            p = p * pl.reciprocal(jnp.sum(p, axis=-1, keepdims=True), approx=True)
            heads.append(jnp.dot(p.astype(bf16), v_h,
                                 preferred_element_type=f32))              # (N, hd)

        # Pack heads head-major along lanes -> one full-width output projection.
        head_cat = jnp.concatenate(heads, axis=-1)                         # (N, D)
        attn = mm(head_cat, wo_ref[l]) + bo_ref[l]                         # (N, D)

        # Residual + LN1, FFN (Linear -> ReLU -> Linear), residual + LN2.
        y1 = layernorm(x + attn, g1_ref[l], be1_ref[l])
        hid = jnp.maximum(mm(y1, wf1_ref[l]) + bf1_ref[l], 0.0)
        ffn = mm(hid, wf2_ref[l]) + bf2_ref[l]
        x = layernorm(y1 + ffn, g2_ref[l], be2_ref[l])

    # Output head (Cout = 1), fused into the same kernel.
    o_ref[...] = (mm(x, w_out_ref[...]) + b_out_ref[...]).astype(o_ref.dtype)


# ----------------------------------------------------------------------------
# One-time parameter preprocessing (hoisted out of the per-call path)
# ----------------------------------------------------------------------------
def prepare_params(params, *, n_heads=4):
    """Stack per-layer weights, fold 1/sqrt(hd) into the Q projection, cast
    matmul operands to bf16.  Call ONCE; the result is reused every forward."""
    f32, bf16 = jnp.float32, jnp.bfloat16
    w_in, b_in = params["in_mlp"]
    D = w_in.shape[1]
    hd = D // n_heads
    scale = 1.0 / math.sqrt(hd)

    names = ("wqkv", "bqkv", "wo", "bo", "g1", "be1",
             "wf1", "bf1", "wf2", "bf2", "g2", "be2")
    cols = {k: [] for k in names}
    for (wqkv, bqkv, wo, bo, g1, be1, wf1, bf1, wf2, bf2, g2, be2) in params["blocks"]:
        # Fold the attention scale into the Q columns (first D of 3D).
        cols["wqkv"].append(jnp.concatenate([wqkv[:, :D] * scale, wqkv[:, D:]], axis=1))
        cols["bqkv"].append(jnp.concatenate([bqkv[:, :D] * scale, bqkv[:, D:]], axis=1))
        cols["wo"].append(wo)
        cols["bo"].append(bo)
        cols["g1"].append(g1); cols["be1"].append(be1)
        cols["wf1"].append(wf1); cols["bf1"].append(bf1)
        cols["wf2"].append(wf2); cols["bf2"].append(bf2)
        cols["g2"].append(g2); cols["be2"].append(be2)

    def st(name, dt):
        return jnp.stack(cols[name]).astype(dt)     # (L, ...) stacked per layer

    w_out, b_out = params["out"]
    return (
        w_in.astype(bf16), b_in.astype(f32),
        st("wqkv", bf16), st("bqkv", f32),
        st("wo", bf16), st("bo", f32),
        st("g1", f32), st("be1", f32),
        st("wf1", bf16), st("bf1", f32),
        st("wf2", bf16), st("bf2", f32),
        st("g2", f32), st("be2", f32),
        w_out.astype(bf16), b_out.astype(f32),
    )


# ----------------------------------------------------------------------------
# Jitted forward: reshape -> single pallas_call (grid over batch) -> reshape
# ----------------------------------------------------------------------------
def _const_spec(arr):
    """Whole-array VMEM block with a constant index map (fetched once)."""
    nd = arr.ndim
    return pl.BlockSpec(arr.shape, lambda b: (0,) * nd)


@functools.partial(jax.jit, static_argnames=("n_heads",))
def _attention_forward_jit(prepped, xs, n_heads):
    B, N, in_dim = xs.shape
    wqkv = prepped[2]                      # (L, D, 3D)
    n_layers, D = wqkv.shape[0], wqkv.shape[1]
    head_dim = D // n_heads

    xs_flat = xs.reshape(B * N, in_dim)
    operands = (xs_flat,) + tuple(prepped)

    in_specs = [pl.BlockSpec((N, in_dim), lambda b: (b, 0))]
    in_specs += [_const_spec(a) for a in prepped]

    out = pl.pallas_call(
        functools.partial(_fused_attention_kernel,
                          n_layers=n_layers, n_heads=n_heads, head_dim=head_dim),
        grid=(B,),
        out_shape=jax.ShapeDtypeStruct((B * N, 1), jnp.float32),
        in_specs=in_specs,
        out_specs=pl.BlockSpec((N, 1), lambda b: (b, 0)),
        compiler_params=pltpu.CompilerParams(
            dimension_semantics=("parallel",)),       # shard batch over v7x's 2 TCs
    )(*operands)
    return out.reshape(B, N)


def attention_forward(prepped, xs, x=None, valid=None, *, n_heads=4):
    """Matches Attention.forward(xs, x, valid); `x` and `valid` are unused."""
    return _attention_forward_jit(prepped, xs, n_heads)


# ----------------------------------------------------------------------------
# Parameter init (deterministic, synthetic, PyTorch-layout)
# ----------------------------------------------------------------------------
def init_params(key, in_dim, n_layers, n_dim):
    def init_linear(k, fan_in, fan_out):
        kw, kb = jax.random.split(k)
        w = jax.random.normal(kw, (fan_in, fan_out), jnp.float32) * 0.05
        b = jax.random.normal(kb, (1, fan_out), jnp.float32) * 0.05
        return w, b

    keys = jax.random.split(key, n_layers + 2)
    params = {"in_mlp": init_linear(keys[0], in_dim, n_dim), "blocks": []}
    for l in range(n_layers):
        k = jax.random.split(keys[1 + l], 4)
        wqkv, bqkv = init_linear(k[0], n_dim, 3 * n_dim)
        wo, bo = init_linear(k[1], n_dim, n_dim)
        wf1, bf1 = init_linear(k[2], n_dim, 4 * n_dim)
        wf2, bf2 = init_linear(k[3], 4 * n_dim, n_dim)
        g1 = jnp.ones((1, n_dim), jnp.float32)
        be1 = jnp.zeros((1, n_dim), jnp.float32)
        g2 = jnp.ones((1, n_dim), jnp.float32)
        be2 = jnp.zeros((1, n_dim), jnp.float32)
        params["blocks"].append(
            (wqkv, bqkv, wo, bo, g1, be1, wf1, bf1, wf2, bf2, g2, be2))
    params["out"] = init_linear(keys[1 + n_layers], n_dim, 1)
    # TODO(synk): the PyTorch module also owns `self.weight` (Linear(n_dim, 1))
    # but never uses it in forward(), so it is omitted here.
    return params


# ----------------------------------------------------------------------------
# Pure-JAX f32 reference (for correctness check)
# ----------------------------------------------------------------------------
def reference_forward(params, xs, *, n_heads=4):
    def lin(z, w, b):
        return z @ w + b

    def ln(z, g, be):
        mu = z.mean(-1, keepdims=True)
        var = ((z - mu) ** 2).mean(-1, keepdims=True)
        return (z - mu) / jnp.sqrt(var + 1e-5) * g + be

    f = jax.nn.relu(lin(xs, *params["in_mlp"]))
    for (wqkv, bqkv, wo, bo, g1, be1, wf1, bf1, wf2, bf2, g2, be2) in params["blocks"]:
        B, N, D = f.shape
        hd = D // n_heads
        qkv = lin(f, wqkv, bqkv)
        q, k, v = qkv[..., :D], qkv[..., D:2 * D], qkv[..., 2 * D:]
        q = q.reshape(B, N, n_heads, hd).transpose(0, 2, 1, 3) / math.sqrt(hd)
        k = k.reshape(B, N, n_heads, hd).transpose(0, 2, 1, 3)
        v = v.reshape(B, N, n_heads, hd).transpose(0, 2, 1, 3)
        p = jax.nn.softmax(jnp.einsum("bhqd,bhkd->bhqk", q, k), axis=-1)
        a = jnp.einsum("bhqk,bhkd->bhqd", p, v).transpose(0, 2, 1, 3).reshape(B, N, D)
        a = lin(a, wo, bo)
        y1 = ln(f + a, g1, be1)
        ff = lin(jax.nn.relu(lin(y1, wf1, bf1)), wf2, bf2)
        f = ln(y1 + ff, g2, be2)
    return lin(f, *params["out"])[..., 0]


if __name__ == "__main__":
    B, N, in_dim, n_dim, n_layers, n_heads = 2, 8, 16, 32, 2, 4

    key = jax.random.PRNGKey(0)
    kp, kx = jax.random.split(key)
    params = init_params(kp, in_dim, n_layers, n_dim)

    # One-time parameter prep (item 4): happens outside the per-call path.
    prepped = prepare_params(params, n_heads=n_heads)

    xs = jax.random.normal(kx, (B, N, in_dim), jnp.float32)
    x_unused = jnp.zeros((B, in_dim), jnp.float32)   # unused by forward()
    valid = jnp.ones((B, N), jnp.float32)            # unused by forward()

    out = attention_forward(prepped, xs, x_unused, valid, n_heads=n_heads)
    out = jax.block_until_ready(out)
    assert out.shape == (B, N)

    # Kernel uses bf16 matmul operands (f32 accumulation) and an approx
    # reciprocal in the softmax, so compare against the pure-f32 reference
    # with a bf16-appropriate tolerance.
    ref = reference_forward(params, xs, n_heads=n_heads)
    max_err = float(jnp.max(jnp.abs(out - ref)))
    assert jnp.allclose(out, ref, rtol=3e-2, atol=3e-2), max_err

    print("KERNEL_OK")
</pallas_src>

<mosaic_0001>
module attributes {stable_mosaic.version = 11 : i64} {
  func.func @_fused_attention_kernel(%arg0: i32, %arg1: memref<8x16xf32, #tpu.memory_space<vmem>>, %arg2: memref<16x32xbf16, #tpu.memory_space<vmem>>, %arg3: memref<1x32xf32, #tpu.memory_space<vmem>>, %arg4: memref<2x32x96xbf16, #tpu.memory_space<vmem>>, %arg5: memref<2x1x96xf32, #tpu.memory_space<vmem>>, %arg6: memref<2x32x32xbf16, #tpu.memory_space<vmem>>, %arg7: memref<2x1x32xf32, #tpu.memory_space<vmem>>, %arg8: memref<2x1x32xf32, #tpu.memory_space<vmem>>, %arg9: memref<2x1x32xf32, #tpu.memory_space<vmem>>, %arg10: memref<2x32x128xbf16, #tpu.memory_space<vmem>>, %arg11: memref<2x1x128xf32, #tpu.memory_space<vmem>>, %arg12: memref<2x128x32xbf16, #tpu.memory_space<vmem>>, %arg13: memref<2x1x32xf32, #tpu.memory_space<vmem>>, %arg14: memref<2x1x32xf32, #tpu.memory_space<vmem>>, %arg15: memref<2x1x32xf32, #tpu.memory_space<vmem>>, %arg16: memref<32x1xbf16, #tpu.memory_space<vmem>>, %arg17: memref<1x1xf32, #tpu.memory_space<vmem>>, %arg18: memref<8x1xf32, #tpu.memory_space<vmem>>) attributes {dimension_semantics = [#tpu.dimension_semantics<parallel>], iteration_bounds = array<i64: 2>, scalar_prefetch = 0 : i64, scratch_operands = 0 : i64, tpu.core_type = #tpu.core_type<tc>, window_params = [{transform_indices = @transform_0, window_bounds = array<i64: 8, 16>}, {pipeline_mode = #tpu.pipeline_mode<synchronous>, transform_indices = @transform_1, window_bounds = array<i64: 16, 32>}, {pipeline_mode = #tpu.pipeline_mode<synchronous>, transform_indices = @transform_2, window_bounds = array<i64: 1, 32>}, {pipeline_mode = #tpu.pipeline_mode<synchronous>, transform_indices = @transform_3, window_bounds = array<i64: 2, 32, 96>}, {pipeline_mode = #tpu.pipeline_mode<synchronous>, transform_indices = @transform_4, window_bounds = array<i64: 2, 1, 96>}, {pipeline_mode = #tpu.pipeline_mode<synchronous>, transform_indices = @transform_5, window_bounds = array<i64: 2, 32, 32>}, {pipeline_mode = #tpu.pipeline_mode<synchronous>, transform_indices = @transform_6, window_bounds = array<i64: 2, 1, 32>}, {pipeline_mode = #tpu.pipeline_mode<synchronous>, transform_indices = @transform_7, window_bounds = array<i64: 2, 1, 32>}, {pipeline_mode = #tpu.pipeline_mode<synchronous>, transform_indices = @transform_8, window_bounds = array<i64: 2, 1, 32>}, {pipeline_mode = #tpu.pipeline_mode<synchronous>, transform_indices = @transform_9, window_bounds = array<i64: 2, 32, 128>}, {pipeline_mode = #tpu.pipeline_mode<synchronous>, transform_indices = @transform_10, window_bounds = array<i64: 2, 1, 128>}, {pipeline_mode = #tpu.pipeline_mode<synchronous>, transform_indices = @transform_11, window_bounds = array<i64: 2, 128, 32>}, {pipeline_mode = #tpu.pipeline_mode<synchronous>, transform_indices = @transform_12, window_bounds = array<i64: 2, 1, 32>}, {pipeline_mode = #tpu.pipeline_mode<synchronous>, transform_indices = @transform_13, window_bounds = array<i64: 2, 1, 32>}, {pipeline_mode = #tpu.pipeline_mode<synchronous>, transform_indices = @transform_14, window_bounds = array<i64: 2, 1, 32>}, {pipeline_mode = #tpu.pipeline_mode<synchronous>, transform_indices = @transform_15, window_bounds = array<i64: 32, 1>}, {pipeline_mode = #tpu.pipeline_mode<synchronous>, transform_indices = @transform_16, window_bounds = array<i64: 1, 1>}, {transform_indices = @transform_17, window_bounds = array<i64: 8, 1>}]} {
    %c0 = arith.constant 0 : index
    %c0_0 = arith.constant 0 : index
    %0 = vector.load %arg1[%c0, %c0_0] : memref<8x16xf32, #tpu.memory_space<vmem>>, vector<8x16xf32>
    %c0_1 = arith.constant 0 : index
    %c0_2 = arith.constant 0 : index
    %1 = vector.load %arg2[%c0_1, %c0_2] : memref<16x32xbf16, #tpu.memory_space<vmem>>, vector<16x32xbf16>
    %2 = arith.truncf %0 : vector<8x16xf32> to vector<8x16xbf16>
    %cst = arith.constant dense<0.000000e+00> : vector<8x32xf32>
    %3 = tpu.matmul %2, %1, %cst {dimension_numbers = #tpu.dot_dimension_numbers<[1], [0], [0], [1], [0, 0, 1, 1], [], []>} : vector<8x16xbf16>, vector<16x32xbf16>, vector<8x32xf32> -> vector<8x32xf32>
    %c0_3 = arith.constant 0 : index
    %c0_4 = arith.constant 0 : index
    %4 = vector.load %arg3[%c0_3, %c0_4] : memref<1x32xf32, #tpu.memory_space<vmem>>, vector<1x32xf32>
    %5 = vector.broadcast %4 : vector<1x32xf32> to vector<8x32xf32>
    %6 = arith.addf %3, %5 : vector<8x32xf32>
    %cst_5 = arith.constant 0.000000e+00 : f32
    %7 = vector.broadcast %cst_5 : f32 to vector<8x32xf32>
    %8 = arith.maximumf %6, %7 : vector<8x32xf32>
    %c0_6 = arith.constant 0 : index
    %c0_7 = arith.constant 0 : index
    %c0_8 = arith.constant 0 : index
    %9 = vector.load %arg4[%c0_6, %c0_7, %c0_8] : memref<2x32x96xbf16, #tpu.memory_space<vmem>>, vector<1x32x96xbf16>
    %10 = vector.shape_cast %9 : vector<1x32x96xbf16> to vector<32x96xbf16>
    %11 = arith.truncf %8 : vector<8x32xf32> to vector<8x32xbf16>
    %cst_9 = arith.constant dense<0.000000e+00> : vector<8x96xf32>
    %12 = tpu.matmul %11, %10, %cst_9 {dimension_numbers = #tpu.dot_dimension_numbers<[1], [0], [0], [1], [0, 0, 1, 1], [], []>} : vector<8x32xbf16>, vector<32x96xbf16>, vector<8x96xf32> -> vector<8x96xf32>
    %c0_10 = arith.constant 0 : index
    %c0_11 = arith.constant 0 : index
    %c0_12 = arith.constant 0 : index
    %13 = vector.load %arg5[%c0_10, %c0_11, %c0_12] : memref<2x1x96xf32, #tpu.memory_space<vmem>>, vector<1x1x96xf32>
    %14 = vector.shape_cast %13 : vector<1x1x96xf32> to vector<1x96xf32>
    %15 = vector.broadcast %14 : vector<1x96xf32> to vector<8x96xf32>
    %16 = arith.addf %12, %15 : vector<8x96xf32>
    %17 = arith.truncf %16 : vector<8x96xf32> to vector<8x96xbf16>
    %18 = vector.extract_strided_slice %17 {offsets = [0, 0], sizes = [8, 8], strides = [1, 1]} : vector<8x96xbf16> to vector<8x8xbf16>
    %19 = vector.extract_strided_slice %17 {offsets = [0, 32], sizes = [8, 8], strides = [1, 1]} : vector<8x96xbf16> to vector<8x8xbf16>
    %20 = vector.extract_strided_slice %17 {offsets = [0, 64], sizes = [8, 8], strides = [1, 1]} : vector<8x96xbf16> to vector<8x8xbf16>
    %cst_13 = arith.constant dense<0.000000e+00> : vector<8x8xf32>
    %21 = tpu.matmul %18, %19, %cst_13 {dimension_numbers = #tpu.dot_dimension_numbers<[1], [1], [0], [0], [0, 0, 1, 0], [], []>} : vector<8x8xbf16>, vector<8x8xbf16>, vector<8x8xf32> -> vector<8x8xf32>
    %cst_14 = arith.constant dense<0xFF800000> : vector<8xf32>
    %22 = vector.multi_reduction <maximumf>, %21, %cst_14 [1] : vector<8x8xf32> to vector<8xf32>
    %23 = vector.shape_cast %22 : vector<8xf32> to vector<8x1xf32>
    %24 = vector.broadcast %23 : vector<8x1xf32> to vector<8x8xf32>
    %25 = arith.subf %21, %24 : vector<8x8xf32>
    %26 = math.exp %25 : vector<8x8xf32>
    %cst_15 = arith.constant dense<0.000000e+00> : vector<8xf32>
    %27 = vector.multi_reduction <add>, %26, %cst_15 [1] : vector<8x8xf32> to vector<8xf32>
    %28 = vector.shape_cast %27 : vector<8xf32> to vector<8x1xf32>
    %29 = tpu.reciprocal %28 {approx = true} : vector<8x1xf32> -> vector<8x1xf32>
    %30 = vector.broadcast %29 : vector<8x1xf32> to vector<8x8xf32>
    %31 = arith.mulf %26, %30 : vector<8x8xf32>
    %32 = arith.truncf %31 : vector<8x8xf32> to vector<8x8xbf16>
    %cst_16 = arith.constant dense<0.000000e+00> : vector<8x8xf32>
    %33 = tpu.matmul %32, %20, %cst_16 {dimension_numbers = #tpu.dot_dimension_numbers<[1], [0], [0], [1], [0, 0, 1, 1], [], []>} : vector<8x8xbf16>, vector<8x8xbf16>, vector<8x8xf32> -> vector<8x8xf32>
    %34 = vector.extract_strided_slice %17 {offsets = [0, 8], sizes = [8, 8], strides = [1, 1]} : vector<8x96xbf16> to vector<8x8xbf16>
    %35 = vector.extract_strided_slice %17 {offsets = [0, 40], sizes = [8, 8], strides = [1, 1]} : vector<8x96xbf16> to vector<8x8xbf16>
    %36 = vector.extract_strided_slice %17 {offsets = [0, 72], sizes = [8, 8], strides = [1, 1]} : vector<8x96xbf16> to vector<8x8xbf16>
    %cst_17 = arith.constant dense<0.000000e+00> : vector<8x8xf32>
    %37 = tpu.matmul %34, %35, %cst_17 {dimension_numbers = #tpu.dot_dimension_numbers<[1], [1], [0], [0], [0, 0, 1, 0], [], []>} : vector<8x8xbf16>, vector<8x8xbf16>, vector<8x8xf32> -> vector<8x8xf32>
    %cst_18 = arith.constant dense<0xFF800000> : vector<8xf32>
    %38 = vector.multi_reduction <maximumf>, %37, %cst_18 [1] : vector<8x8xf32> to vector<8xf32>
    %39 = vector.shape_cast %38 : vector<8xf32> to vector<8x1xf32>
    %40 = vector.broadcast %39 : vector<8x1xf32> to vector<8x8xf32>
    %41 = arith.subf %37, %40 : vector<8x8xf32>
    %42 = math.exp %41 : vector<8x8xf32>
    %cst_19 = arith.constant dense<0.000000e+00> : vector<8xf32>
    %43 = vector.multi_reduction <add>, %42, %cst_19 [1] : vector<8x8xf32> to vector<8xf32>
    %44 = vector.shape_cast %43 : vector<8xf32> to vector<8x1xf32>
    %45 = tpu.reciprocal %44 {approx = true} : vector<8x1xf32> -> vector<8x1xf32>
    %46 = vector.broadcast %45 : vector<8x1xf32> to vector<8x8xf32>
    %47 = arith.mulf %42, %46 : vector<8x8xf32>
    %48 = arith.truncf %47 : vector<8x8xf32> to vector<8x8xbf16>
    %cst_20 = arith.constant dense<0.000000e+00> : vector<8x8xf32>
    %49 = tpu.matmul %48, %36, %cst_20 {dimension_numbers = #tpu.dot_dimension_numbers<[1], [0], [0], [1], [0, 0, 1, 1], [], []>} : vector<8x8xbf16>, vector<8x8xbf16>, vector<8x8xf32> -> vector<8x8xf32>
    %50 = vector.extract_strided_slice %17 {offsets = [0, 16], sizes = [8, 8], strides = [1, 1]} : vector<8x96xbf16> to vector<8x8xbf16>
    %51 = vector.extract_strided_slice %17 {offsets = [0, 48], sizes = [8, 8], strides = [1, 1]} : vector<8x96xbf16> to vector<8x8xbf16>
    %52 = vector.extract_strided_slice %17 {offsets = [0, 80], sizes = [8, 8], strides = [1, 1]} : vector<8x96xbf16> to vector<8x8xbf16>
    %cst_21 = arith.constant dense<0.000000e+00> : vector<8x8xf32>
    %53 = tpu.matmul %50, %51, %cst_21 {dimension_numbers = #tpu.dot_dimension_numbers<[1], [1], [0], [0], [0, 0, 1, 0], [], []>} : vector<8x8xbf16>, vector<8x8xbf16>, vector<8x8xf32> -> vector<8x8xf32>
    %cst_22 = arith.constant dense<0xFF800000> : vector<8xf32>
    %54 = vector.multi_reduction <maximumf>, %53, %cst_22 [1] : vector<8x8xf32> to vector<8xf32>
    %55 = vector.shape_cast %54 : vector<8xf32> to vector<8x1xf32>
    %56 = vector.broadcast %55 : vector<8x1xf32> to vector<8x8xf32>
    %57 = arith.subf %53, %56 : vector<8x8xf32>
    %58 = math.exp %57 : vector<8x8xf32>
    %cst_23 = arith.constant dense<0.000000e+00> : vector<8xf32>
    %59 = vector.multi_reduction <add>, %58, %cst_23 [1] : vector<8x8xf32> to vector<8xf32>
    %60 = vector.shape_cast %59 : vector<8xf32> to vector<8x1xf32>
    %61 = tpu.reciprocal %60 {approx = true} : vector<8x1xf32> -> vector<8x1xf32>
    %62 = vector.broadcast %61 : vector<8x1xf32> to vector<8x8xf32>
    %63 = arith.mulf %58, %62 : vector<8x8xf32>
    %64 = arith.truncf %63 : vector<8x8xf32> to vector<8x8xbf16>
    %cst_24 = arith.constant dense<0.000000e+00> : vector<8x8xf32>
    %65 = tpu.matmul %64, %52, %cst_24 {dimension_numbers = #tpu.dot_dimension_numbers<[1], [0], [0], [1], [0, 0, 1, 1], [], []>} : vector<8x8xbf16>, vector<8x8xbf16>, vector<8x8xf32> -> vector<8x8xf32>
    %66 = vector.extract_strided_slice %17 {offsets = [0, 24], sizes = [8, 8], strides = [1, 1]} : vector<8x96xbf16> to vector<8x8xbf16>
    %67 = vector.extract_strided_slice %17 {offsets = [0, 56], sizes = [8, 8], strides = [1, 1]} : vector<8x96xbf16> to vector<8x8xbf16>
    %68 = vector.extract_strided_slice %17 {offsets = [0, 88], sizes = [8, 8], strides = [1, 1]} : vector<8x96xbf16> to vector<8x8xbf16>
    %cst_25 = arith.constant dense<0.000000e+00> : vector<8x8xf32>
    %69 = tpu.matmul %66, %67, %cst_25 {dimension_numbers = #tpu.dot_dimension_numbers<[1], [1], [0], [0], [0, 0, 1, 0], [], []>} : vector<8x8xbf16>, vector<8x8xbf16>, vector<8x8xf32> -> vector<8x8xf32>
    %cst_26 = arith.constant dense<0xFF800000> : vector<8xf32>
    %70 = vector.multi_reduction <maximumf>, %69, %cst_26 [1] : vector<8x8xf32> to vector<8xf32>
    %71 = vector.shape_cast %70 : vector<8xf32> to vector<8x1xf32>
    %72 = vector.broadcast %71 : vector<8x1xf32> to vector<8x8xf32>
    %73 = arith.subf %69, %72 : vector<8x8xf32>
    %74 = math.exp %73 : vector<8x8xf32>
    %cst_27 = arith.constant dense<0.000000e+00> : vector<8xf32>
    %75 = vector.multi_reduction <add>, %74, %cst_27 [1] : vector<8x8xf32> to vector<8xf32>
    %76 = vector.shape_cast %75 : vector<8xf32> to vector<8x1xf32>
    %77 = tpu.reciprocal %76 {approx = true} : vector<8x1xf32> -> vector<8x1xf32>
    %78 = vector.broadcast %77 : vector<8x1xf32> to vector<8x8xf32>
    %79 = arith.mulf %74, %78 : vector<8x8xf32>
    %80 = arith.truncf %79 : vector<8x8xf32> to vector<8x8xbf16>
    %cst_28 = arith.constant dense<0.000000e+00> : vector<8x8xf32>
    %81 = tpu.matmul %80, %68, %cst_28 {dimension_numbers = #tpu.dot_dimension_numbers<[1], [0], [0], [1], [0, 0, 1, 1], [], []>} : vector<8x8xbf16>, vector<8x8xbf16>, vector<8x8xf32> -> vector<8x8xf32>
    %82 = tpu.concatenate %33, %49, %65, %81 in 1 : vector<8x8xf32>, vector<8x8xf32>, vector<8x8xf32>, vector<8x8xf32> -> vector<8x32xf32>
    %c0_29 = arith.constant 0 : index
    %c0_30 = arith.constant 0 : index
    %c0_31 = arith.constant 0 : index
    %83 = vector.load %arg6[%c0_29, %c0_30, %c0_31] : memref<2x32x32xbf16, #tpu.memory_space<vmem>>, vector<1x32x32xbf16>
    %84 = vector.shape_cast %83 : vector<1x32x32xbf16> to vector<32x32xbf16>
    %85 = arith.truncf %82 : vector<8x32xf32> to vector<8x32xbf16>
    %cst_32 = arith.constant dense<0.000000e+00> : vector<8x32xf32>
    %86 = tpu.matmul %85, %84, %cst_32 {dimension_numbers = #tpu.dot_dimension_numbers<[1], [0], [0], [1], [0, 0, 1, 1], [], []>} : vector<8x32xbf16>, vector<32x32xbf16>, vector<8x32xf32> -> vector<8x32xf32>
    %c0_33 = arith.constant 0 : index
    %c0_34 = arith.constant 0 : index
    %c0_35 = arith.constant 0 : index
    %87 = vector.load %arg7[%c0_33, %c0_34, %c0_35] : memref<2x1x32xf32, #tpu.memory_space<vmem>>, vector<1x1x32xf32>
    %88 = vector.shape_cast %87 : vector<1x1x32xf32> to vector<1x32xf32>
    %89 = vector.broadcast %88 : vector<1x32xf32> to vector<8x32xf32>
    %90 = arith.addf %86, %89 : vector<8x32xf32>
    %91 = arith.addf %8, %90 : vector<8x32xf32>
    %c0_36 = arith.constant 0 : index
    %c0_37 = arith.constant 0 : index
    %c0_38 = arith.constant 0 : index
    %92 = vector.load %arg8[%c0_36, %c0_37, %c0_38] : memref<2x1x32xf32, #tpu.memory_space<vmem>>, vector<1x1x32xf32>
    %93 = vector.shape_cast %92 : vector<1x1x32xf32> to vector<1x32xf32>
    %c0_39 = arith.constant 0 : index
    %c0_40 = arith.constant 0 : index
    %c0_41 = arith.constant 0 : index
    %94 = vector.load %arg9[%c0_39, %c0_40, %c0_41] : memref<2x1x32xf32, #tpu.memory_space<vmem>>, vector<1x1x32xf32>
    %95 = vector.shape_cast %94 : vector<1x1x32xf32> to vector<1x32xf32>
    %cst_42 = arith.constant dense<0.000000e+00> : vector<8xf32>
    %96 = vector.multi_reduction <add>, %91, %cst_42 [1] : vector<8x32xf32> to vector<8xf32>
    %97 = vector.shape_cast %96 : vector<8xf32> to vector<8x1xf32>
    %cst_43 = arith.constant 3.200000e+01 : f32
    %98 = vector.broadcast %cst_43 : f32 to vector<8x1xf32>
    %99 = arith.divf %97, %98 : vector<8x1xf32>
    %100 = vector.broadcast %99 : vector<8x1xf32> to vector<8x32xf32>
    %101 = arith.subf %91, %100 : vector<8x32xf32>
    %102 = arith.mulf %101, %101 : vector<8x32xf32>
    %cst_44 = arith.constant dense<0.000000e+00> : vector<8xf32>
    %103 = vector.multi_reduction <add>, %102, %cst_44 [1] : vector<8x32xf32> to vector<8xf32>
    %104 = vector.shape_cast %103 : vector<8xf32> to vector<8x1xf32>
    %cst_45 = arith.constant 3.200000e+01 : f32
    %105 = vector.broadcast %cst_45 : f32 to vector<8x1xf32>
    %106 = arith.divf %104, %105 : vector<8x1xf32>
    %cst_46 = arith.constant 9.99999974E-6 : f32
    %107 = vector.broadcast %cst_46 : f32 to vector<8x1xf32>
    %108 = arith.addf %106, %107 : vector<8x1xf32>
    %109 = math.rsqrt %108 : vector<8x1xf32>
    %110 = vector.broadcast %109 : vector<8x1xf32> to vector<8x32xf32>
    %111 = arith.mulf %101, %110 : vector<8x32xf32>
    %112 = vector.broadcast %93 : vector<1x32xf32> to vector<8x32xf32>
    %113 = arith.mulf %111, %112 : vector<8x32xf32>
    %114 = vector.broadcast %95 : vector<1x32xf32> to vector<8x32xf32>
    %115 = arith.addf %113, %114 : vector<8x32xf32>
    %c0_47 = arith.constant 0 : index
    %c0_48 = arith.constant 0 : index
    %c0_49 = arith.constant 0 : index
    %116 = vector.load %arg10[%c0_47, %c0_48, %c0_49] : memref<2x32x128xbf16, #tpu.memory_space<vmem>>, vector<1x32x128xbf16>
    %117 = vector.shape_cast %116 : vector<1x32x128xbf16> to vector<32x128xbf16>
    %118 = arith.truncf %115 : vector<8x32xf32> to vector<8x32xbf16>
    %cst_50 = arith.constant dense<0.000000e+00> : vector<8x128xf32>
    %119 = tpu.matmul %118, %117, %cst_50 {dimension_numbers = #tpu.dot_dimension_numbers<[1], [0], [0], [1], [0, 0, 1, 1], [], []>} : vector<8x32xbf16>, vector<32x128xbf16>, vector<8x128xf32> -> vector<8x128xf32>
    %c0_51 = arith.constant 0 : index
    %c0_52 = arith.constant 0 : index
    %c0_53 = arith.constant 0 : index
    %120 = vector.load %arg11[%c0_51, %c0_52, %c0_53] : memref<2x1x128xf32, #tpu.memory_space<vmem>>, vector<1x1x128xf32>
    %121 = vector.shape_cast %120 : vector<1x1x128xf32> to vector<1x128xf32>
    %122 = vector.broadcast %121 : vector<1x128xf32> to vector<8x128xf32>
    %123 = arith.addf %119, %122 : vector<8x128xf32>
    %cst_54 = arith.constant 0.000000e+00 : f32
    %124 = vector.broadcast %cst_54 : f32 to vector<8x128xf32>
    %125 = arith.maximumf %123, %124 : vector<8x128xf32>
    %c0_55 = arith.constant 0 : index
    %c0_56 = arith.constant 0 : index
    %c0_57 = arith.constant 0 : index
    %126 = vector.load %arg12[%c0_55, %c0_56, %c0_57] : memref<2x128x32xbf16, #tpu.memory_space<vmem>>, vector<1x128x32xbf16>
    %127 = vector.shape_cast %126 : vector<1x128x32xbf16> to vector<128x32xbf16>
    %128 = arith.truncf %125 : vector<8x128xf32> to vector<8x128xbf16>
    %cst_58 = arith.constant dense<0.000000e+00> : vector<8x32xf32>
    %129 = tpu.matmul %128, %127, %cst_58 {dimension_numbers = #tpu.dot_dimension_numbers<[1], [0], [0], [1], [0, 0, 1, 1], [], []>} : vector<8x128xbf16>, vector<128x32xbf16>, vector<8x32xf32> -> vector<8x32xf32>
    %c0_59 = arith.constant 0 : index
    %c0_60 = arith.constant 0 : index
    %c0_61 = arith.constant 0 : index
    %130 = vector.load %arg13[%c0_59, %c0_60, %c0_61] : memref<2x1x32xf32, #tpu.memory_space<vmem>>, vector<1x1x32xf32>
    %131 = vector.shape_cast %130 : vector<1x1x32xf32> to vector<1x32xf32>
    %132 = vector.broadcast %131 : vector<1x32xf32> to vector<8x32xf32>
    %133 = arith.addf %129, %132 : vector<8x32xf32>
    %134 = arith.addf %115, %133 : vector<8x32xf32>
    %c0_62 = arith.constant 0 : index
    %c0_63 = arith.constant 0 : index
    %c0_64 = arith.constant 0 : index
    %135 = vector.load %arg14[%c0_62, %c0_63, %c0_64] : memref<2x1x32xf32, #tpu.memory_space<vmem>>, vector<1x1x32xf32>
    %136 = vector.shape_cast %135 : vector<1x1x32xf32> to vector<1x32xf32>
    %c0_65 = arith.constant 0 : index
    %c0_66 = arith.constant 0 : index
    %c0_67 = arith.constant 0 : index
    %137 = vector.load %arg15[%c0_65, %c0_66, %c0_67] : memref<2x1x32xf32, #tpu.memory_space<vmem>>, vector<1x1x32xf32>
    %138 = vector.shape_cast %137 : vector<1x1x32xf32> to vector<1x32xf32>
    %cst_68 = arith.constant dense<0.000000e+00> : vector<8xf32>
    %139 = vector.multi_reduction <add>, %134, %cst_68 [1] : vector<8x32xf32> to vector<8xf32>
    %140 = vector.shape_cast %139 : vector<8xf32> to vector<8x1xf32>
    %cst_69 = arith.constant 3.200000e+01 : f32
    %141 = vector.broadcast %cst_69 : f32 to vector<8x1xf32>
    %142 = arith.divf %140, %141 : vector<8x1xf32>
    %143 = vector.broadcast %142 : vector<8x1xf32> to vector<8x32xf32>
    %144 = arith.subf %134, %143 : vector<8x32xf32>
    %145 = arith.mulf %144, %144 : vector<8x32xf32>
    %cst_70 = arith.constant dense<0.000000e+00> : vector<8xf32>
    %146 = vector.multi_reduction <add>, %145, %cst_70 [1] : vector<8x32xf32> to vector<8xf32>
    %147 = vector.shape_cast %146 : vector<8xf32> to vector<8x1xf32>
    %cst_71 = arith.constant 3.200000e+01 : f32
    %148 = vector.broadcast %cst_71 : f32 to vector<8x1xf32>
    %149 = arith.divf %147, %148 : vector<8x1xf32>
    %cst_72 = arith.constant 9.99999974E-6 : f32
    %150 = vector.broadcast %cst_72 : f32 to vector<8x1xf32>
    %151 = arith.addf %149, %150 : vector<8x1xf32>
    %152 = math.rsqrt %151 : vector<8x1xf32>
    %153 = vector.broadcast %152 : vector<8x1xf32> to vector<8x32xf32>
    %154 = arith.mulf %144, %153 : vector<8x32xf32>
    %155 = vector.broadcast %136 : vector<1x32xf32> to vector<8x32xf32>
    %156 = arith.mulf %154, %155 : vector<8x32xf32>
    %157 = vector.broadcast %138 : vector<1x32xf32> to vector<8x32xf32>
    %158 = arith.addf %156, %157 : vector<8x32xf32>
    %c1 = arith.constant 1 : index
    %c0_73 = arith.constant 0 : index
    %c0_74 = arith.constant 0 : index
    %159 = vector.load %arg4[%c1, %c0_73, %c0_74] : memref<2x32x96xbf16, #tpu.memory_space<vmem>>, vector<1x32x96xbf16>
    %160 = vector.shape_cast %159 : vector<1x32x96xbf16> to vector<32x96xbf16>
    %161 = arith.truncf %158 : vector<8x32xf32> to vector<8x32xbf16>
    %cst_75 = arith.constant dense<0.000000e+00> : vector<8x96xf32>
    %162 = tpu.matmul %161, %160, %cst_75 {dimension_numbers = #tpu.dot_dimension_numbers<[1], [0], [0], [1], [0, 0, 1, 1], [], []>} : vector<8x32xbf16>, vector<32x96xbf16>, vector<8x96xf32> -> vector<8x96xf32>
    %c1_76 = arith.constant 1 : index
    %c0_77 = arith.constant 0 : index
    %c0_78 = arith.constant 0 : index
    %163 = vector.load %arg5[%c1_76, %c0_77, %c0_78] : memref<2x1x96xf32, #tpu.memory_space<vmem>>, vector<1x1x96xf32>
    %164 = vector.shape_cast %163 : vector<1x1x96xf32> to vector<1x96xf32>
    %165 = vector.broadcast %164 : vector<1x96xf32> to vector<8x96xf32>
    %166 = arith.addf %162, %165 : vector<8x96xf32>
    %167 = arith.truncf %166 : vector<8x96xf32> to vector<8x96xbf16>
    %168 = vector.extract_strided_slice %167 {offsets = [0, 0], sizes = [8, 8], strides = [1, 1]} : vector<8x96xbf16> to vector<8x8xbf16>
    %169 = vector.extract_strided_slice %167 {offsets = [0, 32], sizes = [8, 8], strides = [1, 1]} : vector<8x96xbf16> to vector<8x8xbf16>
    %170 = vector.extract_strided_slice %167 {offsets = [0, 64], sizes = [8, 8], strides = [1, 1]} : vector<8x96xbf16> to vector<8x8xbf16>
    %cst_79 = arith.constant dense<0.000000e+00> : vector<8x8xf32>
    %171 = tpu.matmul %168, %169, %cst_79 {dimension_numbers = #tpu.dot_dimension_numbers<[1], [1], [0], [0], [0, 0, 1, 0], [], []>} : vector<8x8xbf16>, vector<8x8xbf16>, vector<8x8xf32> -> vector<8x8xf32>
    %cst_80 = arith.constant dense<0xFF800000> : vector<8xf32>
    %172 = vector.multi_reduction <maximumf>, %171, %cst_80 [1] : vector<8x8xf32> to vector<8xf32>
    %173 = vector.shape_cast %172 : vector<8xf32> to vector<8x1xf32>
    %174 = vector.broadcast %173 : vector<8x1xf32> to vector<8x8xf32>
    %175 = arith.subf %171, %174 : vector<8x8xf32>
    %176 = math.exp %175 : vector<8x8xf32>
    %cst_81 = arith.constant dense<0.000000e+00> : vector<8xf32>
    %177 = vector.multi_reduction <add>, %176, %cst_81 [1] : vector<8x8xf32> to vector<8xf32>
    %178 = vector.shape_cast %177 : vector<8xf32> to vector<8x1xf32>
    %179 = tpu.reciprocal %178 {approx = true} : vector<8x1xf32> -> vector<8x1xf32>
    %180 = vector.broadcast %179 : vector<8x1xf32> to vector<8x8xf32>
    %181 = arith.mulf %176, %180 : vector<8x8xf32>
    %182 = arith.truncf %181 : vector<8x8xf32> to vector<8x8xbf16>
    %cst_82 = arith.constant dense<0.000000e+00> : vector<8x8xf32>
    %183 = tpu.matmul %182, %170, %cst_82 {dimension_numbers = #tpu.dot_dimension_numbers<[1], [0], [0], [1], [0, 0, 1, 1], [], []>} : vector<8x8xbf16>, vector<8x8xbf16>, vector<8x8xf32> -> vector<8x8xf32>
    %184 = vector.extract_strided_slice %167 {offsets = [0, 8], sizes = [8, 8], strides = [1, 1]} : vector<8x96xbf16> to vector<8x8xbf16>
    %185 = vector.extract_strided_slice %167 {offsets = [0, 40], sizes = [8, 8], strides = [1, 1]} : vector<8x96xbf16> to vector<8x8xbf16>
    %186 = vector.extract_strided_slice %167 {offsets = [0, 72], sizes = [8, 8], strides = [1, 1]} : vector<8x96xbf16> to vector<8x8xbf16>
    %cst_83 = arith.constant dense<0.000000e+00> : vector<8x8xf32>
    %187 = tpu.matmul %184, %185, %cst_83 {dimension_numbers = #tpu.dot_dimension_numbers<[1], [1], [0], [0], [0, 0, 1, 0], [], []>} : vector<8x8xbf16>, vector<8x8xbf16>, vector<8x8xf32> -> vector<8x8xf32>
    %cst_84 = arith.constant dense<0xFF800000> : vector<8xf32>
    %188 = vector.multi_reduction <maximumf>, %187, %cst_84 [1] : vector<8x8xf32> to vector<8xf32>
    %189 = vector.shape_cast %188 : vector<8xf32> to vector<8x1xf32>
    %190 = vector.broadcast %189 : vector<8x1xf32> to vector<8x8xf32>
    %191 = arith.subf %187, %190 : vector<8x8xf32>
    %192 = math.exp %191 : vector<8x8xf32>
    %cst_85 = arith.constant dense<0.000000e+00> : vector<8xf32>
    %193 = vector.multi_reduction <add>, %192, %cst_85 [1] : vector<8x8xf32> to vector<8xf32>
    %194 = vector.shape_cast %193 : vector<8xf32> to vector<8x1xf32>
    %195 = tpu.reciprocal %194 {approx = true} : vector<8x1xf32> -> vector<8x1xf32>
    %196 = vector.broadcast %195 : vector<8x1xf32> to vector<8x8xf32>
    %197 = arith.mulf %192, %196 : vector<8x8xf32>
    %198 = arith.truncf %197 : vector<8x8xf32> to vector<8x8xbf16>
    %cst_86 = arith.constant dense<0.000000e+00> : vector<8x8xf32>
    %199 = tpu.matmul %198, %186, %cst_86 {dimension_numbers = #tpu.dot_dimension_numbers<[1], [0], [0], [1], [0, 0, 1, 1], [], []>} : vector<8x8xbf16>, vector<8x8xbf16>, vector<8x8xf32> -> vector<8x8xf32>
    %200 = vector.extract_strided_slice %167 {offsets = [0, 16], sizes = [8, 8], strides = [1, 1]} : vector<8x96xbf16> to vector<8x8xbf16>
    %201 = vector.extract_strided_slice %167 {offsets = [0, 48], sizes = [8, 8], strides = [1, 1]} : vector<8x96xbf16> to vector<8x8xbf16>
    %202 = vector.extract_strided_slice %167 {offsets = [0, 80], sizes = [8, 8], strides = [1, 1]} : vector<8x96xbf16> to vector<8x8xbf16>
    %cst_87 = arith.constant dense<0.000000e+00> : vector<8x8xf32>
    %203 = tpu.matmul %200, %201, %cst_87 {dimension_numbers = #tpu.dot_dimension_numbers<[1], [1], [0], [0], [0, 0, 1, 0], [], []>} : vector<8x8xbf16>, vector<8x8xbf16>, vector<8x8xf32> -> vector<8x8xf32>
    %cst_88 = arith.constant dense<0xFF800000> : vector<8xf32>
    %204 = vector.multi_reduction <maximumf>, %203, %cst_88 [1] : vector<8x8xf32> to vector<8xf32>
    %205 = vector.shape_cast %204 : vector<8xf32> to vector<8x1xf32>
    %206 = vector.broadcast %205 : vector<8x1xf32> to vector<8x8xf32>
    %207 = arith.subf %203, %206 : vector<8x8xf32>
    %208 = math.exp %207 : vector<8x8xf32>
    %cst_89 = arith.constant dense<0.000000e+00> : vector<8xf32>
    %209 = vector.multi_reduction <add>, %208, %cst_89 [1] : vector<8x8xf32> to vector<8xf32>
    %210 = vector.shape_cast %209 : vector<8xf32> to vector<8x1xf32>
    %211 = tpu.reciprocal %210 {approx = true} : vector<8x1xf32> -> vector<8x1xf32>
    %212 = vector.broadcast %211 : vector<8x1xf32> to vector<8x8xf32>
    %213 = arith.mulf %208, %212 : vector<8x8xf32>
    %214 = arith.truncf %213 : vector<8x8xf32> to vector<8x8xbf16>
    %cst_90 = arith.constant dense<0.000000e+00> : vector<8x8xf32>
    %215 = tpu.matmul %214, %202, %cst_90 {dimension_numbers = #tpu.dot_dimension_numbers<[1], [0], [0], [1], [0, 0, 1, 1], [], []>} : vector<8x8xbf16>, vector<8x8xbf16>, vector<8x8xf32> -> vector<8x8xf32>
    %216 = vector.extract_strided_slice %167 {offsets = [0, 24], sizes = [8, 8], strides = [1, 1]} : vector<8x96xbf16> to vector<8x8xbf16>
    %217 = vector.extract_strided_slice %167 {offsets = [0, 56], sizes = [8, 8], strides = [1, 1]} : vector<8x96xbf16> to vector<8x8xbf16>
    %218 = vector.extract_strided_slice %167 {offsets = [0, 88], sizes = [8, 8], strides = [1, 1]} : vector<8x96xbf16> to vector<8x8xbf16>
    %cst_91 = arith.constant dense<0.000000e+00> : vector<8x8xf32>
    %219 = tpu.matmul %216, %217, %cst_91 {dimension_numbers = #tpu.dot_dimension_numbers<[1], [1], [0], [0], [0, 0, 1, 0], [], []>} : vector<8x8xbf16>, vector<8x8xbf16>, vector<8x8xf32> -> vector<8x8xf32>
    %cst_92 = arith.constant dense<0xFF800000> : vector<8xf32>
    %220 = vector.multi_reduction <maximumf>, %219, %cst_92 [1] : vector<8x8xf32> to vector<8xf32>
    %221 = vector.shape_cast %220 : vector<8xf32> to vector<8x1xf32>
    %222 = vector.broadcast %221 : vector<8x1xf32> to vector<8x8xf32>
    %223 = arith.subf %219, %222 : vector<8x8xf32>
    %224 = math.exp %223 : vector<8x8xf32>
    %cst_93 = arith.constant dense<0.000000e+00> : vector<8xf32>
    %225 = vector.multi_reduction <add>, %224, %cst_93 [1] : vector<8x8xf32> to vector<8xf32>
    %226 = vector.shape_cast %225 : vector<8xf32> to vector<8x1xf32>
    %227 = tpu.reciprocal %226 {approx = true} : vector<8x1xf32> -> vector<8x1xf32>
    %228 = vector.broadcast %227 : vector<8x1xf32> to vector<8x8xf32>
    %229 = arith.mulf %224, %228 : vector<8x8xf32>
    %230 = arith.truncf %229 : vector<8x8xf32> to vector<8x8xbf16>
    %cst_94 = arith.constant dense<0.000000e+00> : vector<8x8xf32>
    %231 = tpu.matmul %230, %218, %cst_94 {dimension_numbers = #tpu.dot_dimension_numbers<[1], [0], [0], [1], [0, 0, 1, 1], [], []>} : vector<8x8xbf16>, vector<8x8xbf16>, vector<8x8xf32> -> vector<8x8xf32>
    %232 = tpu.concatenate %183, %199, %215, %231 in 1 : vector<8x8xf32>, vector<8x8xf32>, vector<8x8xf32>, vector<8x8xf32> -> vector<8x32xf32>
    %c1_95 = arith.constant 1 : index
    %c0_96 = arith.constant 0 : index
    %c0_97 = arith.constant 0 : index
    %233 = vector.load %arg6[%c1_95, %c0_96, %c0_97] : memref<2x32x32xbf16, #tpu.memory_space<vmem>>, vector<1x32x32xbf16>
    %234 = vector.shape_cast %233 : vector<1x32x32xbf16> to vector<32x32xbf16>
    %235 = arith.truncf %232 : vector<8x32xf32> to vector<8x32xbf16>
    %cst_98 = arith.constant dense<0.000000e+00> : vector<8x32xf32>
    %236 = tpu.matmul %235, %234, %cst_98 {dimension_numbers = #tpu.dot_dimension_numbers<[1], [0], [0], [1], [0, 0, 1, 1], [], []>} : vector<8x32xbf16>, vector<32x32xbf16>, vector<8x32xf32> -> vector<8x32xf32>
    %c1_99 = arith.constant 1 : index
    %c0_100 = arith.constant 0 : index
    %c0_101 = arith.constant 0 : index
    %237 = vector.load %arg7[%c1_99, %c0_100, %c0_101] : memref<2x1x32xf32, #tpu.memory_space<vmem>>, vector<1x1x32xf32>
    %238 = vector.shape_cast %237 : vector<1x1x32xf32> to vector<1x32xf32>
    %239 = vector.broadcast %238 : vector<1x32xf32> to vector<8x32xf32>
    %240 = arith.addf %236, %239 : vector<8x32xf32>
    %241 = arith.addf %158, %240 : vector<8x32xf32>
    %c1_102 = arith.constant 1 : index
    %c0_103 = arith.constant 0 : index
    %c0_104 = arith.constant 0 : index
    %242 = vector.load %arg8[%c1_102, %c0_103, %c0_104] : memref<2x1x32xf32, #tpu.memory_space<vmem>>, vector<1x1x32xf32>
    %243 = vector.shape_cast %242 : vector<1x1x32xf32> to vector<1x32xf32>
    %c1_105 = arith.constant 1 : index
    %c0_106 = arith.constant 0 : index
    %c0_107 = arith.constant 0 : index
    %244 = vector.load %arg9[%c1_105, %c0_106, %c0_107] : memref<2x1x32xf32, #tpu.memory_space<vmem>>, vector<1x1x32xf32>
    %245 = vector.shape_cast %244 : vector<1x1x32xf32> to vector<1x32xf32>
    %cst_108 = arith.constant dense<0.000000e+00> : vector<8xf32>
    %246 = vector.multi_reduction <add>, %241, %cst_108 [1] : vector<8x32xf32> to vector<8xf32>
    %247 = vector.shape_cast %246 : vector<8xf32> to vector<8x1xf32>
    %cst_109 = arith.constant 3.200000e+01 : f32
    %248 = vector.broadcast %cst_109 : f32 to vector<8x1xf32>
    %249 = arith.divf %247, %248 : vector<8x1xf32>
    %250 = vector.broadcast %249 : vector<8x1xf32> to vector<8x32xf32>
    %251 = arith.subf %241, %250 : vector<8x32xf32>
    %252 = arith.mulf %251, %251 : vector<8x32xf32>
    %cst_110 = arith.constant dense<0.000000e+00> : vector<8xf32>
    %253 = vector.multi_reduction <add>, %252, %cst_110 [1] : vector<8x32xf32> to vector<8xf32>
    %254 = vector.shape_cast %253 : vector<8xf32> to vector<8x1xf32>
    %cst_111 = arith.constant 3.200000e+01 : f32
    %255 = vector.broadcast %cst_111 : f32 to vector<8x1xf32>
    %256 = arith.divf %254, %255 : vector<8x1xf32>
    %cst_112 = arith.constant 9.99999974E-6 : f32
    %257 = vector.broadcast %cst_112 : f32 to vector<8x1xf32>
    %258 = arith.addf %256, %257 : vector<8x1xf32>
    %259 = math.rsqrt %258 : vector<8x1xf32>
    %260 = vector.broadcast %259 : vector<8x1xf32> to vector<8x32xf32>
    %261 = arith.mulf %251, %260 : vector<8x32xf32>
    %262 = vector.broadcast %243 : vector<1x32xf32> to vector<8x32xf32>
    %263 = arith.mulf %261, %262 : vector<8x32xf32>
    %264 = vector.broadcast %245 : vector<1x32xf32> to vector<8x32xf32>
    %265 = arith.addf %263, %264 : vector<8x32xf32>
    %c1_113 = arith.constant 1 : index
    %c0_114 = arith.constant 0 : index
    %c0_115 = arith.constant 0 : index
    %266 = vector.load %arg10[%c1_113, %c0_114, %c0_115] : memref<2x32x128xbf16, #tpu.memory_space<vmem>>, vector<1x32x128xbf16>
    %267 = vector.shape_cast %266 : vector<1x32x128xbf16> to vector<32x128xbf16>
    %268 = arith.truncf %265 : vector<8x32xf32> to vector<8x32xbf16>
    %cst_116 = arith.constant dense<0.000000e+00> : vector<8x128xf32>
    %269 = tpu.matmul %268, %267, %cst_116 {dimension_numbers = #tpu.dot_dimension_numbers<[1], [0], [0], [1], [0, 0, 1, 1], [], []>} : vector<8x32xbf16>, vector<32x128xbf16>, vector<8x128xf32> -> vector<8x128xf32>
    %c1_117 = arith.constant 1 : index
    %c0_118 = arith.constant 0 : index
    %c0_119 = arith.constant 0 : index
    %270 = vector.load %arg11[%c1_117, %c0_118, %c0_119] : memref<2x1x128xf32, #tpu.memory_space<vmem>>, vector<1x1x128xf32>
    %271 = vector.shape_cast %270 : vector<1x1x128xf32> to vector<1x128xf32>
    %272 = vector.broadcast %271 : vector<1x128xf32> to vector<8x128xf32>
    %273 = arith.addf %269, %272 : vector<8x128xf32>
    %cst_120 = arith.constant 0.000000e+00 : f32
    %274 = vector.broadcast %cst_120 : f32 to vector<8x128xf32>
    %275 = arith.maximumf %273, %274 : vector<8x128xf32>
    %c1_121 = arith.constant 1 : index
    %c0_122 = arith.constant 0 : index
    %c0_123 = arith.constant 0 : index
    %276 = vector.load %arg12[%c1_121, %c0_122, %c0_123] : memref<2x128x32xbf16, #tpu.memory_space<vmem>>, vector<1x128x32xbf16>
    %277 = vector.shape_cast %276 : vector<1x128x32xbf16> to vector<128x32xbf16>
    %278 = arith.truncf %275 : vector<8x128xf32> to vector<8x128xbf16>
    %cst_124 = arith.constant dense<0.000000e+00> : vector<8x32xf32>
    %279 = tpu.matmul %278, %277, %cst_124 {dimension_numbers = #tpu.dot_dimension_numbers<[1], [0], [0], [1], [0, 0, 1, 1], [], []>} : vector<8x128xbf16>, vector<128x32xbf16>, vector<8x32xf32> -> vector<8x32xf32>
    %c1_125 = arith.constant 1 : index
    %c0_126 = arith.constant 0 : index
    %c0_127 = arith.constant 0 : index
    %280 = vector.load %arg13[%c1_125, %c0_126, %c0_127] : memref<2x1x32xf32, #tpu.memory_space<vmem>>, vector<1x1x32xf32>
    %281 = vector.shape_cast %280 : vector<1x1x32xf32> to vector<1x32xf32>
    %282 = vector.broadcast %281 : vector<1x32xf32> to vector<8x32xf32>
    %283 = arith.addf %279, %282 : vector<8x32xf32>
    %284 = arith.addf %265, %283 : vector<8x32xf32>
    %c1_128 = arith.constant 1 : index
    %c0_129 = arith.constant 0 : index
    %c0_130 = arith.constant 0 : index
    %285 = vector.load %arg14[%c1_128, %c0_129, %c0_130] : memref<2x1x32xf32, #tpu.memory_space<vmem>>, vector<1x1x32xf32>
    %286 = vector.shape_cast %285 : vector<1x1x32xf32> to vector<1x32xf32>
    %c1_131 = arith.constant 1 : index
    %c0_132 = arith.constant 0 : index
    %c0_133 = arith.constant 0 : index
    %287 = vector.load %arg15[%c1_131, %c0_132, %c0_133] : memref<2x1x32xf32, #tpu.memory_space<vmem>>, vector<1x1x32xf32>
    %288 = vector.shape_cast %287 : vector<1x1x32xf32> to vector<1x32xf32>
    %cst_134 = arith.constant dense<0.000000e+00> : vector<8xf32>
    %289 = vector.multi_reduction <add>, %284, %cst_134 [1] : vector<8x32xf32> to vector<8xf32>
    %290 = vector.shape_cast %289 : vector<8xf32> to vector<8x1xf32>
    %cst_135 = arith.constant 3.200000e+01 : f32
    %291 = vector.broadcast %cst_135 : f32 to vector<8x1xf32>
    %292 = arith.divf %290, %291 : vector<8x1xf32>
    %293 = vector.broadcast %292 : vector<8x1xf32> to vector<8x32xf32>
    %294 = arith.subf %284, %293 : vector<8x32xf32>
    %295 = arith.mulf %294, %294 : vector<8x32xf32>
    %cst_136 = arith.constant dense<0.000000e+00> : vector<8xf32>
    %296 = vector.multi_reduction <add>, %295, %cst_136 [1] : vector<8x32xf32> to vector<8xf32>
    %297 = vector.shape_cast %296 : vector<8xf32> to vector<8x1xf32>
    %cst_137 = arith.constant 3.200000e+01 : f32
    %298 = vector.broadcast %cst_137 : f32 to vector<8x1xf32>
    %299 = arith.divf %297, %298 : vector<8x1xf32>
    %cst_138 = arith.constant 9.99999974E-6 : f32
    %300 = vector.broadcast %cst_138 : f32 to vector<8x1xf32>
    %301 = arith.addf %299, %300 : vector<8x1xf32>
    %302 = math.rsqrt %301 : vector<8x1xf32>
    %303 = vector.broadcast %302 : vector<8x1xf32> to vector<8x32xf32>
    %304 = arith.mulf %294, %303 : vector<8x32xf32>
    %305 = vector.broadcast %286 : vector<1x32xf32> to vector<8x32xf32>
    %306 = arith.mulf %304, %305 : vector<8x32xf32>
    %307 = vector.broadcast %288 : vector<1x32xf32> to vector<8x32xf32>
    %308 = arith.addf %306, %307 : vector<8x32xf32>
    %c0_139 = arith.constant 0 : index
    %c0_140 = arith.constant 0 : index
    %309 = vector.load %arg16[%c0_139, %c0_140] : memref<32x1xbf16, #tpu.memory_space<vmem>>, vector<32x1xbf16>
    %310 = arith.truncf %308 : vector<8x32xf32> to vector<8x32xbf16>
    %cst_141 = arith.constant dense<0.000000e+00> : vector<8x1xf32>
    %311 = tpu.matmul %310, %309, %cst_141 {dimension_numbers = #tpu.dot_dimension_numbers<[1], [0], [0], [1], [0, 0, 1, 1], [], []>} : vector<8x32xbf16>, vector<32x1xbf16>, vector<8x1xf32> -> vector<8x1xf32>
    %c0_142 = arith.constant 0 : index
    %c0_143 = arith.constant 0 : index
    %312 = vector.load %arg17[%c0_142, %c0_143] : memref<1x1xf32, #tpu.memory_space<vmem>>, vector<1x1xf32>
    %313 = vector.broadcast %312 : vector<1x1xf32> to vector<8x1xf32>
    %314 = arith.addf %311, %313 : vector<8x1xf32>
    %c0_144 = arith.constant 0 : index
    %c0_145 = arith.constant 0 : index
    %315 = vector.load %arg18[%c0_144, %c0_145] : memref<8x1xf32, #tpu.memory_space<vmem>>, vector<8x1xf32>
    tpu.vector_store %arg18[%c0_144, %c0_145], %314 {strides = array<i32>} : memref<8x1xf32, #tpu.memory_space<vmem>>, vector<8x1xf32>,
    return
  }
  func.func @transform_0(%arg0: i32) -> (i32, i32) {
    %c0_i32 = arith.constant 0 : i32
    %c0_i32_0 = arith.constant 0 : i32
    return %arg0, %c0_i32 : i32, i32
  }
  func.func @transform_1(%arg0: i32) -> (i32, i32) {
    %c0_i32 = arith.constant 0 : i32
    %c0_i32_0 = arith.constant 0 : i32
    %c0_i32_1 = arith.constant 0 : i32
    return %c0_i32, %c0_i32_0 : i32, i32
  }
  func.func @transform_2(%arg0: i32) -> (i32, i32) {
    %c0_i32 = arith.constant 0 : i32
    %c0_i32_0 = arith.constant 0 : i32
    %c0_i32_1 = arith.constant 0 : i32
    return %c0_i32, %c0_i32_0 : i32, i32
  }
  func.func @transform_3(%arg0: i32) -> (i32, i32, i32) {
    %c0_i32 = arith.constant 0 : i32
    %c0_i32_0 = arith.constant 0 : i32
    %c0_i32_1 = arith.constant 0 : i32
    %c0_i32_2 = arith.constant 0 : i32
    return %c0_i32, %c0_i32_0, %c0_i32_1 : i32, i32, i32
  }
  func.func @transform_4(%arg0: i32) -> (i32, i32, i32) {
    %c0_i32 = arith.constant 0 : i32
    %c0_i32_0 = arith.constant 0 : i32
    %c0_i32_1 = arith.constant 0 : i32
    %c0_i32_2 = arith.constant 0 : i32
    return %c0_i32, %c0_i32_0, %c0_i32_1 : i32, i32, i32
  }
  func.func @transform_5(%arg0: i32) -> (i32, i32, i32) {
    %c0_i32 = arith.constant 0 : i32
    %c0_i32_0 = arith.constant 0 : i32
    %c0_i32_1 = arith.constant 0 : i32
    %c0_i32_2 = arith.constant 0 : i32
    return %c0_i32, %c0_i32_0, %c0_i32_1 : i32, i32, i32
  }
  func.func @transform_6(%arg0: i32) -> (i32, i32, i32) {
    %c0_i32 = arith.constant 0 : i32
    %c0_i32_0 = arith.constant 0 : i32
    %c0_i32_1 = arith.constant 0 : i32
    %c0_i32_2 = arith.constant 0 : i32
    return %c0_i32, %c0_i32_0, %c0_i32_1 : i32, i32, i32
  }
  func.func @transform_7(%arg0: i32) -> (i32, i32, i32) {
    %c0_i32 = arith.constant 0 : i32
    %c0_i32_0 = arith.constant 0 : i32
    %c0_i32_1 = arith.constant 0 : i32
    %c0_i32_2 = arith.constant 0 : i32
    return %c0_i32, %c0_i32_0, %c0_i32_1 : i32, i32, i32
  }
  func.func @transform_8(%arg0: i32) -> (i32, i32, i32) {
    %c0_i32 = arith.constant 0 : i32
    %c0_i32_0 = arith.constant 0 : i32
    %c0_i32_1 = arith.constant 0 : i32
    %c0_i32_2 = arith.constant 0 : i32
    return %c0_i32, %c0_i32_0, %c0_i32_1 : i32, i32, i32
  }
  func.func @transform_9(%arg0: i32) -> (i32, i32, i32) {
    %c0_i32 = arith.constant 0 : i32
    %c0_i32_0 = arith.constant 0 : i32
    %c0_i32_1 = arith.constant 0 : i32
    %c0_i32_2 = arith.constant 0 : i32
    return %c0_i32, %c0_i32_0, %c0_i32_1 : i32, i32, i32
  }
  func.func @transform_10(%arg0: i32) -> (i32, i32, i32) {
    %c0_i32 = arith.constant 0 : i32
    %c0_i32_0 = arith.constant 0 : i32
    %c0_i32_1 = arith.constant 0 : i32
    %c0_i32_2 = arith.constant 0 : i32
    return %c0_i32, %c0_i32_0, %c0_i32_1 : i32, i32, i32
  }
  func.func @transform_11(%arg0: i32) -> (i32, i32, i32) {
    %c0_i32 = arith.constant 0 : i32
    %c0_i32_0 = arith.constant 0 : i32
    %c0_i32_1 = arith.constant 0 : i32
    %c0_i32_2 = arith.constant 0 : i32
    return %c0_i32, %c0_i32_0, %c0_i32_1 : i32, i32, i32
  }
  func.func @transform_12(%arg0: i32) -> (i32, i32, i32) {
    %c0_i32 = arith.constant 0 : i32
    %c0_i32_0 = arith.constant 0 : i32
    %c0_i32_1 = arith.constant 0 : i32
    %c0_i32_2 = arith.constant 0 : i32
    return %c0_i32, %c0_i32_0, %c0_i32_1 : i32, i32, i32
  }
  func.func @transform_13(%arg0: i32) -> (i32, i32, i32) {
    %c0_i32 = arith.constant 0 : i32
    %c0_i32_0 = arith.constant 0 : i32
    %c0_i32_1 = arith.constant 0 : i32
    %c0_i32_2 = arith.constant 0 : i32
    return %c0_i32, %c0_i32_0, %c0_i32_1 : i32, i32, i32
  }
  func.func @transform_14(%arg0: i32) -> (i32, i32, i32) {
    %c0_i32 = arith.constant 0 : i32
    %c0_i32_0 = arith.constant 0 : i32
    %c0_i32_1 = arith.constant 0 : i32
    %c0_i32_2 = arith.constant 0 : i32
    return %c0_i32, %c0_i32_0, %c0_i32_1 : i32, i32, i32
  }
  func.func @transform_15(%arg0: i32) -> (i32, i32) {
    %c0_i32 = arith.constant 0 : i32
    %c0_i32_0 = arith.constant 0 : i32
    %c0_i32_1 = arith.constant 0 : i32
    return %c0_i32, %c0_i32_0 : i32, i32
  }
  func.func @transform_16(%arg0: i32) -> (i32, i32) {
    %c0_i32 = arith.constant 0 : i32
    %c0_i32_0 = arith.constant 0 : i32
    %c0_i32_1 = arith.constant 0 : i32
    return %c0_i32, %c0_i32_0 : i32, i32
  }
  func.func @transform_17(%arg0: i32) -> (i32, i32) {
    %c0_i32 = arith.constant 0 : i32
    %c0_i32_0 = arith.constant 0 : i32
    return %arg0, %c0_i32 : i32, i32
  }
}

</mosaic_0001>

<llo_original>
// kernel: _attention_forward_jit.1
$region0: #{_attention_forward_jit.1}
  #allocation0 [shape = 'u32[]', space=smem, size = 0x4, offset = 0x4, fixed_abs, tag = 'smem constant byte address 0x4 - core index']
  #allocation1 [shape = 'u32[144,128]{1,0:T(1,128)}', space=vmem, size = 0x12000, scoped, tag = 'internal scratch']
  #allocation2 [shape = 'f32[1,1]{1,0:T(1,128)S(1)}', space=vmem, size = 0x200, scoped, tag = 'scoped memory for _attention_forward_jit.1']
  %s0 = inlined_call_operand.vmem [shape: f32[16,16], index: 0, kind: input, shape index: {}]
  %s1 = inlined_call_operand.vmem [shape: bf16[16,32], index: 1, kind: input, shape index: {}]
  %s2 = inlined_call_operand.vmem [shape: f32[1,32], index: 2, kind: input, shape index: {}]
  %s3 = inlined_call_operand.vmem [shape: bf16[2,32,96], index: 3, kind: input, shape index: {}]
  %s4 = inlined_call_operand.vmem [shape: f32[2,1,96], index: 4, kind: input, shape index: {}]
  %s5 = inlined_call_operand.vmem [shape: bf16[2,32,32], index: 5, kind: input, shape index: {}]
  %s6 = inlined_call_operand.vmem [shape: f32[2,1,32], index: 6, kind: input, shape index: {}]
  %s7 = inlined_call_operand.vmem [shape: f32[2,1,32], index: 7, kind: input, shape index: {}]
  %s8 = inlined_call_operand.vmem [shape: f32[2,1,32], index: 8, kind: input, shape index: {}]
  %s9 = inlined_call_operand.vmem [shape: bf16[2,32,128], index: 9, kind: input, shape index: {}]
  %s10 = inlined_call_operand.vmem [shape: f32[2,1,128], index: 10, kind: input, shape index: {}]
  %s11 = inlined_call_operand.vmem [shape: bf16[2,128,32], index: 11, kind: input, shape index: {}]
  %s12 = inlined_call_operand.vmem [shape: f32[2,1,32], index: 12, kind: input, shape index: {}]
  %s13 = inlined_call_operand.vmem [shape: f32[2,1,32], index: 13, kind: input, shape index: {}]
  %s14 = inlined_call_operand.vmem [shape: f32[2,1,32], index: 14, kind: input, shape index: {}]
  %s15 = inlined_call_operand.vmem [shape: bf16[32,1], index: 15, kind: input, shape index: {}]
  %s16 = inlined_call_operand.<no memory space> [shape: f32[1,1], index: 16, kind: input, shape index: {}]
  %s17 = inlined_call_operand.vmem [shape: f32[16,1], index: 17, kind: output, shape index: {}]
  %s18 = sld [smem:[#allocation0]]
  $region101: #{_attention_forward_jit.1} parent=0
    _
  %s20 = ssub.s32 1, %s18
  %s21 = scalar_select 0, %s20, %s18
  %v22 = vstv %s16
  %23 = vst [vmem:[#allocation2] sm:$0x1] %v22
  loop: start=0, step=1, limit=4
  $region2: #{_attention_forward_jit.1} parent=0 // loop_pre_header
    _
  $region3: #{_attention_forward_jit.1} parent=0 // loop_header
    %s25 = sphi 0, %s29
    %p26 = scmp.ge.s32.totalorder %s25, 4
    %s35 = sphi 0, %s37
    %s38 = sphi 0, %s35
    %s39 = sphi 0, %s38
    %s55 = sphi 0, %s39
    %s59 = sphi 0, %s59
    %s61 = sphi 0, %s59
    %s62 = sphi 0, %s61
    %s76 = sphi 0, %s62
    %s80 = sphi 0, %s80
    %s82 = sphi 0, %s80
    %s83 = sphi 0, %s82
    %s97 = sphi 0, %s83
    %s101 = sphi 0, %s101
    %s103 = sphi 0, %s101
    %s104 = sphi 0, %s103
    %s118 = sphi 0, %s104
    %s122 = sphi 0, %s122
    %s124 = sphi 0, %s122
    %s125 = sphi 0, %s124
    %s139 = sphi 0, %s125
    %s143 = sphi 0, %s143
    %s145 = sphi 0, %s143
    %s146 = sphi 0, %s145
    %s160 = sphi 0, %s146
    %s164 = sphi 0, %s164
    %s166 = sphi 0, %s164
    %s167 = sphi 0, %s166
    %s181 = sphi 0, %s167
    %s185 = sphi 0, %s185
    %s187 = sphi 0, %s185
    %s188 = sphi 0, %s187
    %s202 = sphi 0, %s188
    %s206 = sphi 0, %s206
    %s208 = sphi 0, %s206
    %s209 = sphi 0, %s208
    %s223 = sphi 0, %s209
    %s227 = sphi 0, %s227
    %s229 = sphi 0, %s227
    %s230 = sphi 0, %s229
    %s244 = sphi 0, %s230
    %s248 = sphi 0, %s248
    %s250 = sphi 0, %s248
    %s251 = sphi 0, %s250
    %s265 = sphi 0, %s251
    %s269 = sphi 0, %s269
    %s271 = sphi 0, %s269
    %s272 = sphi 0, %s271
    %s286 = sphi 0, %s272
    %s290 = sphi 0, %s290
    %s292 = sphi 0, %s290
    %s293 = sphi 0, %s292
    %s307 = sphi 0, %s293
    %s311 = sphi 0, %s311
    %s313 = sphi 0, %s311
    %s314 = sphi 0, %s313
    %s328 = sphi 0, %s314
    %s332 = sphi 0, %s332
    %s334 = sphi 0, %s332
    %s335 = sphi 0, %s334
    %s349 = sphi 0, %s335
    %s353 = sphi 0, %s353
    %s355 = sphi 0, %s353
    %s356 = sphi 0, %s355
    %s370 = sphi 0, %s356
    %s374 = sphi 0, %s374
    %s376 = sphi 0, %s374
    %s377 = sphi 0, %s376
    %s391 = sphi 0, %s377
    %s397 = sphi 0, %s399
    %s400 = sphi 0, %s397
    %s401 = sphi 0, %s400
    %s417 = sphi 0, %s401
  $region4: #{_attention_forward_jit.1} parent=0 // loop_header_branch
    %28 = sbr.rel (%p26) target = $region8
  $region5: #{_attention_forward_jit.1} parent=0 // loop_body
    %s30 = ssub.s32 %s25, 1
    %s31 = ssub.s32 %s25, 2
    %s32 = sadd.s32 %s25, 1
    %s33 = ssub.s32 %s25, %s32
    %p34 = scmp.eq.s32.totalorder %s33, 0
    %s36 = sadd.s32 %s35, 1
    %s37 = scalar_select %p34, %s35, %s36
    %p40 = pneg %p34
    %p41 = scmp.eq.s32.totalorder %s25, 1
    %p42 = por %p40, %p41
    %p43 = scmp.ne.s32.totalorder %s35, %s38
    %p44 = scmp.eq.s32.totalorder %s25, 0
    %p45 = por %p43, %p44
    %p46 = scmp.ne.s32.totalorder %s35, %s38
    %p47 = scmp.eq.s32.totalorder %s30, 1
    %p48 = por %p46, %p47
    %p49 = scmp.ne.s32.totalorder %s38, %s39
    %p50 = scmp.eq.s32.totalorder %s30, 0
    %p51 = por %p49, %p50
    %p52 = scmp.ne.s32.totalorder %s38, %s39
    %p53 = scmp.eq.s32.totalorder %s31, 1
    %p54 = por %p52, %p53
    %p56 = scmp.ne.s32.totalorder %s39, %s55
    %p57 = scmp.eq.s32.totalorder %s31, 0
    %p58 = por %p56, %p57
    %s60 = sadd.s32 %s59, 1
    %p63 = scmp.eq.s32.totalorder %s25, 1
    %p64 = scmp.ne.s32.totalorder %s59, %s61
    %p65 = scmp.eq.s32.totalorder %s25, 0
    %p66 = por %p64, %p65
    %p67 = scmp.ne.s32.totalorder %s59, %s61
    %p68 = scmp.eq.s32.totalorder %s30, 1
    %p69 = por %p67, %p68
    %p70 = scmp.ne.s32.totalorder %s61, %s62
    %p71 = scmp.eq.s32.totalorder %s30, 0
    %p72 = por %p70, %p71
    %p73 = scmp.ne.s32.totalorder %s61, %s62
    %p74 = scmp.eq.s32.totalorder %s31, 1
    %p75 = por %p73, %p74
    %p77 = scmp.ne.s32.totalorder %s62, %s76
    %p78 = scmp.eq.s32.totalorder %s31, 0
    %p79 = por %p77, %p78
    %s81 = sadd.s32 %s80, 1
    %p84 = scmp.eq.s32.totalorder %s25, 1
    %p85 = scmp.ne.s32.totalorder %s80, %s82
    %p86 = scmp.eq.s32.totalorder %s25, 0
    %p87 = por %p85, %p86
    %p88 = scmp.ne.s32.totalorder %s80, %s82
    %p89 = scmp.eq.s32.totalorder %s30, 1
    %p90 = por %p88, %p89
    %p91 = scmp.ne.s32.totalorder %s82, %s83
    %p92 = scmp.eq.s32.totalorder %s30, 0
    %p93 = por %p91, %p92
    %p94 = scmp.ne.s32.totalorder %s82, %s83
    %p95 = scmp.eq.s32.totalorder %s31, 1
    %p96 = por %p94, %p95
    %p98 = scmp.ne.s32.totalorder %s83, %s97
    %p99 = scmp.eq.s32.totalorder %s31, 0
    %p100 = por %p98, %p99
    %s102 = sadd.s32 %s101, 1
    %p105 = scmp.eq.s32.totalorder %s25, 1
    %p106 = scmp.ne.s32.totalorder %s101, %s103
    %p107 = scmp.eq.s32.totalorder %s25, 0
    %p108 = por %p106, %p107
    %p109 = scmp.ne.s32.totalorder %s101, %s103
    %p110 = scmp.eq.s32.totalorder %s30, 1
    %p111 = por %p109, %p110
    %p112 = scmp.ne.s32.totalorder %s103, %s104
    %p113 = scmp.eq.s32.totalorder %s30, 0
    %p114 = por %p112, %p113
    %p115 = scmp.ne.s32.totalorder %s103, %s104
    %p116 = scmp.eq.s32.totalorder %s31, 1
    %p117 = por %p115, %p116
    %p119 = scmp.ne.s32.totalorder %s104, %s118
    %p120 = scmp.eq.s32.totalorder %s31, 0
    %p121 = por %p119, %p120
    %s123 = sadd.s32 %s122, 1
    %p126 = scmp.eq.s32.totalorder %s25, 1
    %p127 = scmp.ne.s32.totalorder %s122, %s124
    %p128 = scmp.eq.s32.totalorder %s25, 0
    %p129 = por %p127, %p128
    %p130 = scmp.ne.s32.totalorder %s122, %s124
    %p131 = scmp.eq.s32.totalorder %s30, 1
    %p132 = por %p130, %p131
    %p133 = scmp.ne.s32.totalorder %s124, %s125
    %p134 = scmp.eq.s32.totalorder %s30, 0
    %p135 = por %p133, %p134
    %p136 = scmp.ne.s32.totalorder %s124, %s125
    %p137 = scmp.eq.s32.totalorder %s31, 1
    %p138 = por %p136, %p137
    %p140 = scmp.ne.s32.totalorder %s125, %s139
    %p141 = scmp.eq.s32.totalorder %s31, 0
    %p142 = por %p140, %p141
    %s144 = sadd.s32 %s143, 1
    %p147 = scmp.eq.s32.totalorder %s25, 1
    %p148 = scmp.ne.s32.totalorder %s143, %s145
    %p149 = scmp.eq.s32.totalorder %s25, 0
    %p150 = por %p148, %p149
    %p151 = scmp.ne.s32.totalorder %s143, %s145
    %p152 = scmp.eq.s32.totalorder %s30, 1
    %p153 = por %p151, %p152
    %p154 = scmp.ne.s32.totalorder %s145, %s146
    %p155 = scmp.eq.s32.totalorder %s30, 0
    %p156 = por %p154, %p155
    %p157 = scmp.ne.s32.totalorder %s145, %s146
    %p158 = scmp.eq.s32.totalorder %s31, 1
    %p159 = por %p157, %p158
    %p161 = scmp.ne.s32.totalorder %s146, %s160
    %p162 = scmp.eq.s32.totalorder %s31, 0
    %p163 = por %p161, %p162
    %s165 = sadd.s32 %s164, 1
    %p168 = scmp.eq.s32.totalorder %s25, 1
    %p169 = scmp.ne.s32.totalorder %s164, %s166
    %p170 = scmp.eq.s32.totalorder %s25, 0
    %p171 = por %p169, %p170
    %p172 = scmp.ne.s32.totalorder %s164, %s166
    %p173 = scmp.eq.s32.totalorder %s30, 1
    %p174 = por %p172, %p173
    %p175 = scmp.ne.s32.totalorder %s166, %s167
    %p176 = scmp.eq.s32.totalorder %s30, 0
    %p177 = por %p175, %p176
    %p178 = scmp.ne.s32.totalorder %s166, %s167
    %p179 = scmp.eq.s32.totalorder %s31, 1
    %p180 = por %p178, %p179
    %p182 = scmp.ne.s32.totalorder %s167, %s181
    %p183 = scmp.eq.s32.totalorder %s31, 0
    %p184 = por %p182, %p183
    %s186 = sadd.s32 %s185, 1
    %p189 = scmp.eq.s32.totalorder %s25, 1
    %p190 = scmp.ne.s32.totalorder %s185, %s187
    %p191 = scmp.eq.s32.totalorder %s25, 0
    %p192 = por %p190, %p191
    %p193 = scmp.ne.s32.totalorder %s185, %s187
    %p194 = scmp.eq.s32.totalorder %s30, 1
    %p195 = por %p193, %p194
    %p196 = scmp.ne.s32.totalorder %s187, %s188
    %p197 = scmp.eq.s32.totalorder %s30, 0
    %p198 = por %p196, %p197
    %p199 = scmp.ne.s32.totalorder %s187, %s188
    %p200 = scmp.eq.s32.totalorder %s31, 1
    %p201 = por %p199, %p200
    %p203 = scmp.ne.s32.totalorder %s188, %s202
    %p204 = scmp.eq.s32.totalorder %s31, 0
    %p205 = por %p203, %p204
    %s207 = sadd.s32 %s206, 1
    %p210 = scmp.eq.s32.totalorder %s25, 1
    %p211 = scmp.ne.s32.totalorder %s206, %s208
    %p212 = scmp.eq.s32.totalorder %s25, 0
    %p213 = por %p211, %p212
    %p214 = scmp.ne.s32.totalorder %s206, %s208
    %p215 = scmp.eq.s32.totalorder %s30, 1
    %p216 = por %p214, %p215
    %p217 = scmp.ne.s32.totalorder %s208, %s209
    %p218 = scmp.eq.s32.totalorder %s30, 0
    %p219 = por %p217, %p218
    %p220 = scmp.ne.s32.totalorder %s208, %s209
    %p221 = scmp.eq.s32.totalorder %s31, 1
    %p222 = por %p220, %p221
    %p224 = scmp.ne.s32.totalorder %s209, %s223
    %p225 = scmp.eq.s32.totalorder %s31, 0
    %p226 = por %p224, %p225
    %s228 = sadd.s32 %s227, 1
    %p231 = scmp.eq.s32.totalorder %s25, 1
    %p232 = scmp.ne.s32.totalorder %s227, %s229
    %p233 = scmp.eq.s32.totalorder %s25, 0
    %p234 = por %p232, %p233
    %p235 = scmp.ne.s32.totalorder %s227, %s229
    %p236 = scmp.eq.s32.totalorder %s30, 1
    %p237 = por %p235, %p236
    %p238 = scmp.ne.s32.totalorder %s229, %s230
    %p239 = scmp.eq.s32.totalorder %s30, 0
    %p240 = por %p238, %p239
    %p241 = scmp.ne.s32.totalorder %s229, %s230
    %p242 = scmp.eq.s32.totalorder %s31, 1
    %p243 = por %p241, %p242
    %p245 = scmp.ne.s32.totalorder %s230, %s244
    %p246 = scmp.eq.s32.totalorder %s31, 0
    %p247 = por %p245, %p246
    %s249 = sadd.s32 %s248, 1
    %p252 = scmp.eq.s32.totalorder %s25, 1
    %p253 = scmp.ne.s32.totalorder %s248, %s250
    %p254 = scmp.eq.s32.totalorder %s25, 0
    %p255 = por %p253, %p254
    %p256 = scmp.ne.s32.totalorder %s248, %s250
    %p257 = scmp.eq.s32.totalorder %s30, 1
    %p258 = por %p256, %p257
    %p259 = scmp.ne.s32.totalorder %s250, %s251
    %p260 = scmp.eq.s32.totalorder %s30, 0
    %p261 = por %p259, %p260
    %p262 = scmp.ne.s32.totalorder %s250, %s251
    %p263 = scmp.eq.s32.totalorder %s31, 1
    %p264 = por %p262, %p263
    %p266 = scmp.ne.s32.totalorder %s251, %s265
    %p267 = scmp.eq.s32.totalorder %s31, 0
    %p268 = por %p266, %p267
    %s270 = sadd.s32 %s269, 1
    %p273 = scmp.eq.s32.totalorder %s25, 1
    %p274 = scmp.ne.s32.totalorder %s269, %s271
    %p275 = scmp.eq.s32.totalorder %s25, 0
    %p276 = por %p274, %p275
    %p277 = scmp.ne.s32.totalorder %s269, %s271
    %p278 = scmp.eq.s32.totalorder %s30, 1
    %p279 = por %p277, %p278
    %p280 = scmp.ne.s32.totalorder %s271, %s272
    %p281 = scmp.eq.s32.totalorder %s30, 0
    %p282 = por %p280, %p281
    %p283 = scmp.ne.s32.totalorder %s271, %s272
    %p284 = scmp.eq.s32.totalorder %s31, 1
    %p285 = por %p283, %p284
    %p287 = scmp.ne.s32.totalorder %s272, %s286
    %p288 = scmp.eq.s32.totalorder %s31, 0
    %p289 = por %p287, %p288
    %s291 = sadd.s32 %s290, 1
    %p294 = scmp.eq.s32.totalorder %s25, 1
    %p295 = scmp.ne.s32.totalorder %s290, %s292
    %p296 = scmp.eq.s32.totalorder %s25, 0
    %p297 = por %p295, %p296
    %p298 = scmp.ne.s32.totalorder %s290, %s292
    %p299 = scmp.eq.s32.totalorder %s30, 1
    %p300 = por %p298, %p299
    %p301 = scmp.ne.s32.totalorder %s292, %s293
    %p302 = scmp.eq.s32.totalorder %s30, 0
    %p303 = por %p301, %p302
    %p304 = scmp.ne.s32.totalorder %s292, %s293
    %p305 = scmp.eq.s32.totalorder %s31, 1
    %p306 = por %p304, %p305
    %p308 = scmp.ne.s32.totalorder %s293, %s307
    %p309 = scmp.eq.s32.totalorder %s31, 0
    %p310 = por %p308, %p309
    %s312 = sadd.s32 %s311, 1
    %p315 = scmp.eq.s32.totalorder %s25, 1
    %p316 = scmp.ne.s32.totalorder %s311, %s313
    %p317 = scmp.eq.s32.totalorder %s25, 0
    %p318 = por %p316, %p317
    %p319 = scmp.ne.s32.totalorder %s311, %s313
    %p320 = scmp.eq.s32.totalorder %s30, 1
    %p321 = por %p319, %p320
    %p322 = scmp.ne.s32.totalorder %s313, %s314
    %p323 = scmp.eq.s32.totalorder %s30, 0
    %p324 = por %p322, %p323
    %p325 = scmp.ne.s32.totalorder %s313, %s314
    %p326 = scmp.eq.s32.totalorder %s31, 1
    %p327 = por %p325, %p326
    %p329 = scmp.ne.s32.totalorder %s314, %s328
    %p330 = scmp.eq.s32.totalorder %s31, 0
    %p331 = por %p329, %p330
    %s333 = sadd.s32 %s332, 1
    %p336 = scmp.eq.s32.totalorder %s25, 1
    %p337 = scmp.ne.s32.totalorder %s332, %s334
    %p338 = scmp.eq.s32.totalorder %s25, 0
    %p339 = por %p337, %p338
    %p340 = scmp.ne.s32.totalorder %s332, %s334
    %p341 = scmp.eq.s32.totalorder %s30, 1
    %p342 = por %p340, %p341
    %p343 = scmp.ne.s32.totalorder %s334, %s335
    %p344 = scmp.eq.s32.totalorder %s30, 0
    %p345 = por %p343, %p344
    %p346 = scmp.ne.s32.totalorder %s334, %s335
    %p347 = scmp.eq.s32.totalorder %s31, 1
    %p348 = por %p346, %p347
    %p350 = scmp.ne.s32.totalorder %s335, %s349
    %p351 = scmp.eq.s32.totalorder %s31, 0
    %p352 = por %p350, %p351
    %s354 = sadd.s32 %s353, 1
    %p357 = scmp.eq.s32.totalorder %s25, 1
    %p358 = scmp.ne.s32.totalorder %s353, %s355
    %p359 = scmp.eq.s32.totalorder %s25, 0
    %p360 = por %p358, %p359
    %p361 = scmp.ne.s32.totalorder %s353, %s355
    %p362 = scmp.eq.s32.totalorder %s30, 1
    %p363 = por %p361, %p362
    %p364 = scmp.ne.s32.totalorder %s355, %s356
    %p365 = scmp.eq.s32.totalorder %s30, 0
    %p366 = por %p364, %p365
    %p367 = scmp.ne.s32.totalorder %s355, %s356
    %p368 = scmp.eq.s32.totalorder %s31, 1
    %p369 = por %p367, %p368
    %p371 = scmp.ne.s32.totalorder %s356, %s370
    %p372 = scmp.eq.s32.totalorder %s31, 0
    %p373 = por %p371, %p372
    %s375 = sadd.s32 %s374, 1
    %p378 = scmp.eq.s32.totalorder %s25, 1
    %p379 = scmp.ne.s32.totalorder %s374, %s376
    %p380 = scmp.eq.s32.totalorder %s25, 0
    %p381 = por %p379, %p380
    %p382 = scmp.ne.s32.totalorder %s374, %s376
    %p383 = scmp.eq.s32.totalorder %s30, 1
    %p384 = por %p382, %p383
    %p385 = scmp.ne.s32.totalorder %s376, %s377
    %p386 = scmp.eq.s32.totalorder %s30, 0
    %p387 = por %p385, %p386
    %p388 = scmp.ne.s32.totalorder %s376, %s377
    %p389 = scmp.eq.s32.totalorder %s31, 1
    %p390 = por %p388, %p389
    %p392 = scmp.ne.s32.totalorder %s377, %s391
    %p393 = scmp.eq.s32.totalorder %s31, 0
    %p394 = por %p392, %p393
    %s395 = ssub.s32 %s25, %s32
    %p396 = scmp.eq.s32.totalorder %s395, 0
    %s398 = sadd.s32 %s397, 1
    %s399 = scalar_select %p396, %s397, %s398
    %p402 = pneg %p396
    %p403 = scmp.eq.s32.totalorder %s25, 1
    %p404 = por %p402, %p403
    %p405 = scmp.ne.s32.totalorder %s397, %s400
    %p406 = scmp.eq.s32.totalorder %s25, 0
    %p407 = por %p405, %p406
    %p408 = scmp.ne.s32.totalorder %s397, %s400
    %p409 = scmp.eq.s32.totalorder %s30, 1
    %p410 = por %p408, %p409
    %p411 = scmp.ne.s32.totalorder %s400, %s401
    %p412 = scmp.eq.s32.totalorder %s30, 0
    %p413 = por %p411, %p412
    %p414 = scmp.ne.s32.totalorder %s400, %s401
    %p415 = scmp.eq.s32.totalorder %s31, 1
    %p416 = por %p414, %p415
    %p418 = scmp.ne.s32.totalorder %s401, %s417
    %p419 = scmp.eq.s32.totalorder %s31, 0
    %p420 = por %p418, %p419
    %p421 = scmp.le.s32.totalorder 1, %s25
    %p422 = scmp.lt.s32.totalorder %s25, 3
    %p423 = pnand %p421, %p422
    %p424 = pneg %p423
    // Predicated region
    $region9: #{_attention_forward_jit.1} parent=5 // pred_check
      _
    $region10: #{_attention_forward_jit.1} parent=5 // pred_check_branch
      %426 = sbr.rel (%p423) target = $region12
    $region11: #{_attention_forward_jit.1} parent=5 // pred_region
      %s427 = ssub.s32 %s25, 1
      // Predicated region
      $region13: #{_attention_forward_jit.1} parent=11 // pred_check
        %p428 = pneg %p72
      $region14: #{_attention_forward_jit.1} parent=11 // pred_check_branch
        %430 = sbr.rel (%p428) target = $region16
      $region15: #{_attention_forward_jit.1} parent=11 // pred_region
        _
      $region16: #{_attention_forward_jit.1} parent=11 // pred_fallthru
        _
      // Predicated region
      $region17: #{_attention_forward_jit.1} parent=11 // pred_check
        %p431 = pneg %p93
      $region18: #{_attention_forward_jit.1} parent=11 // pred_check_branch
        %433 = sbr.rel (%p431) target = $region20
      $region19: #{_attention_forward_jit.1} parent=11 // pred_region
        _
      $region20: #{_attention_forward_jit.1} parent=11 // pred_fallthru
        _
      // Predicated region
      $region21: #{_attention_forward_jit.1} parent=11 // pred_check
        %p434 = pneg %p114
      $region22: #{_attention_forward_jit.1} parent=11 // pred_check_branch
        %436 = sbr.rel (%p434) target = $region24
      $region23: #{_attention_forward_jit.1} parent=11 // pred_region
        _
      $region24: #{_attention_forward_jit.1} parent=11 // pred_fallthru
        _
      // Predicated region
      $region25: #{_attention_forward_jit.1} parent=11 // pred_check
        %p437 = pneg %p135
      $region26: #{_attention_forward_jit.1} parent=11 // pred_check_branch
        %439 = sbr.rel (%p437) target = $region28
      $region27: #{_attention_forward_jit.1} parent=11 // pred_region
        _
      $region28: #{_attention_forward_jit.1} parent=11 // pred_fallthru
        _
      // Predicated region
      $region29: #{_attention_forward_jit.1} parent=11 // pred_check
        %p440 = pneg %p156
      $region30: #{_attention_forward_jit.1} parent=11 // pred_check_branch
        %442 = sbr.rel (%p440) target = $region32
      $region31: #{_attention_forward_jit.1} parent=11 // pred_region
        _
      $region32: #{_attention_forward_jit.1} parent=11 // pred_fallthru
        _
      // Predicated region
      $region33: #{_attention_forward_jit.1} parent=11 // pred_check
        %p443 = pneg %p177
      $region34: #{_attention_forward_jit.1} parent=11 // pred_check_branch
        %445 = sbr.rel (%p443) target = $region36
      $region35: #{_attention_forward_jit.1} parent=11 // pred_region
        _
      $region36: #{_attention_forward_jit.1} parent=11 // pred_fallthru
        _
      // Predicated region
      $region37: #{_attention_forward_jit.1} parent=11 // pred_check
        %p446 = pneg %p198
      $region38: #{_attention_forward_jit.1} parent=11 // pred_check_branch
        %448 = sbr.rel (%p446) target = $region40
      $region39: #{_attention_forward_jit.1} parent=11 // pred_region
        _
      $region40: #{_attention_forward_jit.1} parent=11 // pred_fallthru
        _
      // Predicated region
      $region41: #{_attention_forward_jit.1} parent=11 // pred_check
        %p449 = pneg %p219
      $region42: #{_attention_forward_jit.1} parent=11 // pred_check_branch
        %451 = sbr.rel (%p449) target = $region44
      $region43: #{_attention_forward_jit.1} parent=11 // pred_region
        _
      $region44: #{_attention_forward_jit.1} parent=11 // pred_fallthru
        _
      // Predicated region
      $region45: #{_attention_forward_jit.1} parent=11 // pred_check
        %p452 = pneg %p240
      $region46: #{_attention_forward_jit.1} parent=11 // pred_check_branch
        %454 = sbr.rel (%p452) target = $region48
      $region47: #{_attention_forward_jit.1} parent=11 // pred_region
        _
      $region48: #{_attention_forward_jit.1} parent=11 // pred_fallthru
        _
      // Predicated region
      $region49: #{_attention_forward_jit.1} parent=11 // pred_check
        %p455 = pneg %p261
      $region50: #{_attention_forward_jit.1} parent=11 // pred_check_branch
        %457 = sbr.rel (%p455) target = $region52
      $region51: #{_attention_forward_jit.1} parent=11 // pred_region
        _
      $region52: #{_attention_forward_jit.1} parent=11 // pred_fallthru
        _
      // Predicated region
      $region53: #{_attention_forward_jit.1} parent=11 // pred_check
        %p458 = pneg %p282
      $region54: #{_attention_forward_jit.1} parent=11 // pred_check_branch
        %460 = sbr.rel (%p458) target = $region56
      $region55: #{_attention_forward_jit.1} parent=11 // pred_region
        _
      $region56: #{_attention_forward_jit.1} parent=11 // pred_fallthru
        _
      // Predicated region
      $region57: #{_attention_forward_jit.1} parent=11 // pred_check
        %p461 = pneg %p303
      $region58: #{_attention_forward_jit.1} parent=11 // pred_check_branch
        %463 = sbr.rel (%p461) target = $region60
      $region59: #{_attention_forward_jit.1} parent=11 // pred_region
        _
      $region60: #{_attention_forward_jit.1} parent=11 // pred_fallthru
        _
      // Predicated region
      $region61: #{_attention_forward_jit.1} parent=11 // pred_check
        %p464 = pneg %p324
      $region62: #{_attention_forward_jit.1} parent=11 // pred_check_branch
        %466 = sbr.rel (%p464) target = $region64
      $region63: #{_attention_forward_jit.1} parent=11 // pred_region
        _
      $region64: #{_attention_forward_jit.1} parent=11 // pred_fallthru
        _
      // Predicated region
      $region65: #{_attention_forward_jit.1} parent=11 // pred_check
        %p467 = pneg %p345
      $region66: #{_attention_forward_jit.1} parent=11 // pred_check_branch
        %469 = sbr.rel (%p467) target = $region68
      $region67: #{_attention_forward_jit.1} parent=11 // pred_region
        _
      $region68: #{_attention_forward_jit.1} parent=11 // pred_fallthru
        _
      // Predicated region
      $region69: #{_attention_forward_jit.1} parent=11 // pred_check
        %p470 = pneg %p366
      $region70: #{_attention_forward_jit.1} parent=11 // pred_check_branch
        %472 = sbr.rel (%p470) target = $region72
      $region71: #{_attention_forward_jit.1} parent=11 // pred_region
        _
      $region72: #{_attention_forward_jit.1} parent=11 // pred_fallthru
        _
      // Predicated region
      $region73: #{_attention_forward_jit.1} parent=11 // pred_check
        %p473 = pneg %p387
      $region74: #{_attention_forward_jit.1} parent=11 // pred_check_branch
        %475 = sbr.rel (%p473) target = $region76
      $region75: #{_attention_forward_jit.1} parent=11 // pred_region
        _
      $region76: #{_attention_forward_jit.1} parent=11 // pred_fallthru
        _
    $region12: #{_attention_forward_jit.1} parent=5 // pred_fallthru
      _
    %p476 = scmp.lt.s32.totalorder %s25, 2
    // Predicated region
    $region77: #{_attention_forward_jit.1} parent=5 // pred_check
      %p477 = pneg %p476
    $region78: #{_attention_forward_jit.1} parent=5 // pred_check_branch
      %479 = sbr.rel (%p477) target = $region80
    $region79: #{_attention_forward_jit.1} parent=5 // pred_region
      // Predicated region
      $region81: #{_attention_forward_jit.1} parent=79 // pred_check
        %p480 = pneg %p45
      $region82: #{_attention_forward_jit.1} parent=79 // pred_check_branch
        %482 = sbr.rel (%p480) target = $region84
      $region83: #{_attention_forward_jit.1} parent=79 // pred_region
        %p483 = scmp.lt.s32.totalorder %s25, 1
        %s484 = scalar_select %p483, %s25, 1
        %s485 = smul.addr %s484, 8
        %s486 = scalar_lea.vmem %s0, %s485
      $region84: #{_attention_forward_jit.1} parent=79 // pred_fallthru
        _
    $region80: #{_attention_forward_jit.1} parent=5 // pred_fallthru
      _
    %p487 = scmp.le.s32.totalorder 1, %s25
    %p488 = scmp.lt.s32.totalorder %s25, 3
    %p489 = pnand %p487, %p488
    %p490 = pneg %p489
    // Predicated region
    $region85: #{_attention_forward_jit.1} parent=5 // pred_check
      _
    $region86: #{_attention_forward_jit.1} parent=5 // pred_check_branch
      %492 = sbr.rel (%p489) target = $region88
    $region87: #{_attention_forward_jit.1} parent=5 // pred_region
      %s493 = ssub.s32 %s25, 1
      %p494 = scmp.lt.s32.totalorder %s30, 1
      %s495 = scalar_select %p494, %s30, 1
      %s496 = smul.addr %s495, 8
      %s497 = scalar_lea.vmem %s0, %s496
      %p498 = pneg %p51
      %p499 = pneg %p48
      %p500 = pneg %p72
      %p501 = pneg %p69
      %p502 = pneg %p93
      %p503 = pneg %p90
      %p504 = pneg %p114
      %p505 = pneg %p111
      %p506 = pneg %p135
      %p507 = pneg %p132
      %p508 = pneg %p156
      %p509 = pneg %p153
      %p510 = pneg %p177
      %p511 = pneg %p174
      %p512 = pneg %p198
      %p513 = pneg %p195
      %p514 = pneg %p219
      %p515 = pneg %p216
      %p516 = pneg %p240
      %p517 = pneg %p237
      %p518 = pneg %p261
      %p519 = pneg %p258
      %p520 = pneg %p282
      %p521 = pneg %p279
      %p522 = pneg %p303
      %p523 = pneg %p300
      %p524 = pneg %p324
      %p525 = pneg %p321
      %p526 = pneg %p345
      %p527 = pneg %p342
      %p528 = pneg %p366
      %p529 = pneg %p363
      %p530 = pneg %p387
      %p531 = pneg %p384
      %p532 = pneg %p413
      %p533 = pneg %p410
      %p534 = scmp.lt.s32.totalorder %s30, 1
      %s535 = scalar_select %p534, %s30, 1
      %s536 = smul.addr %s535, 8
      %s537 = scalar_lea.vmem %s17, %s536
      %p538 = scmp.lt.s32.totalorder %s30, 1
      %s539 = scalar_select %p538, %s30, 1
      %s540 = smul.addr %s539, 8
      %s541 = scalar_lea.vmem %s0, %s540
      %p542 = scmp.lt.s32.totalorder %s30, 1
      %s543 = scalar_select %p542, %s30, 1
      %s544 = smul.addr %s543, 8
      %s545 = scalar_lea.vmem %s17, %s544
      %v547 = vld [vmem:[%s541] sm:$0xff]
      %v548 = vld [vmem:[%s1] sm:$0xf]
      %v549 = vld [vmem:[%s1 + $0x4] sm:$0xf]
      %v550 = vpack.c.bf16 %v547, %v547
      %v551 = vld [vmem:[%s2] sm:$0x1]
      %v553 = vlaneseq
      %v554 = vshrl.u32 %v553, 7
      %v555 = vsub.s32 0, %v554
      %v556 = vrot.slane %v551, %v555
      %v560 = vunpack.c.l.b16 %v548
      %v561 = vunpack.c.l.b16 %v549
      %v562 = vpack.c.b16 %v561, %v560
      %vm564 = vcmask 130048
      %v566 = vsel %vm564, %v550, 0
      %568 = vmatprep.subr.bf16.mxu0 0
      %569 = vmatpush1.bf16.msra.mxu0 0
      %570 = vmatprep.subr.bf16.mxu0 0
      %571 = vmatpush1.bf16.msra.mxu0 0
      %572 = vmatprep.subr.bf16.mxu0 0
      %573 = vmatpush1.bf16.msra.mxu0 0
      %574 = vmatprep.subr.bf16.mxu0 0
      %575 = vmatpush1.bf16.msra.mxu0 0
      %576 = vmatprep.subr.bf16.mxu0 0
      %577 = vmatpush1.bf16.msra.mxu0 0
      %578 = vmatprep.subr.bf16.mxu0 0
      %579 = vmatpush1.bf16.msra.mxu0 0
      %580 = vmatprep.subr.bf16.mxu0 0
      %581 = vmatpush1.bf16.msra.mxu0 0
      %582 = vmatprep.subr.bf16.mxu0 0
      %583 = vmatpush1.bf16.msra.mxu0 %v562
      %584 = vmatprep.subr.bf16.mxu0 0
      %585 = vmatpush2.bf16.msra.mxu0 0
      %586 = vmatprep.subr.bf16.mxu0 0
      %587 = vmatpush2.bf16.msra.mxu0 0
      %588 = vmatprep.subr.bf16.mxu0 0
      %589 = vmatpush2.bf16.msra.mxu0 0
      %590 = vmatprep.subr.bf16.mxu0 0
      %591 = vmatpush2.bf16.msra.mxu0 0
      %592 = vmatprep.subr.bf16.mxu0 0
      %593 = vmatpush2.bf16.msra.mxu0 0
      %594 = vmatprep.subr.bf16.mxu0 0
      %595 = vmatpush2.bf16.msra.mxu0 0
      %596 = vmatprep.subr.bf16.mxu0 0
      %597 = vmatpush2.bf16.msra.mxu0 0
      %598 = vmatprep.subr.bf16.mxu0 0
      %599 = vmatpush2.bf16.msra.mxu0 0
      %600 = vmatprep.mubr.bf16.mxu0 0
      %601 = vmatmul.mubr.bf16.gmra.mxu0 %v566
      %v602 = vpop.f32.mrf.mxu0
      %v603 = vadd.f32 %v556, %v602
      %v604 = vpop.f32.mrf.mxu0
      %v605 = vpop.f32.mrf.mxu0
      %v606 = vpop.f32.mrf.mxu0
      %607 = vdwg.mxu0
      %v608 = vmax.f32 %v603, 0.0
      %v609 = vld [vmem:[%s3] sm:$0xf]
      %v610 = vld [vmem:[%s3 + $0x4] sm:$0xf]
      %v611 = vld [vmem:[%s3 + $0x8] sm:$0xf]
      %v612 = vld [vmem:[%s3 + $0xc] sm:$0xf]
      %v613 = vpack.c.bf16 %v608, %v608
      %v614 = vld [vmem:[%s4] sm:$0x1]
      %v616 = vlaneseq
      %v617 = vshrl.u32 %v616, 7
      %v618 = vsub.s32 0, %v617
      %v619 = vrot.slane %v614, %v618
      %v625 = vunpack.c.l.b16 %v609
      %v626 = vunpack.c.l.b16 %v610
      %v627 = vunpack.c.l.b16 %v611
      %v628 = vunpack.c.l.b16 %v612
      %v629 = vpack.c.b16 %v626, %v625
      %v630 = vpack.c.b16 %v628, %v627
      %vm633 = vcmask 261120
      %v635 = vsel %vm633, %v613, 0
      %637 = vmatprep.subr.bf16.mxu0 0
      %638 = vmatpush1.bf16.msra.mxu0 0
      %639 = vmatprep.subr.bf16.mxu0 0
      %640 = vmatpush1.bf16.msra.mxu0 0
      %641 = vmatprep.subr.bf16.mxu0 0
      %642 = vmatpush1.bf16.msra.mxu0 0
      %643 = vmatprep.subr.bf16.mxu0 0
      %644 = vmatpush1.bf16.msra.mxu0 0
      %645 = vmatprep.subr.bf16.mxu0 0
      %646 = vmatpush1.bf16.msra.mxu0 0
      %647 = vmatprep.subr.bf16.mxu0 0
      %648 = vmatpush1.bf16.msra.mxu0 0
      %649 = vmatprep.subr.bf16.mxu0 0
      %650 = vmatpush1.bf16.msra.mxu0 %v630
      %651 = vmatprep.subr.bf16.mxu0 0
      %652 = vmatpush1.bf16.msra.mxu0 %v629
      %653 = vmatprep.subr.bf16.mxu0 0
      %654 = vmatpush2.bf16.msra.mxu0 0
      %655 = vmatprep.subr.bf16.mxu0 0
      %656 = vmatpush2.bf16.msra.mxu0 0
      %657 = vmatprep.subr.bf16.mxu0 0
      %658 = vmatpush2.bf16.msra.mxu0 0
      %659 = vmatprep.subr.bf16.mxu0 0
      %660 = vmatpush2.bf16.msra.mxu0 0
      %661 = vmatprep.subr.bf16.mxu0 0
      %662 = vmatpush2.bf16.msra.mxu0 0
      %663 = vmatprep.subr.bf16.mxu0 0
      %664 = vmatpush2.bf16.msra.mxu0 0
      %665 = vmatprep.subr.bf16.mxu0 0
      %666 = vmatpush2.bf16.msra.mxu0 0
      %667 = vmatprep.subr.bf16.mxu0 0
      %668 = vmatpush2.bf16.msra.mxu0 0
      %669 = vmatprep.mubr.bf16.mxu0 0
      %670 = vmatmul.mubr.bf16.gmra.mxu0 %v635
      %v671 = vpop.f32.mrf.mxu0
      %v672 = vadd.f32 %v619, %v671
      %v673 = vpop.f32.mrf.mxu0
      %v674 = vpop.f32.mrf.mxu0
      %v675 = vpop.f32.mrf.mxu0
      %676 = vdwg.mxu0
      %v677 = vpack.c.bf16 %v672, %v672
      %679 = vrot.lane.b32.xlu0 %v677, 96
      %v680 = vpop.permute.xlu0 %679
      %vm681 = vcmask 64512
      %v683 = vsel %vm681, %v677, 0
      %v686 = vsel %vm681, %v680, 0
      %688 = vmatprep.subr.bf16.mxu0 0
      %689 = vmatpush1.bf16.xpose.msra.mxu0 0
      %690 = vmatprep.subr.bf16.mxu0 0
      %691 = vmatpush1.bf16.xpose.msra.mxu0 0
      %692 = vmatprep.subr.bf16.mxu0 0
      %693 = vmatpush1.bf16.xpose.msra.mxu0 0
      %694 = vmatprep.subr.bf16.mxu0 0
      %695 = vmatpush1.bf16.xpose.msra.mxu0 0
      %696 = vmatprep.subr.bf16.mxu0 0
      %697 = vmatpush1.bf16.xpose.msra.mxu0 0
      %698 = vmatprep.subr.bf16.mxu0 0
      %699 = vmatpush1.bf16.xpose.msra.mxu0 0
      %700 = vmatprep.subr.bf16.mxu0 0
      %701 = vmatpush1.bf16.xpose.msra.mxu0 0
      %702 = vmatprep.subr.bf16.mxu0 0
      %703 = vmatpush1.bf16.xpose.msra.mxu0 %v686
      %704 = vmatprep.subr.bf16.mxu0 0
      %705 = vmatpush2.bf16.xpose.msra.mxu0 0
      %706 = vmatprep.subr.bf16.mxu0 0
      %707 = vmatpush2.bf16.xpose.msra.mxu0 0
      %708 = vmatprep.subr.bf16.mxu0 0
      %709 = vmatpush2.bf16.xpose.msra.mxu0 0
      %710 = vmatprep.subr.bf16.mxu0 0
      %711 = vmatpush2.bf16.xpose.msra.mxu0 0
      %712 = vmatprep.subr.bf16.mxu0 0
      %713 = vmatpush2.bf16.xpose.msra.mxu0 0
      %714 = vmatprep.subr.bf16.mxu0 0
      %715 = vmatpush2.bf16.xpose.msra.mxu0 0
      %716 = vmatprep.subr.bf16.mxu0 0
      %717 = vmatpush2.bf16.xpose.msra.mxu0 0
      %718 = vmatprep.subr.bf16.mxu0 0
      %719 = vmatpush2.bf16.xpose.msra.mxu0 0
      %720 = vmatprep.mubr.bf16.mxu0 0
      %721 = vmatmul.mubr.bf16.gmra.mxu0 %v683
      %v722 = vpop.f32.mrf.mxu0
      %v723 = vadd.f32 0.0, %v722
      %v724 = vpop.f32.mrf.mxu0
      %v725 = vpop.f32.mrf.mxu0
      %v726 = vpop.f32.mrf.mxu0
      %727 = vdwg.mxu0
      %v728 = vsel %vm681, %v723, -inf
      %729 = vmax.xlane.f32.xlu0 %v728
      %v730 = vpop.xlane.xlu0 %729
      %v731 = vsub.f32 %v723, %v730
      %v732 = vmul.f32 %v731, 1.442695
      %v733 = vpow.pop %v732
      %v734 = vsel %vm681, %v733, 0.0
      %735 = vadd.xlane.f32.xlu0 %v734
      %v736 = vpop.xlane.xlu0 %735
      %v737 = vrcp.pop %v736
      %v738 = vmul.f32 %v733, %v737
      %v739 = vpack.c.bf16 %v738, %v738
      %740 = vrot.lane.b32.xlu0 %v677, 64
      %v741 = vpop.permute.xlu0 %740
      %v743 = vsel %vm681, %v739, 0
      %vm745 = vcmask 1043456
      %v747 = vsel %vm745, %v741, 0
      %749 = vmatprep.subr.bf16.mxu0 0
      %750 = vmatpush1.bf16.msra.mxu0 0
      %751 = vmatprep.subr.bf16.mxu0 0
      %752 = vmatpush1.bf16.msra.mxu0 0
      %753 = vmatprep.subr.bf16.mxu0 0
      %754 = vmatpush1.bf16.msra.mxu0 0
      %755 = vmatprep.subr.bf16.mxu0 0
      %756 = vmatpush1.bf16.msra.mxu0 0
      %757 = vmatprep.subr.bf16.mxu0 0
      %758 = vmatpush1.bf16.msra.mxu0 0
      %759 = vmatprep.subr.bf16.mxu0 0
      %760 = vmatpush1.bf16.msra.mxu0 0
      %761 = vmatprep.subr.bf16.mxu0 0
      %762 = vmatpush1.bf16.msra.mxu0 0
      %763 = vmatprep.subr.bf16.mxu0 0
      %764 = vmatpush1.bf16.msra.mxu0 %v747
      %765 = vmatprep.subr.bf16.mxu0 0
      %766 = vmatpush2.bf16.msra.mxu0 0
      %767 = vmatprep.subr.bf16.mxu0 0
      %768 = vmatpush2.bf16.msra.mxu0 0
      %769 = vmatprep.subr.bf16.mxu0 0
      %770 = vmatpush2.bf16.msra.mxu0 0
      %771 = vmatprep.subr.bf16.mxu0 0
      %772 = vmatpush2.bf16.msra.mxu0 0
      %773 = vmatprep.subr.bf16.mxu0 0
      %774 = vmatpush2.bf16.msra.mxu0 0
      %775 = vmatprep.subr.bf16.mxu0 0
      %776 = vmatpush2.bf16.msra.mxu0 0
      %777 = vmatprep.subr.bf16.mxu0 0
      %778 = vmatpush2.bf16.msra.mxu0 0
      %779 = vmatprep.subr.bf16.mxu0 0
      %780 = vmatpush2.bf16.msra.mxu0 0
      %781 = vmatprep.mubr.bf16.mxu0 0
      %782 = vmatmul.mubr.bf16.gmra.mxu0 %v743
      %v783 = vpop.f32.mrf.mxu0
      %v784 = vadd.f32 0.0, %v783
      %v785 = vpop.f32.mrf.mxu0
      %v786 = vpop.f32.mrf.mxu0
      %v787 = vpop.f32.mrf.mxu0
      %788 = vdwg.mxu0
      %789 = vrot.lane.b32.xlu0 %v677, 120
      %v790 = vpop.permute.xlu0 %789
      %791 = vrot.lane.b32.xlu0 %v677, 88
      %v792 = vpop.permute.xlu0 %791
      %v794 = vsel %vm681, %v790, 0
      %v797 = vsel %vm681, %v792, 0
      %799 = vmatprep.subr.bf16.mxu0 0
      %800 = vmatpush1.bf16.xpose.msra.mxu0 0
      %801 = vmatprep.subr.bf16.mxu0 0
      %802 = vmatpush1.bf16.xpose.msra.mxu0 0
      %803 = vmatprep.subr.bf16.mxu0 0
      %804 = vmatpush1.bf16.xpose.msra.mxu0 0
      %805 = vmatprep.subr.bf16.mxu0 0
      %806 = vmatpush1.bf16.xpose.msra.mxu0 0
      %807 = vmatprep.subr.bf16.mxu0 0
      %808 = vmatpush1.bf16.xpose.msra.mxu0 0
      %809 = vmatprep.subr.bf16.mxu0 0
      %810 = vmatpush1.bf16.xpose.msra.mxu0 0
      %811 = vmatprep.subr.bf16.mxu0 0
      %812 = vmatpush1.bf16.xpose.msra.mxu0 0
      %813 = vmatprep.subr.bf16.mxu0 0
      %814 = vmatpush1.bf16.xpose.msra.mxu0 %v797
      %815 = vmatprep.subr.bf16.mxu0 0
      %816 = vmatpush2.bf16.xpose.msra.mxu0 0
      %817 = vmatprep.subr.bf16.mxu0 0
      %818 = vmatpush2.bf16.xpose.msra.mxu0 0
      %819 = vmatprep.subr.bf16.mxu0 0
      %820 = vmatpush2.bf16.xpose.msra.mxu0 0
      %821 = vmatprep.subr.bf16.mxu0 0
      %822 = vmatpush2.bf16.xpose.msra.mxu0 0
      %823 = vmatprep.subr.bf16.mxu0 0
      %824 = vmatpush2.bf16.xpose.msra.mxu0 0
      %825 = vmatprep.subr.bf16.mxu0 0
      %826 = vmatpush2.bf16.xpose.msra.mxu0 0
      %827 = vmatprep.subr.bf16.mxu0 0
      %828 = vmatpush2.bf16.xpose.msra.mxu0 0
      %829 = vmatprep.subr.bf16.mxu0 0
      %830 = vmatpush2.bf16.xpose.msra.mxu0 0
      %831 = vmatprep.mubr.bf16.mxu0 0
      %832 = vmatmul.mubr.bf16.gmra.mxu0 %v794
      %v833 = vpop.f32.mrf.mxu0
      %v834 = vadd.f32 0.0, %v833
      %v835 = vpop.f32.mrf.mxu0
      %v836 = vpop.f32.mrf.mxu0
      %v837 = vpop.f32.mrf.mxu0
      %838 = vdwg.mxu0
      %v839 = vsel %vm681, %v834, -inf
      %840 = vmax.xlane.f32.xlu0 %v839
      %v841 = vpop.xlane.xlu0 %840
      %v842 = vsub.f32 %v834, %v841
      %v843 = vmul.f32 %v842, 1.442695
      %v844 = vpow.pop %v843
      %v845 = vsel %vm681, %v844, 0.0
      %846 = vadd.xlane.f32.xlu0 %v845
      %v847 = vpop.xlane.xlu0 %846
      %v848 = vrcp.pop %v847
      %v849 = vmul.f32 %v844, %v848
      %v850 = vpack.c.bf16 %v849, %v849
      %851 = vrot.lane.b32.xlu0 %v677, 56
      %v852 = vpop.permute.xlu0 %851
      %v854 = vsel %vm681, %v850, 0
      %v857 = vsel %vm745, %v852, 0
      %859 = vmatprep.subr.bf16.mxu0 0
      %860 = vmatpush1.bf16.msra.mxu0 0
      %861 = vmatprep.subr.bf16.mxu0 0
      %862 = vmatpush1.bf16.msra.mxu0 0
      %863 = vmatprep.subr.bf16.mxu0 0
      %864 = vmatpush1.bf16.msra.mxu0 0
      %865 = vmatprep.subr.bf16.mxu0 0
      %866 = vmatpush1.bf16.msra.mxu0 0
      %867 = vmatprep.subr.bf16.mxu0 0
      %868 = vmatpush1.bf16.msra.mxu0 0
      %869 = vmatprep.subr.bf16.mxu0 0
      %870 = vmatpush1.bf16.msra.mxu0 0
      %871 = vmatprep.subr.bf16.mxu0 0
      %872 = vmatpush1.bf16.msra.mxu0 0
      %873 = vmatprep.subr.bf16.mxu0 0
      %874 = vmatpush1.bf16.msra.mxu0 %v857
      %875 = vmatprep.subr.bf16.mxu0 0
      %876 = vmatpush2.bf16.msra.mxu0 0
      %877 = vmatprep.subr.bf16.mxu0 0
      %878 = vmatpush2.bf16.msra.mxu0 0
      %879 = vmatprep.subr.bf16.mxu0 0
      %880 = vmatpush2.bf16.msra.mxu0 0
      %881 = vmatprep.subr.bf16.mxu0 0
      %882 = vmatpush2.bf16.msra.mxu0 0
      %883 = vmatprep.subr.bf16.mxu0 0
      %884 = vmatpush2.bf16.msra.mxu0 0
      %885 = vmatprep.subr.bf16.mxu0 0
      %886 = vmatpush2.bf16.msra.mxu0 0
      %887 = vmatprep.subr.bf16.mxu0 0
      %888 = vmatpush2.bf16.msra.mxu0 0
      %889 = vmatprep.subr.bf16.mxu0 0
      %890 = vmatpush2.bf16.msra.mxu0 0
      %891 = vmatprep.mubr.bf16.mxu0 0
      %892 = vmatmul.mubr.bf16.gmra.mxu0 %v854
      %v893 = vpop.f32.mrf.mxu0
      %v894 = vadd.f32 0.0, %v893
      %v895 = vpop.f32.mrf.mxu0
      %v896 = vpop.f32.mrf.mxu0
      %v897 = vpop.f32.mrf.mxu0
      %898 = vdwg.mxu0
      %899 = vrot.lane.b32.xlu0 %v677, 112
      %v900 = vpop.permute.xlu0 %899
      %901 = vrot.lane.b32.xlu0 %v677, 80
      %v902 = vpop.permute.xlu0 %901
      %v904 = vsel %vm681, %v900, 0
      %v907 = vsel %vm681, %v902, 0
      %909 = vmatprep.subr.bf16.mxu0 0
      %910 = vmatpush1.bf16.xpose.msra.mxu0 0
      %911 = vmatprep.subr.bf16.mxu0 0
      %912 = vmatpush1.bf16.xpose.msra.mxu0 0
      %913 = vmatprep.subr.bf16.mxu0 0
      %914 = vmatpush1.bf16.xpose.msra.mxu0 0
      %915 = vmatprep.subr.bf16.mxu0 0
      %916 = vmatpush1.bf16.xpose.msra.mxu0 0
      %917 = vmatprep.subr.bf16.mxu0 0
      %918 = vmatpush1.bf16.xpose.msra.mxu0 0
      %919 = vmatprep.subr.bf16.mxu0 0
      %920 = vmatpush1.bf16.xpose.msra.mxu0 0
      %921 = vmatprep.subr.bf16.mxu0 0
      %922 = vmatpush1.bf16.xpose.msra.mxu0 0
      %923 = vmatprep.subr.bf16.mxu0 0
      %924 = vmatpush1.bf16.xpose.msra.mxu0 %v907
      %925 = vmatprep.subr.bf16.mxu0 0
      %926 = vmatpush2.bf16.xpose.msra.mxu0 0
      %927 = vmatprep.subr.bf16.mxu0 0
      %928 = vmatpush2.bf16.xpose.msra.mxu0 0
      %929 = vmatprep.subr.bf16.mxu0 0
      %930 = vmatpush2.bf16.xpose.msra.mxu0 0
      %931 = vmatprep.subr.bf16.mxu0 0
      %932 = vmatpush2.bf16.xpose.msra.mxu0 0
      %933 = vmatprep.subr.bf16.mxu0 0
      %934 = vmatpush2.bf16.xpose.msra.mxu0 0
      %935 = vmatprep.subr.bf16.mxu0 0
      %936 = vmatpush2.bf16.xpose.msra.mxu0 0
      %937 = vmatprep.subr.bf16.mxu0 0
      %938 = vmatpush2.bf16.xpose.msra.mxu0 0
      %939 = vmatprep.subr.bf16.mxu0 0
      %940 = vmatpush2.bf16.xpose.msra.mxu0 0
      %941 = vmatprep.mubr.bf16.mxu0 0
      %942 = vmatmul.mubr.bf16.gmra.mxu0 %v904
      %v943 = vpop.f32.mrf.mxu0
      %v944 = vadd.f32 0.0, %v943
      %v945 = vpop.f32.mrf.mxu0
      %v946 = vpop.f32.mrf.mxu0
      %v947 = vpop.f32.mrf.mxu0
      %948 = vdwg.mxu0
      %v949 = vsel %vm681, %v944, -inf
      %950 = vmax.xlane.f32.xlu0 %v949
      %v951 = vpop.xlane.xlu0 %950
      %v952 = vsub.f32 %v944, %v951
      %v953 = vmul.f32 %v952, 1.442695
      %v954 = vpow.pop %v953
      %v955 = vsel %vm681, %v954, 0.0
      %956 = vadd.xlane.f32.xlu0 %v955
      %v957 = vpop.xlane.xlu0 %956
      %v958 = vrcp.pop %v957
      %v959 = vmul.f32 %v954, %v958
      %v960 = vpack.c.bf16 %v959, %v959
      %961 = vrot.lane.b32.xlu0 %v677, 48
      %v962 = vpop.permute.xlu0 %961
      %v964 = vsel %vm681, %v960, 0
      %v967 = vsel %vm745, %v962, 0
      %969 = vmatprep.subr.bf16.mxu0 0
      %970 = vmatpush1.bf16.msra.mxu0 0
      %971 = vmatprep.subr.bf16.mxu0 0
      %972 = vmatpush1.bf16.msra.mxu0 0
      %973 = vmatprep.subr.bf16.mxu0 0
      %974 = vmatpush1.bf16.msra.mxu0 0
      %975 = vmatprep.subr.bf16.mxu0 0
      %976 = vmatpush1.bf16.msra.mxu0 0
      %977 = vmatprep.subr.bf16.mxu0 0
      %978 = vmatpush1.bf16.msra.mxu0 0
      %979 = vmatprep.subr.bf16.mxu0 0
      %980 = vmatpush1.bf16.msra.mxu0 0
      %981 = vmatprep.subr.bf16.mxu0 0
      %982 = vmatpush1.bf16.msra.mxu0 0
      %983 = vmatprep.subr.bf16.mxu0 0
      %984 = vmatpush1.bf16.msra.mxu0 %v967
      %985 = vmatprep.subr.bf16.mxu0 0
      %986 = vmatpush2.bf16.msra.mxu0 0
      %987 = vmatprep.subr.bf16.mxu0 0
      %988 = vmatpush2.bf16.msra.mxu0 0
      %989 = vmatprep.subr.bf16.mxu0 0
      %990 = vmatpush2.bf16.msra.mxu0 0
      %991 = vmatprep.subr.bf16.mxu0 0
      %992 = vmatpush2.bf16.msra.mxu0 0
      %993 = vmatprep.subr.bf16.mxu0 0
      %994 = vmatpush2.bf16.msra.mxu0 0
      %995 = vmatprep.subr.bf16.mxu0 0
      %996 = vmatpush2.bf16.msra.mxu0 0
      %997 = vmatprep.subr.bf16.mxu0 0
      %998 = vmatpush2.bf16.msra.mxu0 0
      %999 = vmatprep.subr.bf16.mxu0 0
      %1000 = vmatpush2.bf16.msra.mxu0 0
      %1001 = vmatprep.mubr.bf16.mxu0 0
      %1002 = vmatmul.mubr.bf16.gmra.mxu0 %v964
      %v1003 = vpop.f32.mrf.mxu0
      %v1004 = vadd.f32 0.0, %v1003
      %v1005 = vpop.f32.mrf.mxu0
      %v1006 = vpop.f32.mrf.mxu0
      %v1007 = vpop.f32.mrf.mxu0
      %1008 = vdwg.mxu0
      %1009 = vrot.lane.b32.xlu0 %v677, 104
      %v1010 = vpop.permute.xlu0 %1009
      %1011 = vrot.lane.b32.xlu0 %v677, 72
      %v1012 = vpop.permute.xlu0 %1011
      %v1014 = vsel %vm681, %v1010, 0
      %v1017 = vsel %vm681, %v1012, 0
      %1019 = vmatprep.subr.bf16.mxu0 0
      %1020 = vmatpush1.bf16.xpose.msra.mxu0 0
      %1021 = vmatprep.subr.bf16.mxu0 0
      %1022 = vmatpush1.bf16.xpose.msra.mxu0 0
      %1023 = vmatprep.subr.bf16.mxu0 0
      %1024 = vmatpush1.bf16.xpose.msra.mxu0 0
      %1025 = vmatprep.subr.bf16.mxu0 0
      %1026 = vmatpush1.bf16.xpose.msra.mxu0 0
      %1027 = vmatprep.subr.bf16.mxu0 0
      %1028 = vmatpush1.bf16.xpose.msra.mxu0 0
      %1029 = vmatprep.subr.bf16.mxu0 0
      %1030 = vmatpush1.bf16.xpose.msra.mxu0 0
      %1031 = vmatprep.subr.bf16.mxu0 0
      %1032 = vmatpush1.bf16.xpose.msra.mxu0 0
      %1033 = vmatprep.subr.bf16.mxu0 0
      %1034 = vmatpush1.bf16.xpose.msra.mxu0 %v1017
      %1035 = vmatprep.subr.bf16.mxu0 0
      %1036 = vmatpush2.bf16.xpose.msra.mxu0 0
      %1037 = vmatprep.subr.bf16.mxu0 0
      %1038 = vmatpush2.bf16.xpose.msra.mxu0 0
      %1039 = vmatprep.subr.bf16.mxu0 0
      %1040 = vmatpush2.bf16.xpose.msra.mxu0 0
      %1041 = vmatprep.subr.bf16.mxu0 0
      %1042 = vmatpush2.bf16.xpose.msra.mxu0 0
      %1043 = vmatprep.subr.bf16.mxu0 0
      %1044 = vmatpush2.bf16.xpose.msra.mxu0 0
      %1045 = vmatprep.subr.bf16.mxu0 0
      %1046 = vmatpush2.bf16.xpose.msra.mxu0 0
      %1047 = vmatprep.subr.bf16.mxu0 0
      %1048 = vmatpush2.bf16.xpose.msra.mxu0 0
      %1049 = vmatprep.subr.bf16.mxu0 0
      %1050 = vmatpush2.bf16.xpose.msra.mxu0 0
      %1051 = vmatprep.mubr.bf16.mxu0 0
      %1052 = vmatmul.mubr.bf16.gmra.mxu0 %v1014
      %v1053 = vpop.f32.mrf.mxu0
      %v1054 = vadd.f32 0.0, %v1053
      %v1055 = vpop.f32.mrf.mxu0
      %v1056 = vpop.f32.mrf.mxu0
      %v1057 = vpop.f32.mrf.mxu0
      %1058 = vdwg.mxu0
      %v1059 = vsel %vm681, %v1054, -inf
      %1060 = vmax.xlane.f32.xlu0 %v1059
      %v1061 = vpop.xlane.xlu0 %1060
      %v1062 = vsub.f32 %v1054, %v1061
      %v1063 = vmul.f32 %v1062, 1.442695
      %v1064 = vpow.pop %v1063
      %v1065 = vsel %vm681, %v1064, 0.0
      %1066 = vadd.xlane.f32.xlu0 %v1065
      %v1067 = vpop.xlane.xlu0 %1066
      %v1068 = vrcp.pop %v1067
      %v1069 = vmul.f32 %v1064, %v1068
      %v1070 = vpack.c.bf16 %v1069, %v1069
      %1071 = vrot.lane.b32.xlu0 %v677, 40
      %v1072 = vpop.permute.xlu0 %1071
      %v1074 = vsel %vm681, %v1070, 0
      %v1077 = vsel %vm745, %v1072, 0
      %1079 = vmatprep.subr.bf16.mxu0 0
      %1080 = vmatpush1.bf16.msra.mxu0 0
      %1081 = vmatprep.subr.bf16.mxu0 0
      %1082 = vmatpush1.bf16.msra.mxu0 0
      %1083 = vmatprep.subr.bf16.mxu0 0
      %1084 = vmatpush1.bf16.msra.mxu0 0
      %1085 = vmatprep.subr.bf16.mxu0 0
      %1086 = vmatpush1.bf16.msra.mxu0 0
      %1087 = vmatprep.subr.bf16.mxu0 0
      %1088 = vmatpush1.bf16.msra.mxu0 0
      %1089 = vmatprep.subr.bf16.mxu0 0
      %1090 = vmatpush1.bf16.msra.mxu0 0
      %1091 = vmatprep.subr.bf16.mxu0 0
      %1092 = vmatpush1.bf16.msra.mxu0 0
      %1093 = vmatprep.subr.bf16.mxu0 0
      %1094 = vmatpush1.bf16.msra.mxu0 %v1077
      %1095 = vmatprep.subr.bf16.mxu0 0
      %1096 = vmatpush2.bf16.msra.mxu0 0
      %1097 = vmatprep.subr.bf16.mxu0 0
      %1098 = vmatpush2.bf16.msra.mxu0 0
      %1099 = vmatprep.subr.bf16.mxu0 0
      %1100 = vmatpush2.bf16.msra.mxu0 0
      %1101 = vmatprep.subr.bf16.mxu0 0
      %1102 = vmatpush2.bf16.msra.mxu0 0
      %1103 = vmatprep.subr.bf16.mxu0 0
      %1104 = vmatpush2.bf16.msra.mxu0 0
      %1105 = vmatprep.subr.bf16.mxu0 0
      %1106 = vmatpush2.bf16.msra.mxu0 0
      %1107 = vmatprep.subr.bf16.mxu0 0
      %1108 = vmatpush2.bf16.msra.mxu0 0
      %1109 = vmatprep.subr.bf16.mxu0 0
      %1110 = vmatpush2.bf16.msra.mxu0 0
      %1111 = vmatprep.mubr.bf16.mxu0 0
      %1112 = vmatmul.mubr.bf16.gmra.mxu0 %v1074
      %v1113 = vpop.f32.mrf.mxu0
      %v1114 = vadd.f32 0.0, %v1113
      %v1115 = vpop.f32.mrf.mxu0
      %v1116 = vpop.f32.mrf.mxu0
      %v1117 = vpop.f32.mrf.mxu0
      %1118 = vdwg.mxu0
      %1120 = vrot.lane.b32.xlu0 %v894, 8
      %v1121 = vpop.permute.xlu0 %1120
      %1124 = vrot.lane.b32.xlu0 %v1004, 16
      %v1125 = vpop.permute.xlu0 %1124
      %1128 = vrot.lane.b32.xlu0 %v1114, 24
      %v1129 = vpop.permute.xlu0 %1128
      %v1131 = vsel %vm681, %v784, %v1121
      %v1132 = vsel %vm564, %v1131, %v1125
      %vm1133 = vcmask 195584
      %v1134 = vsel %vm1133, %v1132, %v1129
      %v1135 = vld [vmem:[%s5] sm:$0xf]
      %v1136 = vld [vmem:[%s5 + $0x4] sm:$0xf]
      %v1137 = vld [vmem:[%s5 + $0x8] sm:$0xf]
      %v1138 = vld [vmem:[%s5 + $0xc] sm:$0xf]
      %v1139 = vpack.c.bf16 %v1134, %v1134
      %v1140 = vld [vmem:[%s6] sm:$0x1]
      %v1142 = vlaneseq
      %v1143 = vshrl.u32 %v1142, 7
      %v1144 = vsub.s32 0, %v1143
      %v1145 = vrot.slane %v1140, %v1144
      %v1151 = vunpack.c.l.b16 %v1135
      %v1152 = vunpack.c.l.b16 %v1136
      %v1153 = vunpack.c.l.b16 %v1137
      %v1154 = vunpack.c.l.b16 %v1138
      %v1155 = vpack.c.b16 %v1152, %v1151
      %v1156 = vpack.c.b16 %v1154, %v1153
      %v1160 = vsel %vm633, %v1139, 0
      %1162 = vmatprep.subr.bf16.mxu0 0
      %1163 = vmatpush1.bf16.msra.mxu0 0
      %1164 = vmatprep.subr.bf16.mxu0 0
      %1165 = vmatpush1.bf16.msra.mxu0 0
      %1166 = vmatprep.subr.bf16.mxu0 0
      %1167 = vmatpush1.bf16.msra.mxu0 0
      %1168 = vmatprep.subr.bf16.mxu0 0
      %1169 = vmatpush1.bf16.msra.mxu0 0
      %1170 = vmatprep.subr.bf16.mxu0 0
      %1171 = vmatpush1.bf16.msra.mxu0 0
      %1172 = vmatprep.subr.bf16.mxu0 0
      %1173 = vmatpush1.bf16.msra.mxu0 0
      %1174 = vmatprep.subr.bf16.mxu0 0
      %1175 = vmatpush1.bf16.msra.mxu0 %v1156
      %1176 = vmatprep.subr.bf16.mxu0 0
      %1177 = vmatpush1.bf16.msra.mxu0 %v1155
      %1178 = vmatprep.subr.bf16.mxu0 0
      %1179 = vmatpush2.bf16.msra.mxu0 0
      %1180 = vmatprep.subr.bf16.mxu0 0
      %1181 = vmatpush2.bf16.msra.mxu0 0
      %1182 = vmatprep.subr.bf16.mxu0 0
      %1183 = vmatpush2.bf16.msra.mxu0 0
      %1184 = vmatprep.subr.bf16.mxu0 0
      %1185 = vmatpush2.bf16.msra.mxu0 0
      %1186 = vmatprep.subr.bf16.mxu0 0
      %1187 = vmatpush2.bf16.msra.mxu0 0
      %1188 = vmatprep.subr.bf16.mxu0 0
      %1189 = vmatpush2.bf16.msra.mxu0 0
      %1190 = vmatprep.subr.bf16.mxu0 0
      %1191 = vmatpush2.bf16.msra.mxu0 0
      %1192 = vmatprep.subr.bf16.mxu0 0
      %1193 = vmatpush2.bf16.msra.mxu0 0
      %1194 = vmatprep.mubr.bf16.mxu0 0
      %1195 = vmatmul.mubr.bf16.gmra.mxu0 %v1160
      %v1196 = vpop.f32.mrf.mxu0
      %v1197 = vadd.f32 %v1145, %v1196
      %v1198 = vpop.f32.mrf.mxu0
      %v1199 = vpop.f32.mrf.mxu0
      %v1200 = vpop.f32.mrf.mxu0
      %1201 = vdwg.mxu0
      %v1202 = vadd.f32 %v608, %v1197
      %v1203 = vld [vmem:[%s7] sm:$0x1]
      %v1204 = vld [vmem:[%s8] sm:$0x1]
      %v1205 = vsel %vm633, %v1202, 0.0
      %1206 = vadd.xlane.f32.xlu0 %v1205
      %v1207 = vpop.xlane.xlu0 %1206
      %v1208 = vrcp.pop 32.0
      %v1209 = vmul.f32 %v1207, %v1208
      %v1210 = vsub.f32 %v1202, %v1209
      %v1211 = vmul.f32 %v1210, %v1210
      %v1212 = vsel %vm633, %v1211, 0.0
      %1213 = vadd.xlane.f32.xlu0 %v1212
      %v1214 = vpop.xlane.xlu0 %1213
      %v1215 = vmul.f32 %v1214, %v1208
      %v1216 = vadd.f32 %v1215, 1e-05
      %v1217 = vrsqrt.pop %v1216
      %v1218 = vmul.f32 %v1210, %v1217
      %v1220 = vlaneseq
      %v1221 = vshrl.u32 %v1220, 7
      %v1222 = vsub.s32 0, %v1221
      %v1223 = vrot.slane %v1203, %v1222
      %v1225 = vmul.f32 %v1218, %v1223
      %v1227 = vlaneseq
      %v1228 = vshrl.u32 %v1227, 7
      %v1229 = vsub.s32 0, %v1228
      %v1230 = vrot.slane %v1204, %v1229
      %v1232 = vadd.f32 %v1225, %v1230
      %v1233 = vld [vmem:[%s9] sm:$0xf]
      %v1234 = vld [vmem:[%s9 + $0x4] sm:$0xf]
      %v1235 = vld [vmem:[%s9 + $0x8] sm:$0xf]
      %v1236 = vld [vmem:[%s9 + $0xc] sm:$0xf]
      %v1237 = vpack.c.bf16 %v1232, %v1232
      %v1238 = vld [vmem:[%s10] sm:$0x1]
      %v1240 = vlaneseq
      %v1241 = vshrl.u32 %v1240, 7
      %v1242 = vsub.s32 0, %v1241
      %v1243 = vrot.slane %v1238, %v1242
      %v1249 = vunpack.c.l.b16 %v1233
      %v1250 = vunpack.c.l.b16 %v1234
      %v1251 = vunpack.c.l.b16 %v1235
      %v1252 = vunpack.c.l.b16 %v1236
      %v1253 = vpack.c.b16 %v1250, %v1249
      %v1254 = vpack.c.b16 %v1252, %v1251
      %v1258 = vsel %vm633, %v1237, 0
      %1260 = vmatprep.subr.bf16.mxu0 0
      %1261 = vmatpush1.bf16.msra.mxu0 0
      %1262 = vmatprep.subr.bf16.mxu0 0
      %1263 = vmatpush1.bf16.msra.mxu0 0
      %1264 = vmatprep.subr.bf16.mxu0 0
      %1265 = vmatpush1.bf16.msra.mxu0 0
      %1266 = vmatprep.subr.bf16.mxu0 0
      %1267 = vmatpush1.bf16.msra.mxu0 0
      %1268 = vmatprep.subr.bf16.mxu0 0
      %1269 = vmatpush1.bf16.msra.mxu0 0
      %1270 = vmatprep.subr.bf16.mxu0 0
      %1271 = vmatpush1.bf16.msra.mxu0 0
      %1272 = vmatprep.subr.bf16.mxu0 0
      %1273 = vmatpush1.bf16.msra.mxu0 %v1254
      %1274 = vmatprep.subr.bf16.mxu0 0
      %1275 = vmatpush1.bf16.msra.mxu0 %v1253
      %1276 = vmatprep.subr.bf16.mxu0 0
      %1277 = vmatpush2.bf16.msra.mxu0 0
      %1278 = vmatprep.subr.bf16.mxu0 0
      %1279 = vmatpush2.bf16.msra.mxu0 0
      %1280 = vmatprep.subr.bf16.mxu0 0
      %1281 = vmatpush2.bf16.msra.mxu0 0
      %1282 = vmatprep.subr.bf16.mxu0 0
      %1283 = vmatpush2.bf16.msra.mxu0 0
      %1284 = vmatprep.subr.bf16.mxu0 0
      %1285 = vmatpush2.bf16.msra.mxu0 0
      %1286 = vmatprep.subr.bf16.mxu0 0
      %1287 = vmatpush2.bf16.msra.mxu0 0
      %1288 = vmatprep.subr.bf16.mxu0 0
      %1289 = vmatpush2.bf16.msra.mxu0 0
      %1290 = vmatprep.subr.bf16.mxu0 0
      %1291 = vmatpush2.bf16.msra.mxu0 0
      %1292 = vmatprep.mubr.bf16.mxu0 0
      %1293 = vmatmul.mubr.bf16.gmra.mxu0 %v1258
      %v1294 = vpop.f32.mrf.mxu0
      %v1295 = vadd.f32 %v1243, %v1294
      %v1296 = vpop.f32.mrf.mxu0
      %v1297 = vpop.f32.mrf.mxu0
      %v1298 = vpop.f32.mrf.mxu0
      %1299 = vdwg.mxu0
      %v1300 = vmax.f32 %v1295, 0.0
      %v1301 = vld [vmem:[%s11] sm:$0xf]
      %v1302 = vld [vmem:[%s11 + $0x4] sm:$0xf]
      %v1303 = vld [vmem:[%s11 + $0x8] sm:$0xf]
      %v1304 = vld [vmem:[%s11 + $0xc] sm:$0xf]
      %v1305 = vld [vmem:[%s11 + $0x10] sm:$0xf]
      %v1306 = vld [vmem:[%s11 + $0x14] sm:$0xf]
      %v1307 = vld [vmem:[%s11 + $0x18] sm:$0xf]
      %v1308 = vld [vmem:[%s11 + $0x1c] sm:$0xf]
      %v1309 = vld [vmem:[%s11 + $0x20] sm:$0xf]
      %v1310 = vld [vmem:[%s11 + $0x24] sm:$0xf]
      %v1311 = vld [vmem:[%s11 + $0x28] sm:$0xf]
      %v1312 = vld [vmem:[%s11 + $0x2c] sm:$0xf]
      %v1313 = vld [vmem:[%s11 + $0x30] sm:$0xf]
      %v1314 = vld [vmem:[%s11 + $0x34] sm:$0xf]
      %v1315 = vld [vmem:[%s11 + $0x38] sm:$0xf]
      %v1316 = vld [vmem:[%s11 + $0x3c] sm:$0xf]
      %v1317 = vpack.c.bf16 %v1300, %v1300
      %v1318 = vld [vmem:[%s12] sm:$0x1]
      %v1320 = vlaneseq
      %v1321 = vshrl.u32 %v1320, 7
      %v1322 = vsub.s32 0, %v1321
      %v1323 = vrot.slane %v1318, %v1322
      %v1341 = vunpack.c.l.b16 %v1301
      %v1342 = vunpack.c.l.b16 %v1302
      %v1343 = vunpack.c.l.b16 %v1303
      %v1344 = vunpack.c.l.b16 %v1304
      %v1345 = vunpack.c.l.b16 %v1305
      %v1346 = vunpack.c.l.b16 %v1306
      %v1347 = vunpack.c.l.b16 %v1307
      %v1348 = vunpack.c.l.b16 %v1308
      %v1349 = vunpack.c.l.b16 %v1309
      %v1350 = vunpack.c.l.b16 %v1310
      %v1351 = vunpack.c.l.b16 %v1311
      %v1352 = vunpack.c.l.b16 %v1312
      %v1353 = vunpack.c.l.b16 %v1313
      %v1354 = vunpack.c.l.b16 %v1314
      %v1355 = vunpack.c.l.b16 %v1315
      %v1356 = vunpack.c.l.b16 %v1316
      %v1357 = vpack.c.b16 %v1342, %v1341
      %v1358 = vpack.c.b16 %v1344, %v1343
      %v1359 = vpack.c.b16 %v1346, %v1345
      %v1360 = vpack.c.b16 %v1348, %v1347
      %v1361 = vpack.c.b16 %v1350, %v1349
      %v1362 = vpack.c.b16 %v1352, %v1351
      %v1363 = vpack.c.b16 %v1354, %v1353
      %v1364 = vpack.c.b16 %v1356, %v1355
      %1373 = vmatprep.subr.bf16.mxu0 0
      %1374 = vmatpush1.bf16.msra.mxu0 %v1364
      %1375 = vmatprep.subr.bf16.mxu0 0
      %1376 = vmatpush1.bf16.msra.mxu0 %v1363
      %1377 = vmatprep.subr.bf16.mxu0 0
      %1378 = vmatpush1.bf16.msra.mxu0 %v1362
      %1379 = vmatprep.subr.bf16.mxu0 0
      %1380 = vmatpush1.bf16.msra.mxu0 %v1361
      %1381 = vmatprep.subr.bf16.mxu0 0
      %1382 = vmatpush1.bf16.msra.mxu0 %v1360
      %1383 = vmatprep.subr.bf16.mxu0 0
      %1384 = vmatpush1.bf16.msra.mxu0 %v1359
      %1385 = vmatprep.subr.bf16.mxu0 0
      %1386 = vmatpush1.bf16.msra.mxu0 %v1358
      %1387 = vmatprep.subr.bf16.mxu0 0
      %1388 = vmatpush1.bf16.msra.mxu0 %v1357
      %1389 = vmatprep.subr.bf16.mxu0 0
      %1390 = vmatpush2.bf16.msra.mxu0 0
      %1391 = vmatprep.subr.bf16.mxu0 0
      %1392 = vmatpush2.bf16.msra.mxu0 0
      %1393 = vmatprep.subr.bf16.mxu0 0
      %1394 = vmatpush2.bf16.msra.mxu0 0
      %1395 = vmatprep.subr.bf16.mxu0 0
      %1396 = vmatpush2.bf16.msra.mxu0 0
      %1397 = vmatprep.subr.bf16.mxu0 0
      %1398 = vmatpush2.bf16.msra.mxu0 0
      %1399 = vmatprep.subr.bf16.mxu0 0
      %1400 = vmatpush2.bf16.msra.mxu0 0
      %1401 = vmatprep.subr.bf16.mxu0 0
      %1402 = vmatpush2.bf16.msra.mxu0 0
      %1403 = vmatprep.subr.bf16.mxu0 0
      %1404 = vmatpush2.bf16.msra.mxu0 0
      %1405 = vmatprep.mubr.bf16.mxu0 0
      %1406 = vmatmul.mubr.bf16.gmra.mxu0 %v1317
      %v1407 = vpop.f32.mrf.mxu0
      %v1408 = vadd.f32 %v1323, %v1407
      %v1409 = vpop.f32.mrf.mxu0
      %v1410 = vpop.f32.mrf.mxu0
      %v1411 = vpop.f32.mrf.mxu0
      %1412 = vdwg.mxu0
      %v1413 = vadd.f32 %v1232, %v1408
      %v1414 = vld [vmem:[%s13] sm:$0x1]
      %v1415 = vld [vmem:[%s14] sm:$0x1]
      %v1416 = vsel %vm633, %v1413, 0.0
      %1417 = vadd.xlane.f32.xlu0 %v1416
      %v1418 = vpop.xlane.xlu0 %1417
      %v1419 = vmul.f32 %v1418, %v1208
      %v1420 = vsub.f32 %v1413, %v1419
      %v1421 = vmul.f32 %v1420, %v1420
      %v1422 = vsel %vm633, %v1421, 0.0
      %1423 = vadd.xlane.f32.xlu0 %v1422
      %v1424 = vpop.xlane.xlu0 %1423
      %v1425 = vmul.f32 %v1424, %v1208
      %v1426 = vadd.f32 %v1425, 1e-05
      %v1427 = vrsqrt.pop %v1426
      %v1428 = vmul.f32 %v1420, %v1427
      %v1430 = vlaneseq
      %v1431 = vshrl.u32 %v1430, 7
      %v1432 = vsub.s32 0, %v1431
      %v1433 = vrot.slane %v1414, %v1432
      %v1435 = vmul.f32 %v1428, %v1433
      %v1437 = vlaneseq
      %v1438 = vshrl.u32 %v1437, 7
      %v1439 = vsub.s32 0, %v1438
      %v1440 = vrot.slane %v1415, %v1439
      %v1442 = vadd.f32 %v1435, %v1440
      %s1443 = scalar_lea.vmem %s3, 16
      %v1444 = vld [vmem:[%s1443] sm:$0xf]
      %v1445 = vld [vmem:[%s1443 + $0x4] sm:$0xf]
      %v1446 = vld [vmem:[%s1443 + $0x8] sm:$0xf]
      %v1447 = vld [vmem:[%s1443 + $0xc] sm:$0xf]
      %v1448 = vpack.c.bf16 %v1442, %v1442
      %s1449 = scalar_lea.vmem %s4, 1
      %v1450 = vld [vmem:[%s1449] sm:$0x1]
      %v1452 = vlaneseq
      %v1453 = vshrl.u32 %v1452, 7
      %v1454 = vsub.s32 0, %v1453
      %v1455 = vrot.slane %v1450, %v1454
      %v1461 = vunpack.c.l.b16 %v1444
      %v1462 = vunpack.c.l.b16 %v1445
      %v1463 = vunpack.c.l.b16 %v1446
      %v1464 = vunpack.c.l.b16 %v1447
      %v1465 = vpack.c.b16 %v1462, %v1461
      %v1466 = vpack.c.b16 %v1464, %v1463
      %v1470 = vsel %vm633, %v1448, 0
      %1472 = vmatprep.subr.bf16.mxu0 0
      %1473 = vmatpush1.bf16.msra.mxu0 0
      %1474 = vmatprep.subr.bf16.mxu0 0
      %1475 = vmatpush1.bf16.msra.mxu0 0
      %1476 = vmatprep.subr.bf16.mxu0 0
      %1477 = vmatpush1.bf16.msra.mxu0 0
      %1478 = vmatprep.subr.bf16.mxu0 0
      %1479 = vmatpush1.bf16.msra.mxu0 0
      %1480 = vmatprep.subr.bf16.mxu0 0
      %1481 = vmatpush1.bf16.msra.mxu0 0
      %1482 = vmatprep.subr.bf16.mxu0 0
      %1483 = vmatpush1.bf16.msra.mxu0 0
      %1484 = vmatprep.subr.bf16.mxu0 0
      %1485 = vmatpush1.bf16.msra.mxu0 %v1466
      %1486 = vmatprep.subr.bf16.mxu0 0
      %1487 = vmatpush1.bf16.msra.mxu0 %v1465
      %1488 = vmatprep.subr.bf16.mxu0 0
      %1489 = vmatpush2.bf16.msra.mxu0 0
      %1490 = vmatprep.subr.bf16.mxu0 0
      %1491 = vmatpush2.bf16.msra.mxu0 0
      %1492 = vmatprep.subr.bf16.mxu0 0
      %1493 = vmatpush2.bf16.msra.mxu0 0
      %1494 = vmatprep.subr.bf16.mxu0 0
      %1495 = vmatpush2.bf16.msra.mxu0 0
      %1496 = vmatprep.subr.bf16.mxu0 0
      %1497 = vmatpush2.bf16.msra.mxu0 0
      %1498 = vmatprep.subr.bf16.mxu0 0
      %1499 = vmatpush2.bf16.msra.mxu0 0
      %1500 = vmatprep.subr.bf16.mxu0 0
      %1501 = vmatpush2.bf16.msra.mxu0 0
      %1502 = vmatprep.subr.bf16.mxu0 0
      %1503 = vmatpush2.bf16.msra.mxu0 0
      %1504 = vmatprep.mubr.bf16.mxu0 0
      %1505 = vmatmul.mubr.bf16.gmra.mxu0 %v1470
      %v1506 = vpop.f32.mrf.mxu0
      %v1507 = vadd.f32 %v1455, %v1506
      %v1508 = vpop.f32.mrf.mxu0
      %v1509 = vpop.f32.mrf.mxu0
      %v1510 = vpop.f32.mrf.mxu0
      %1511 = vdwg.mxu0
      %v1512 = vpack.c.bf16 %v1507, %v1507
      %1514 = vrot.lane.b32.xlu0 %v1512, 96
      %v1515 = vpop.permute.xlu0 %1514
      %v1517 = vsel %vm681, %v1512, 0
      %v1520 = vsel %vm681, %v1515, 0
      %1522 = vmatprep.subr.bf16.mxu0 0
      %1523 = vmatpush1.bf16.xpose.msra.mxu0 0
      %1524 = vmatprep.subr.bf16.mxu0 0
      %1525 = vmatpush1.bf16.xpose.msra.mxu0 0
      %1526 = vmatprep.subr.bf16.mxu0 0
      %1527 = vmatpush1.bf16.xpose.msra.mxu0 0
      %1528 = vmatprep.subr.bf16.mxu0 0
      %1529 = vmatpush1.bf16.xpose.msra.mxu0 0
      %1530 = vmatprep.subr.bf16.mxu0 0
      %1531 = vmatpush1.bf16.xpose.msra.mxu0 0
      %1532 = vmatprep.subr.bf16.mxu0 0
      %1533 = vmatpush1.bf16.xpose.msra.mxu0 0
      %1534 = vmatprep.subr.bf16.mxu0 0
      %1535 = vmatpush1.bf16.xpose.msra.mxu0 0
      %1536 = vmatprep.subr.bf16.mxu0 0
      %1537 = vmatpush1.bf16.xpose.msra.mxu0 %v1520
      %1538 = vmatprep.subr.bf16.mxu0 0
      %1539 = vmatpush2.bf16.xpose.msra.mxu0 0
      %1540 = vmatprep.subr.bf16.mxu0 0
      %1541 = vmatpush2.bf16.xpose.msra.mxu0 0
      %1542 = vmatprep.subr.bf16.mxu0 0
      %1543 = vmatpush2.bf16.xpose.msra.mxu0 0
      %1544 = vmatprep.subr.bf16.mxu0 0
      %1545 = vmatpush2.bf16.xpose.msra.mxu0 0
      %1546 = vmatprep.subr.bf16.mxu0 0
      %1547 = vmatpush2.bf16.xpose.msra.mxu0 0
      %1548 = vmatprep.subr.bf16.mxu0 0
      %1549 = vmatpush2.bf16.xpose.msra.mxu0 0
      %1550 = vmatprep.subr.bf16.mxu0 0
      %1551 = vmatpush2.bf16.xpose.msra.mxu0 0
      %1552 = vmatprep.subr.bf16.mxu0 0
      %1553 = vmatpush2.bf16.xpose.msra.mxu0 0
      %1554 = vmatprep.mubr.bf16.mxu0 0
      %1555 = vmatmul.mubr.bf16.gmra.mxu0 %v1517
      %v1556 = vpop.f32.mrf.mxu0
      %v1557 = vadd.f32 0.0, %v1556
      %v1558 = vpop.f32.mrf.mxu0
      %v1559 = vpop.f32.mrf.mxu0
      %v1560 = vpop.f32.mrf.mxu0
      %1561 = vdwg.mxu0
      %v1562 = vsel %vm681, %v1557, -inf
      %1563 = vmax.xlane.f32.xlu0 %v1562
      %v1564 = vpop.xlane.xlu0 %1563
      %v1565 = vsub.f32 %v1557, %v1564
      %v1566 = vmul.f32 %v1565, 1.442695
      %v1567 = vpow.pop %v1566
      %v1568 = vsel %vm681, %v1567, 0.0
      %1569 = vadd.xlane.f32.xlu0 %v1568
      %v1570 = vpop.xlane.xlu0 %1569
      %v1571 = vrcp.pop %v1570
      %v1572 = vmul.f32 %v1567, %v1571
      %v1573 = vpack.c.bf16 %v1572, %v1572
      %1574 = vrot.lane.b32.xlu0 %v1512, 64
      %v1575 = vpop.permute.xlu0 %1574
      %v1577 = vsel %vm681, %v1573, 0
      %v1580 = vsel %vm745, %v1575, 0
      %1582 = vmatprep.subr.bf16.mxu0 0
      %1583 = vmatpush1.bf16.msra.mxu0 0
      %1584 = vmatprep.subr.bf16.mxu0 0
      %1585 = vmatpush1.bf16.msra.mxu0 0
      %1586 = vmatprep.subr.bf16.mxu0 0
      %1587 = vmatpush1.bf16.msra.mxu0 0
      %1588 = vmatprep.subr.bf16.mxu0 0
      %1589 = vmatpush1.bf16.msra.mxu0 0
      %1590 = vmatprep.subr.bf16.mxu0 0
      %1591 = vmatpush1.bf16.msra.mxu0 0
      %1592 = vmatprep.subr.bf16.mxu0 0
      %1593 = vmatpush1.bf16.msra.mxu0 0
      %1594 = vmatprep.subr.bf16.mxu0 0
      %1595 = vmatpush1.bf16.msra.mxu0 0
      %1596 = vmatprep.subr.bf16.mxu0 0
      %1597 = vmatpush1.bf16.msra.mxu0 %v1580
      %1598 = vmatprep.subr.bf16.mxu0 0
      %1599 = vmatpush2.bf16.msra.mxu0 0
      %1600 = vmatprep.subr.bf16.mxu0 0
      %1601 = vmatpush2.bf16.msra.mxu0 0
      %1602 = vmatprep.subr.bf16.mxu0 0
      %1603 = vmatpush2.bf16.msra.mxu0 0
      %1604 = vmatprep.subr.bf16.mxu0 0
      %1605 = vmatpush2.bf16.msra.mxu0 0
      %1606 = vmatprep.subr.bf16.mxu0 0
      %1607 = vmatpush2.bf16.msra.mxu0 0
      %1608 = vmatprep.subr.bf16.mxu0 0
      %1609 = vmatpush2.bf16.msra.mxu0 0
      %1610 = vmatprep.subr.bf16.mxu0 0
      %1611 = vmatpush2.bf16.msra.mxu0 0
      %1612 = vmatprep.subr.bf16.mxu0 0
      %1613 = vmatpush2.bf16.msra.mxu0 0
      %1614 = vmatprep.mubr.bf16.mxu0 0
      %1615 = vmatmul.mubr.bf16.gmra.mxu0 %v1577
      %v1616 = vpop.f32.mrf.mxu0
      %v1617 = vadd.f32 0.0, %v1616
      %v1618 = vpop.f32.mrf.mxu0
      %v1619 = vpop.f32.mrf.mxu0
      %v1620 = vpop.f32.mrf.mxu0
      %1621 = vdwg.mxu0
      %1622 = vrot.lane.b32.xlu0 %v1512, 120
      %v1623 = vpop.permute.xlu0 %1622
      %1624 = vrot.lane.b32.xlu0 %v1512, 88
      %v1625 = vpop.permute.xlu0 %1624
      %v1627 = vsel %vm681, %v1623, 0
      %v1630 = vsel %vm681, %v1625, 0
      %1632 = vmatprep.subr.bf16.mxu0 0
      %1633 = vmatpush1.bf16.xpose.msra.mxu0 0
      %1634 = vmatprep.subr.bf16.mxu0 0
      %1635 = vmatpush1.bf16.xpose.msra.mxu0 0
      %1636 = vmatprep.subr.bf16.mxu0 0
      %1637 = vmatpush1.bf16.xpose.msra.mxu0 0
      %1638 = vmatprep.subr.bf16.mxu0 0
      %1639 = vmatpush1.bf16.xpose.msra.mxu0 0
      %1640 = vmatprep.subr.bf16.mxu0 0
      %1641 = vmatpush1.bf16.xpose.msra.mxu0 0
      %1642 = vmatprep.subr.bf16.mxu0 0
      %1643 = vmatpush1.bf16.xpose.msra.mxu0 0
      %1644 = vmatprep.subr.bf16.mxu0 0
      %1645 = vmatpush1.bf16.xpose.msra.mxu0 0
      %1646 = vmatprep.subr.bf16.mxu0 0
      %1647 = vmatpush1.bf16.xpose.msra.mxu0 %v1630
      %1648 = vmatprep.subr.bf16.mxu0 0
      %1649 = vmatpush2.bf16.xpose.msra.mxu0 0
      %1650 = vmatprep.subr.bf16.mxu0 0
      %1651 = vmatpush2.bf16.xpose.msra.mxu0 0
      %1652 = vmatprep.subr.bf16.mxu0 0
      %1653 = vmatpush2.bf16.xpose.msra.mxu0 0
      %1654 = vmatprep.subr.bf16.mxu0 0
      %1655 = vmatpush2.bf16.xpose.msra.mxu0 0
      %1656 = vmatprep.subr.bf16.mxu0 0
      %1657 = vmatpush2.bf16.xpose.msra.mxu0 0
      %1658 = vmatprep.subr.bf16.mxu0 0
      %1659 = vmatpush2.bf16.xpose.msra.mxu0 0
      %1660 = vmatprep.subr.bf16.mxu0 0
      %1661 = vmatpush2.bf16.xpose.msra.mxu0 0
      %1662 = vmatprep.subr.bf16.mxu0 0
      %1663 = vmatpush2.bf16.xpose.msra.mxu0 0
      %1664 = vmatprep.mubr.bf16.mxu0 0
      %1665 = vmatmul.mubr.bf16.gmra.mxu0 %v1627
      %v1666 = vpop.f32.mrf.mxu0
      %v1667 = vadd.f32 0.0, %v1666
      %v1668 = vpop.f32.mrf.mxu0
      %v1669 = vpop.f32.mrf.mxu0
      %v1670 = vpop.f32.mrf.mxu0
      %1671 = vdwg.mxu0
      %v1672 = vsel %vm681, %v1667, -inf
      %1673 = vmax.xlane.f32.xlu0 %v1672
      %v1674 = vpop.xlane.xlu0 %1673
      %v1675 = vsub.f32 %v1667, %v1674
      %v1676 = vmul.f32 %v1675, 1.442695
      %v1677 = vpow.pop %v1676
      %v1678 = vsel %vm681, %v1677, 0.0
      %1679 = vadd.xlane.f32.xlu0 %v1678
      %v1680 = vpop.xlane.xlu0 %1679
      %v1681 = vrcp.pop %v1680
      %v1682 = vmul.f32 %v1677, %v1681
      %v1683 = vpack.c.bf16 %v1682, %v1682
      %1684 = vrot.lane.b32.xlu0 %v1512, 56
      %v1685 = vpop.permute.xlu0 %1684
      %v1687 = vsel %vm681, %v1683, 0
      %v1690 = vsel %vm745, %v1685, 0
      %1692 = vmatprep.subr.bf16.mxu0 0
      %1693 = vmatpush1.bf16.msra.mxu0 0
      %1694 = vmatprep.subr.bf16.mxu0 0
      %1695 = vmatpush1.bf16.msra.mxu0 0
      %1696 = vmatprep.subr.bf16.mxu0 0
      %1697 = vmatpush1.bf16.msra.mxu0 0
      %1698 = vmatprep.subr.bf16.mxu0 0
      %1699 = vmatpush1.bf16.msra.mxu0 0
      %1700 = vmatprep.subr.bf16.mxu0 0
      %1701 = vmatpush1.bf16.msra.mxu0 0
      %1702 = vmatprep.subr.bf16.mxu0 0
      %1703 = vmatpush1.bf16.msra.mxu0 0
      %1704 = vmatprep.subr.bf16.mxu0 0
      %1705 = vmatpush1.bf16.msra.mxu0 0
      %1706 = vmatprep.subr.bf16.mxu0 0
      %1707 = vmatpush1.bf16.msra.mxu0 %v1690
      %1708 = vmatprep.subr.bf16.mxu0 0
      %1709 = vmatpush2.bf16.msra.mxu0 0
      %1710 = vmatprep.subr.bf16.mxu0 0
      %1711 = vmatpush2.bf16.msra.mxu0 0
      %1712 = vmatprep.subr.bf16.mxu0 0
      %1713 = vmatpush2.bf16.msra.mxu0 0
      %1714 = vmatprep.subr.bf16.mxu0 0
      %1715 = vmatpush2.bf16.msra.mxu0 0
      %1716 = vmatprep.subr.bf16.mxu0 0
      %1717 = vmatpush2.bf16.msra.mxu0 0
      %1718 = vmatprep.subr.bf16.mxu0 0
      %1719 = vmatpush2.bf16.msra.mxu0 0
      %1720 = vmatprep.subr.bf16.mxu0 0
      %1721 = vmatpush2.bf16.msra.mxu0 0
      %1722 = vmatprep.subr.bf16.mxu0 0
      %1723 = vmatpush2.bf16.msra.mxu0 0
      %1724 = vmatprep.mubr.bf16.mxu0 0
      %1725 = vmatmul.mubr.bf16.gmra.mxu0 %v1687
      %v1726 = vpop.f32.mrf.mxu0
      %v1727 = vadd.f32 0.0, %v1726
      %v1728 = vpop.f32.mrf.mxu0
      %v1729 = vpop.f32.mrf.mxu0
      %v1730 = vpop.f32.mrf.mxu0
      %1731 = vdwg.mxu0
      %1732 = vrot.lane.b32.xlu0 %v1512, 112
      %v1733 = vpop.permute.xlu0 %1732
      %1734 = vrot.lane.b32.xlu0 %v1512, 80
      %v1735 = vpop.permute.xlu0 %1734
      %v1737 = vsel %vm681, %v1733, 0
      %v1740 = vsel %vm681, %v1735, 0
      %1742 = vmatprep.subr.bf16.mxu0 0
      %1743 = vmatpush1.bf16.xpose.msra.mxu0 0
      %1744 = vmatprep.subr.bf16.mxu0 0
      %1745 = vmatpush1.bf16.xpose.msra.mxu0 0
      %1746 = vmatprep.subr.bf16.mxu0 0
      %1747 = vmatpush1.bf16.xpose.msra.mxu0 0
      %1748 = vmatprep.subr.bf16.mxu0 0
      %1749 = vmatpush1.bf16.xpose.msra.mxu0 0
      %1750 = vmatprep.subr.bf16.mxu0 0
      %1751 = vmatpush1.bf16.xpose.msra.mxu0 0
      %1752 = vmatprep.subr.bf16.mxu0 0
      %1753 = vmatpush1.bf16.xpose.msra.mxu0 0
      %1754 = vmatprep.subr.bf16.mxu0 0
      %1755 = vmatpush1.bf16.xpose.msra.mxu0 0
      %1756 = vmatprep.subr.bf16.mxu0 0
      %1757 = vmatpush1.bf16.xpose.msra.mxu0 %v1740
      %1758 = vmatprep.subr.bf16.mxu0 0
      %1759 = vmatpush2.bf16.xpose.msra.mxu0 0
      %1760 = vmatprep.subr.bf16.mxu0 0
      %1761 = vmatpush2.bf16.xpose.msra.mxu0 0
      %1762 = vmatprep.subr.bf16.mxu0 0
      %1763 = vmatpush2.bf16.xpose.msra.mxu0 0
      %1764 = vmatprep.subr.bf16.mxu0 0
      %1765 = vmatpush2.bf16.xpose.msra.mxu0 0
      %1766 = vmatprep.subr.bf16.mxu0 0
      %1767 = vmatpush2.bf16.xpose.msra.mxu0 0
      %1768 = vmatprep.subr.bf16.mxu0 0
      %1769 = vmatpush2.bf16.xpose.msra.mxu0 0
      %1770 = vmatprep.subr.bf16.mxu0 0
      %1771 = vmatpush2.bf16.xpose.msra.mxu0 0
      %1772 = vmatprep.subr.bf16.mxu0 0
      %1773 = vmatpush2.bf16.xpose.msra.mxu0 0
      %1774 = vmatprep.mubr.bf16.mxu0 0
      %1775 = vmatmul.mubr.bf16.gmra.mxu0 %v1737
      %v1776 = vpop.f32.mrf.mxu0
      %v1777 = vadd.f32 0.0, %v1776
      %v1778 = vpop.f32.mrf.mxu0
      %v1779 = vpop.f32.mrf.mxu0
      %v1780 = vpop.f32.mrf.mxu0
      %1781 = vdwg.mxu0
      %v1782 = vsel %vm681, %v1777, -inf
      %1783 = vmax.xlane.f32.xlu0 %v1782
      %v1784 = vpop.xlane.xlu0 %1783
      %v1785 = vsub.f32 %v1777, %v1784
      %v1786 = vmul.f32 %v1785, 1.442695
      %v1787 = vpow.pop %v1786
      %v1788 = vsel %vm681, %v1787, 0.0
      %1789 = vadd.xlane.f32.xlu0 %v1788
      %v1790 = vpop.xlane.xlu0 %1789
      %v1791 = vrcp.pop %v1790
      %v1792 = vmul.f32 %v1787, %v1791
      %v1793 = vpack.c.bf16 %v1792, %v1792
      %1794 = vrot.lane.b32.xlu0 %v1512, 48
      %v1795 = vpop.permute.xlu0 %1794
      %v1797 = vsel %vm681, %v1793, 0
      %v1800 = vsel %vm745, %v1795, 0
      %1802 = vmatprep.subr.bf16.mxu0 0
      %1803 = vmatpush1.bf16.msra.mxu0 0
      %1804 = vmatprep.subr.bf16.mxu0 0
      %1805 = vmatpush1.bf16.msra.mxu0 0
      %1806 = vmatprep.subr.bf16.mxu0 0
      %1807 = vmatpush1.bf16.msra.mxu0 0
      %1808 = vmatprep.subr.bf16.mxu0 0
      %1809 = vmatpush1.bf16.msra.mxu0 0
      %1810 = vmatprep.subr.bf16.mxu0 0
      %1811 = vmatpush1.bf16.msra.mxu0 0
      %1812 = vmatprep.subr.bf16.mxu0 0
      %1813 = vmatpush1.bf16.msra.mxu0 0
      %1814 = vmatprep.subr.bf16.mxu0 0
      %1815 = vmatpush1.bf16.msra.mxu0 0
      %1816 = vmatprep.subr.bf16.mxu0 0
      %1817 = vmatpush1.bf16.msra.mxu0 %v1800
      %1818 = vmatprep.subr.bf16.mxu0 0
      %1819 = vmatpush2.bf16.msra.mxu0 0
      %1820 = vmatprep.subr.bf16.mxu0 0
      %1821 = vmatpush2.bf16.msra.mxu0 0
      %1822 = vmatprep.subr.bf16.mxu0 0
      %1823 = vmatpush2.bf16.msra.mxu0 0
      %1824 = vmatprep.subr.bf16.mxu0 0
      %1825 = vmatpush2.bf16.msra.mxu0 0
      %1826 = vmatprep.subr.bf16.mxu0 0
      %1827 = vmatpush2.bf16.msra.mxu0 0
      %1828 = vmatprep.subr.bf16.mxu0 0
      %1829 = vmatpush2.bf16.msra.mxu0 0
      %1830 = vmatprep.subr.bf16.mxu0 0
      %1831 = vmatpush2.bf16.msra.mxu0 0
      %1832 = vmatprep.subr.bf16.mxu0 0
      %1833 = vmatpush2.bf16.msra.mxu0 0
      %1834 = vmatprep.mubr.bf16.mxu0 0
      %1835 = vmatmul.mubr.bf16.gmra.mxu0 %v1797
      %v1836 = vpop.f32.mrf.mxu0
      %v1837 = vadd.f32 0.0, %v1836
      %v1838 = vpop.f32.mrf.mxu0
      %v1839 = vpop.f32.mrf.mxu0
      %v1840 = vpop.f32.mrf.mxu0
      %1841 = vdwg.mxu0
      %1842 = vrot.lane.b32.xlu0 %v1512, 104
      %v1843 = vpop.permute.xlu0 %1842
      %1844 = vrot.lane.b32.xlu0 %v1512, 72
      %v1845 = vpop.permute.xlu0 %1844
      %v1847 = vsel %vm681, %v1843, 0
      %v1850 = vsel %vm681, %v1845, 0
      %1852 = vmatprep.subr.bf16.mxu0 0
      %1853 = vmatpush1.bf16.xpose.msra.mxu0 0
      %1854 = vmatprep.subr.bf16.mxu0 0
      %1855 = vmatpush1.bf16.xpose.msra.mxu0 0
      %1856 = vmatprep.subr.bf16.mxu0 0
      %1857 = vmatpush1.bf16.xpose.msra.mxu0 0
      %1858 = vmatprep.subr.bf16.mxu0 0
      %1859 = vmatpush1.bf16.xpose.msra.mxu0 0
      %1860 = vmatprep.subr.bf16.mxu0 0
      %1861 = vmatpush1.bf16.xpose.msra.mxu0 0
      %1862 = vmatprep.subr.bf16.mxu0 0
      %1863 = vmatpush1.bf16.xpose.msra.mxu0 0
      %1864 = vmatprep.subr.bf16.mxu0 0
      %1865 = vmatpush1.bf16.xpose.msra.mxu0 0
      %1866 = vmatprep.subr.bf16.mxu0 0
      %1867 = vmatpush1.bf16.xpose.msra.mxu0 %v1850
      %1868 = vmatprep.subr.bf16.mxu0 0
      %1869 = vmatpush2.bf16.xpose.msra.mxu0 0
      %1870 = vmatprep.subr.bf16.mxu0 0
      %1871 = vmatpush2.bf16.xpose.msra.mxu0 0
      %1872 = vmatprep.subr.bf16.mxu0 0
      %1873 = vmatpush2.bf16.xpose.msra.mxu0 0
      %1874 = vmatprep.subr.bf16.mxu0 0
      %1875 = vmatpush2.bf16.xpose.msra.mxu0 0
      %1876 = vmatprep.subr.bf16.mxu0 0
      %1877 = vmatpush2.bf16.xpose.msra.mxu0 0
      %1878 = vmatprep.subr.bf16.mxu0 0
      %1879 = vmatpush2.bf16.xpose.msra.mxu0 0
      %1880 = vmatprep.subr.bf16.mxu0 0
      %1881 = vmatpush2.bf16.xpose.msra.mxu0 0
      %1882 = vmatprep.subr.bf16.mxu0 0
      %1883 = vmatpush2.bf16.xpose.msra.mxu0 0
      %1884 = vmatprep.mubr.bf16.mxu0 0
      %1885 = vmatmul.mubr.bf16.gmra.mxu0 %v1847
      %v1886 = vpop.f32.mrf.mxu0
      %v1887 = vadd.f32 0.0, %v1886
      %v1888 = vpop.f32.mrf.mxu0
      %v1889 = vpop.f32.mrf.mxu0
      %v1890 = vpop.f32.mrf.mxu0
      %1891 = vdwg.mxu0
      %v1892 = vsel %vm681, %v1887, -inf
      %1893 = vmax.xlane.f32.xlu0 %v1892
      %v1894 = vpop.xlane.xlu0 %1893
      %v1895 = vsub.f32 %v1887, %v1894
      %v1896 = vmul.f32 %v1895, 1.442695
      %v1897 = vpow.pop %v1896
      %v1898 = vsel %vm681, %v1897, 0.0
      %1899 = vadd.xlane.f32.xlu0 %v1898
      %v1900 = vpop.xlane.xlu0 %1899
      %v1901 = vrcp.pop %v1900
      %v1902 = vmul.f32 %v1897, %v1901
      %v1903 = vpack.c.bf16 %v1902, %v1902
      %1904 = vrot.lane.b32.xlu0 %v1512, 40
      %v1905 = vpop.permute.xlu0 %1904
      %v1907 = vsel %vm681, %v1903, 0
      %v1910 = vsel %vm745, %v1905, 0
      %1912 = vmatprep.subr.bf16.mxu0 0
      %1913 = vmatpush1.bf16.msra.mxu0 0
      %1914 = vmatprep.subr.bf16.mxu0 0
      %1915 = vmatpush1.bf16.msra.mxu0 0
      %1916 = vmatprep.subr.bf16.mxu0 0
      %1917 = vmatpush1.bf16.msra.mxu0 0
      %1918 = vmatprep.subr.bf16.mxu0 0
      %1919 = vmatpush1.bf16.msra.mxu0 0
      %1920 = vmatprep.subr.bf16.mxu0 0
      %1921 = vmatpush1.bf16.msra.mxu0 0
      %1922 = vmatprep.subr.bf16.mxu0 0
      %1923 = vmatpush1.bf16.msra.mxu0 0
      %1924 = vmatprep.subr.bf16.mxu0 0
      %1925 = vmatpush1.bf16.msra.mxu0 0
      %1926 = vmatprep.subr.bf16.mxu0 0
      %1927 = vmatpush1.bf16.msra.mxu0 %v1910
      %1928 = vmatprep.subr.bf16.mxu0 0
      %1929 = vmatpush2.bf16.msra.mxu0 0
      %1930 = vmatprep.subr.bf16.mxu0 0
      %1931 = vmatpush2.bf16.msra.mxu0 0
      %1932 = vmatprep.subr.bf16.mxu0 0
      %1933 = vmatpush2.bf16.msra.mxu0 0
      %1934 = vmatprep.subr.bf16.mxu0 0
      %1935 = vmatpush2.bf16.msra.mxu0 0
      %1936 = vmatprep.subr.bf16.mxu0 0
      %1937 = vmatpush2.bf16.msra.mxu0 0
      %1938 = vmatprep.subr.bf16.mxu0 0
      %1939 = vmatpush2.bf16.msra.mxu0 0
      %1940 = vmatprep.subr.bf16.mxu0 0
      %1941 = vmatpush2.bf16.msra.mxu0 0
      %1942 = vmatprep.subr.bf16.mxu0 0
      %1943 = vmatpush2.bf16.msra.mxu0 0
      %1944 = vmatprep.mubr.bf16.mxu0 0
      %1945 = vmatmul.mubr.bf16.gmra.mxu0 %v1907
      %v1946 = vpop.f32.mrf.mxu0
      %v1947 = vadd.f32 0.0, %v1946
      %v1948 = vpop.f32.mrf.mxu0
      %v1949 = vpop.f32.mrf.mxu0
      %v1950 = vpop.f32.mrf.mxu0
      %1951 = vdwg.mxu0
      %1953 = vrot.lane.b32.xlu0 %v1727, 8
      %v1954 = vpop.permute.xlu0 %1953
      %1957 = vrot.lane.b32.xlu0 %v1837, 16
      %v1958 = vpop.permute.xlu0 %1957
      %1961 = vrot.lane.b32.xlu0 %v1947, 24
      %v1962 = vpop.permute.xlu0 %1961
      %v1964 = vsel %vm681, %v1617, %v1954
      %v1965 = vsel %vm564, %v1964, %v1958
      %v1966 = vsel %vm1133, %v1965, %v1962
      %s1967 = scalar_lea.vmem %s5, 16
      %v1968 = vld [vmem:[%s1967] sm:$0xf]
      %v1969 = vld [vmem:[%s1967 + $0x4] sm:$0xf]
      %v1970 = vld [vmem:[%s1967 + $0x8] sm:$0xf]
      %v1971 = vld [vmem:[%s1967 + $0xc] sm:$0xf]
      %v1972 = vpack.c.bf16 %v1966, %v1966
      %s1973 = scalar_lea.vmem %s6, 1
      %v1974 = vld [vmem:[%s1973] sm:$0x1]
      %v1976 = vlaneseq
      %v1977 = vshrl.u32 %v1976, 7
      %v1978 = vsub.s32 0, %v1977
      %v1979 = vrot.slane %v1974, %v1978
      %v1985 = vunpack.c.l.b16 %v1968
      %v1986 = vunpack.c.l.b16 %v1969
      %v1987 = vunpack.c.l.b16 %v1970
      %v1988 = vunpack.c.l.b16 %v1971
      %v1989 = vpack.c.b16 %v1986, %v1985
      %v1990 = vpack.c.b16 %v1988, %v1987
      %v1994 = vsel %vm633, %v1972, 0
      %1996 = vmatprep.subr.bf16.mxu0 0
      %1997 = vmatpush1.bf16.msra.mxu0 0
      %1998 = vmatprep.subr.bf16.mxu0 0
      %1999 = vmatpush1.bf16.msra.mxu0 0
      %2000 = vmatprep.subr.bf16.mxu0 0
      %2001 = vmatpush1.bf16.msra.mxu0 0
      %2002 = vmatprep.subr.bf16.mxu0 0
      %2003 = vmatpush1.bf16.msra.mxu0 0
      %2004 = vmatprep.subr.bf16.mxu0 0
      %2005 = vmatpush1.bf16.msra.mxu0 0
      %2006 = vmatprep.subr.bf16.mxu0 0
      %2007 = vmatpush1.bf16.msra.mxu0 0
      %2008 = vmatprep.subr.bf16.mxu0 0
      %2009 = vmatpush1.bf16.msra.mxu0 %v1990
      %2010 = vmatprep.subr.bf16.mxu0 0
      %2011 = vmatpush1.bf16.msra.mxu0 %v1989
      %2012 = vmatprep.subr.bf16.mxu0 0
      %2013 = vmatpush2.bf16.msra.mxu0 0
      %2014 = vmatprep.subr.bf16.mxu0 0
      %2015 = vmatpush2.bf16.msra.mxu0 0
      %2016 = vmatprep.subr.bf16.mxu0 0
      %2017 = vmatpush2.bf16.msra.mxu0 0
      %2018 = vmatprep.subr.bf16.mxu0 0
      %2019 = vmatpush2.bf16.msra.mxu0 0
      %2020 = vmatprep.subr.bf16.mxu0 0
      %2021 = vmatpush2.bf16.msra.mxu0 0
      %2022 = vmatprep.subr.bf16.mxu0 0
      %2023 = vmatpush2.bf16.msra.mxu0 0
      %2024 = vmatprep.subr.bf16.mxu0 0
      %2025 = vmatpush2.bf16.msra.mxu0 0
      %2026 = vmatprep.subr.bf16.mxu0 0
      %2027 = vmatpush2.bf16.msra.mxu0 0
      %2028 = vmatprep.mubr.bf16.mxu0 0
      %2029 = vmatmul.mubr.bf16.gmra.mxu0 %v1994
      %v2030 = vpop.f32.mrf.mxu0
      %v2031 = vadd.f32 %v1979, %v2030
      %v2032 = vpop.f32.mrf.mxu0
      %v2033 = vpop.f32.mrf.mxu0
      %v2034 = vpop.f32.mrf.mxu0
      %2035 = vdwg.mxu0
      %v2036 = vadd.f32 %v1442, %v2031
      %s2037 = scalar_lea.vmem %s7, 1
      %v2038 = vld [vmem:[%s2037] sm:$0x1]
      %s2039 = scalar_lea.vmem %s8, 1
      %v2040 = vld [vmem:[%s2039] sm:$0x1]
      %v2041 = vsel %vm633, %v2036, 0.0
      %2042 = vadd.xlane.f32.xlu0 %v2041
      %v2043 = vpop.xlane.xlu0 %2042
      %v2044 = vmul.f32 %v2043, %v1208
      %v2045 = vsub.f32 %v2036, %v2044
      %v2046 = vmul.f32 %v2045, %v2045
      %v2047 = vsel %vm633, %v2046, 0.0
      %2048 = vadd.xlane.f32.xlu0 %v2047
      %v2049 = vpop.xlane.xlu0 %2048
      %v2050 = vmul.f32 %v2049, %v1208
      %v2051 = vadd.f32 %v2050, 1e-05
      %v2052 = vrsqrt.pop %v2051
      %v2053 = vmul.f32 %v2045, %v2052
      %v2055 = vlaneseq
      %v2056 = vshrl.u32 %v2055, 7
      %v2057 = vsub.s32 0, %v2056
      %v2058 = vrot.slane %v2038, %v2057
      %v2060 = vmul.f32 %v2053, %v2058
      %v2062 = vlaneseq
      %v2063 = vshrl.u32 %v2062, 7
      %v2064 = vsub.s32 0, %v2063
      %v2065 = vrot.slane %v2040, %v2064
      %v2067 = vadd.f32 %v2060, %v2065
      %s2068 = scalar_lea.vmem %s9, 16
      %v2069 = vld [vmem:[%s2068] sm:$0xf]
      %v2070 = vld [vmem:[%s2068 + $0x4] sm:$0xf]
      %v2071 = vld [vmem:[%s2068 + $0x8] sm:$0xf]
      %v2072 = vld [vmem:[%s2068 + $0xc] sm:$0xf]
      %v2073 = vpack.c.bf16 %v2067, %v2067
      %s2074 = scalar_lea.vmem %s10, 1
      %v2075 = vld [vmem:[%s2074] sm:$0x1]
      %v2077 = vlaneseq
      %v2078 = vshrl.u32 %v2077, 7
      %v2079 = vsub.s32 0, %v2078
      %v2080 = vrot.slane %v2075, %v2079
      %v2086 = vunpack.c.l.b16 %v2069
      %v2087 = vunpack.c.l.b16 %v2070
      %v2088 = vunpack.c.l.b16 %v2071
      %v2089 = vunpack.c.l.b16 %v2072
      %v2090 = vpack.c.b16 %v2087, %v2086
      %v2091 = vpack.c.b16 %v2089, %v2088
      %v2095 = vsel %vm633, %v2073, 0
      %2097 = vmatprep.subr.bf16.mxu0 0
      %2098 = vmatpush1.bf16.msra.mxu0 0
      %2099 = vmatprep.subr.bf16.mxu0 0
      %2100 = vmatpush1.bf16.msra.mxu0 0
      %2101 = vmatprep.subr.bf16.mxu0 0
      %2102 = vmatpush1.bf16.msra.mxu0 0
      %2103 = vmatprep.subr.bf16.mxu0 0
      %2104 = vmatpush1.bf16.msra.mxu0 0
      %2105 = vmatprep.subr.bf16.mxu0 0
      %2106 = vmatpush1.bf16.msra.mxu0 0
      %2107 = vmatprep.subr.bf16.mxu0 0
      %2108 = vmatpush1.bf16.msra.mxu0 0
      %2109 = vmatprep.subr.bf16.mxu0 0
      %2110 = vmatpush1.bf16.msra.mxu0 %v2091
      %2111 = vmatprep.subr.bf16.mxu0 0
      %2112 = vmatpush1.bf16.msra.mxu0 %v2090
      %2113 = vmatprep.subr.bf16.mxu0 0
      %2114 = vmatpush2.bf16.msra.mxu0 0
      %2115 = vmatprep.subr.bf16.mxu0 0
      %2116 = vmatpush2.bf16.msra.mxu0 0
      %2117 = vmatprep.subr.bf16.mxu0 0
      %2118 = vmatpush2.bf16.msra.mxu0 0
      %2119 = vmatprep.subr.bf16.mxu0 0
      %2120 = vmatpush2.bf16.msra.mxu0 0
      %2121 = vmatprep.subr.bf16.mxu0 0
      %2122 = vmatpush2.bf16.msra.mxu0 0
      %2123 = vmatprep.subr.bf16.mxu0 0
      %2124 = vmatpush2.bf16.msra.mxu0 0
      %2125 = vmatprep.subr.bf16.mxu0 0
      %2126 = vmatpush2.bf16.msra.mxu0 0
      %2127 = vmatprep.subr.bf16.mxu0 0
      %2128 = vmatpush2.bf16.msra.mxu0 0
      %2129 = vmatprep.mubr.bf16.mxu0 0
      %2130 = vmatmul.mubr.bf16.gmra.mxu0 %v2095
      %v2131 = vpop.f32.mrf.mxu0
      %v2132 = vadd.f32 %v2080, %v2131
      %v2133 = vpop.f32.mrf.mxu0
      %v2134 = vpop.f32.mrf.mxu0
      %v2135 = vpop.f32.mrf.mxu0
      %2136 = vdwg.mxu0
      %v2137 = vmax.f32 %v2132, 0.0
      %s2138 = scalar_lea.vmem %s11, 64
      %v2139 = vld [vmem:[%s2138] sm:$0xf]
      %v2140 = vld [vmem:[%s2138 + $0x4] sm:$0xf]
      %v2141 = vld [vmem:[%s2138 + $0x8] sm:$0xf]
      %v2142 = vld [vmem:[%s2138 + $0xc] sm:$0xf]
      %v2143 = vld [vmem:[%s2138 + $0x10] sm:$0xf]
      %v2144 = vld [vmem:[%s2138 + $0x14] sm:$0xf]
      %v2145 = vld [vmem:[%s2138 + $0x18] sm:$0xf]
      %v2146 = vld [vmem:[%s2138 + $0x1c] sm:$0xf]
      %v2147 = vld [vmem:[%s2138 + $0x20] sm:$0xf]
      %v2148 = vld [vmem:[%s2138 + $0x24] sm:$0xf]
      %v2149 = vld [vmem:[%s2138 + $0x28] sm:$0xf]
      %v2150 = vld [vmem:[%s2138 + $0x2c] sm:$0xf]
      %v2151 = vld [vmem:[%s2138 + $0x30] sm:$0xf]
      %v2152 = vld [vmem:[%s2138 + $0x34] sm:$0xf]
      %v2153 = vld [vmem:[%s2138 + $0x38] sm:$0xf]
      %v2154 = vld [vmem:[%s2138 + $0x3c] sm:$0xf]
      %v2155 = vpack.c.bf16 %v2137, %v2137
      %s2156 = scalar_lea.vmem %s12, 1
      %v2157 = vld [vmem:[%s2156] sm:$0x1]
      %v2159 = vlaneseq
      %v2160 = vshrl.u32 %v2159, 7
      %v2161 = vsub.s32 0, %v2160
      %v2162 = vrot.slane %v2157, %v2161
      %v2180 = vunpack.c.l.b16 %v2139
      %v2181 = vunpack.c.l.b16 %v2140
      %v2182 = vunpack.c.l.b16 %v2141
      %v2183 = vunpack.c.l.b16 %v2142
      %v2184 = vunpack.c.l.b16 %v2143
      %v2185 = vunpack.c.l.b16 %v2144
      %v2186 = vunpack.c.l.b16 %v2145
      %v2187 = vunpack.c.l.b16 %v2146
      %v2188 = vunpack.c.l.b16 %v2147
      %v2189 = vunpack.c.l.b16 %v2148
      %v2190 = vunpack.c.l.b16 %v2149
      %v2191 = vunpack.c.l.b16 %v2150
      %v2192 = vunpack.c.l.b16 %v2151
      %v2193 = vunpack.c.l.b16 %v2152
      %v2194 = vunpack.c.l.b16 %v2153
      %v2195 = vunpack.c.l.b16 %v2154
      %v2196 = vpack.c.b16 %v2181, %v2180
      %v2197 = vpack.c.b16 %v2183, %v2182
      %v2198 = vpack.c.b16 %v2185, %v2184
      %v2199 = vpack.c.b16 %v2187, %v2186
      %v2200 = vpack.c.b16 %v2189, %v2188
      %v2201 = vpack.c.b16 %v2191, %v2190
      %v2202 = vpack.c.b16 %v2193, %v2192
      %v2203 = vpack.c.b16 %v2195, %v2194
      %2212 = vmatprep.subr.bf16.mxu0 0
      %2213 = vmatpush1.bf16.msra.mxu0 %v2203
      %2214 = vmatprep.subr.bf16.mxu0 0
      %2215 = vmatpush1.bf16.msra.mxu0 %v2202
      %2216 = vmatprep.subr.bf16.mxu0 0
      %2217 = vmatpush1.bf16.msra.mxu0 %v2201
      %2218 = vmatprep.subr.bf16.mxu0 0
      %2219 = vmatpush1.bf16.msra.mxu0 %v2200
      %2220 = vmatprep.subr.bf16.mxu0 0
      %2221 = vmatpush1.bf16.msra.mxu0 %v2199
      %2222 = vmatprep.subr.bf16.mxu0 0
      %2223 = vmatpush1.bf16.msra.mxu0 %v2198
      %2224 = vmatprep.subr.bf16.mxu0 0
      %2225 = vmatpush1.bf16.msra.mxu0 %v2197
      %2226 = vmatprep.subr.bf16.mxu0 0
      %2227 = vmatpush1.bf16.msra.mxu0 %v2196
      %2228 = vmatprep.subr.bf16.mxu0 0
      %2229 = vmatpush2.bf16.msra.mxu0 0
      %2230 = vmatprep.subr.bf16.mxu0 0
      %2231 = vmatpush2.bf16.msra.mxu0 0
      %2232 = vmatprep.subr.bf16.mxu0 0
      %2233 = vmatpush2.bf16.msra.mxu0 0
      %2234 = vmatprep.subr.bf16.mxu0 0
      %2235 = vmatpush2.bf16.msra.mxu0 0
      %2236 = vmatprep.subr.bf16.mxu0 0
      %2237 = vmatpush2.bf16.msra.mxu0 0
      %2238 = vmatprep.subr.bf16.mxu0 0
      %2239 = vmatpush2.bf16.msra.mxu0 0
      %2240 = vmatprep.subr.bf16.mxu0 0
      %2241 = vmatpush2.bf16.msra.mxu0 0
      %2242 = vmatprep.subr.bf16.mxu0 0
      %2243 = vmatpush2.bf16.msra.mxu0 0
      %2244 = vmatprep.mubr.bf16.mxu0 0
      %2245 = vmatmul.mubr.bf16.gmra.mxu0 %v2155
      %v2246 = vpop.f32.mrf.mxu0
      %v2247 = vadd.f32 %v2162, %v2246
      %v2248 = vpop.f32.mrf.mxu0
      %v2249 = vpop.f32.mrf.mxu0
      %v2250 = vpop.f32.mrf.mxu0
      %2251 = vdwg.mxu0
      %v2252 = vadd.f32 %v2067, %v2247
      %s2253 = scalar_lea.vmem %s13, 1
      %v2254 = vld [vmem:[%s2253] sm:$0x1]
      %s2255 = scalar_lea.vmem %s14, 1
      %v2256 = vld [vmem:[%s2255] sm:$0x1]
      %v2257 = vsel %vm633, %v2252, 0.0
      %2258 = vadd.xlane.f32.xlu0 %v2257
      %v2259 = vpop.xlane.xlu0 %2258
      %v2260 = vmul.f32 %v2259, %v1208
      %v2261 = vsub.f32 %v2252, %v2260
      %v2262 = vmul.f32 %v2261, %v2261
      %v2263 = vsel %vm633, %v2262, 0.0
      %2264 = vadd.xlane.f32.xlu0 %v2263
      %v2265 = vpop.xlane.xlu0 %2264
      %v2266 = vmul.f32 %v2265, %v1208
      %v2267 = vadd.f32 %v2266, 1e-05
      %v2268 = vrsqrt.pop %v2267
      %v2269 = vmul.f32 %v2261, %v2268
      %v2271 = vlaneseq
      %v2272 = vshrl.u32 %v2271, 7
      %v2273 = vsub.s32 0, %v2272
      %v2274 = vrot.slane %v2254, %v2273
      %v2276 = vmul.f32 %v2269, %v2274
      %v2278 = vlaneseq
      %v2279 = vshrl.u32 %v2278, 7
      %v2280 = vsub.s32 0, %v2279
      %v2281 = vrot.slane %v2256, %v2280
      %v2283 = vadd.f32 %v2276, %v2281
      %v2284 = vld [vmem:[%s15] sm:$0xf]
      %v2285 = vld [vmem:[%s15 + $0x4] sm:$0xf]
      %v2286 = vld [vmem:[%s15 + $0x8] sm:$0xf]
      %v2287 = vld [vmem:[%s15 + $0xc] sm:$0xf]
      %v2288 = vpack.c.bf16 %v2283, %v2283
      %v2289 = vld [vmem:[#allocation2] sm:$0x1]
      %v2291 = vlaneseq
      %v2292 = vshrl.u32 %v2291, 7
      %v2293 = vsub.s32 0, %v2292
      %v2294 = vrot.slane %v2289, %v2293
      %v2300 = vunpack.c.l.b16 %v2284
      %v2301 = vunpack.c.l.b16 %v2285
      %v2302 = vunpack.c.l.b16 %v2286
      %v2303 = vunpack.c.l.b16 %v2287
      %v2304 = vpack.c.b16 %v2301, %v2300
      %v2305 = vpack.c.b16 %v2303, %v2302
      %v2309 = vsel %vm633, %v2288, 0
      %2311 = vmatprep.subr.bf16.mxu0 0
      %2312 = vmatpush1.bf16.msra.mxu0 0
      %2313 = vmatprep.subr.bf16.mxu0 0
      %2314 = vmatpush1.bf16.msra.mxu0 0
      %2315 = vmatprep.subr.bf16.mxu0 0
      %2316 = vmatpush1.bf16.msra.mxu0 0
      %2317 = vmatprep.subr.bf16.mxu0 0
      %2318 = vmatpush1.bf16.msra.mxu0 0
      %2319 = vmatprep.subr.bf16.mxu0 0
      %2320 = vmatpush1.bf16.msra.mxu0 0
      %2321 = vmatprep.subr.bf16.mxu0 0
      %2322 = vmatpush1.bf16.msra.mxu0 0
      %2323 = vmatprep.subr.bf16.mxu0 0
      %2324 = vmatpush1.bf16.msra.mxu0 %v2305
      %2325 = vmatprep.subr.bf16.mxu0 0
      %2326 = vmatpush1.bf16.msra.mxu0 %v2304
      %2327 = vmatprep.subr.bf16.mxu0 0
      %2328 = vmatpush2.bf16.msra.mxu0 0
      %2329 = vmatprep.subr.bf16.mxu0 0
      %2330 = vmatpush2.bf16.msra.mxu0 0
      %2331 = vmatprep.subr.bf16.mxu0 0
      %2332 = vmatpush2.bf16.msra.mxu0 0
      %2333 = vmatprep.subr.bf16.mxu0 0
      %2334 = vmatpush2.bf16.msra.mxu0 0
      %2335 = vmatprep.subr.bf16.mxu0 0
      %2336 = vmatpush2.bf16.msra.mxu0 0
      %2337 = vmatprep.subr.bf16.mxu0 0
      %2338 = vmatpush2.bf16.msra.mxu0 0
      %2339 = vmatprep.subr.bf16.mxu0 0
      %2340 = vmatpush2.bf16.msra.mxu0 0
      %2341 = vmatprep.subr.bf16.mxu0 0
      %2342 = vmatpush2.bf16.msra.mxu0 0
      %2343 = vmatprep.mubr.bf16.mxu0 0
      %2344 = vmatmul.mubr.bf16.gmra.mxu0 %v2309
      %v2345 = vpop.f32.mrf.mxu0
      %v2346 = vadd.f32 %v2294, %v2345
      %v2347 = vpop.f32.mrf.mxu0
      %v2348 = vpop.f32.mrf.mxu0
      %v2349 = vpop.f32.mrf.mxu0
      %2350 = vdwg.mxu0
      %vm2351 = vcmask 7168
      %2352 = vst.msk [vmem:[%s545] sm:$0xff] %vm2351, %v2346
      %p2353 = scmp.lt.s32.totalorder %s30, 1
      %s2354 = scalar_select %p2353, %s30, 1
      %s2355 = smul.addr %s2354, 8
      %s2356 = scalar_lea.vmem %s17, %s2355
      // Predicated region
      $region89: #{_attention_forward_jit.1} parent=87 // pred_check
        %p2357 = pneg %p410
      $region90: #{_attention_forward_jit.1} parent=87 // pred_check_branch
        %2359 = sbr.rel (%p2357) target = $region92
      $region91: #{_attention_forward_jit.1} parent=87 // pred_region
        _
      $region92: #{_attention_forward_jit.1} parent=87 // pred_fallthru
        _
    $region88: #{_attention_forward_jit.1} parent=5 // pred_fallthru
      _
    %p2360 = scmp.le.s32.totalorder 2, %s25
    // Predicated region
    $region93: #{_attention_forward_jit.1} parent=5 // pred_check
      %p2361 = pneg %p2360
    $region94: #{_attention_forward_jit.1} parent=5 // pred_check_branch
      %2363 = sbr.rel (%p2361) target = $region96
    $region95: #{_attention_forward_jit.1} parent=5 // pred_region
      %s2364 = ssub.s32 %s25, 2
      // Predicated region
      $region97: #{_attention_forward_jit.1} parent=95 // pred_check
        %p2365 = pneg %p416
      $region98: #{_attention_forward_jit.1} parent=95 // pred_check_branch
        %2367 = sbr.rel (%p2365) target = $region100
      $region99: #{_attention_forward_jit.1} parent=95 // pred_region
        %p2368 = scmp.lt.s32.totalorder %s31, 1
        %s2369 = scalar_select %p2368, %s31, 1
        %s2370 = smul.addr %s2369, 8
        %s2371 = scalar_lea.vmem %s17, %s2370
      $region100: #{_attention_forward_jit.1} parent=95 // pred_fallthru
        _
    $region96: #{_attention_forward_jit.1} parent=5 // pred_fallthru
      _
  $region6: #{_attention_forward_jit.1} parent=0 // loop_footer
    %s29 = sadd.s32 1, %s25
  $region7: #{_attention_forward_jit.1} parent=0 // loop_footer_branch
    %24 = sbr.rel target = $region3
  $region8: #{_attention_forward_jit.1} parent=0 // loop_exit
    _

</llo_original>
